<compile_context>
chip_gen: v7x
topology: tpu7x:2x2x1
jax: 0.10.0
libtpu: 0.0.40
codegen_flags: <defaults>
</compile_context>

<pallas_src>
import functools

import jax
import jax.numpy as jnp
from jax.experimental import pallas as pl
from jax.experimental.pallas import tpu as pltpu

LANE = 128
_HI = jax.lax.Precision.HIGHEST


def _mm_hi(a, b):
    """Host-side matmul at highest precision (one-time weight fusion)."""
    return jnp.matmul(a, b, precision=_HI)


def _pad_lanes(a):
    """Zero-pad the last dim to LANE (lane-dense outputs / slab columns)."""
    pad = LANE - a.shape[-1]
    assert pad >= 0
    return jnp.pad(a, [(0, 0)] * (a.ndim - 1) + [(0, pad)])


def _pad_rows(a, rows):
    """Zero-pad the leading dim to `rows` (16-aligned slab blocks)."""
    return jnp.pad(a, ((0, rows - a.shape[0]), (0, 0)))


def _gate_scale_pad(w, hidden):
    """Pre-scale i/f/o gate columns by 0.5 (sigmoid = 0.5*tanh(0.5*x)+0.5 folding)
    and zero-pad the gate axis to LANE.  Works for 2-D weights and 1-D biases."""
    n = w.shape[-1]
    assert n == 4 * hidden
    gate = jnp.arange(n) // hidden
    scale = jnp.where(gate == 2, 1.0, 0.5).astype(w.dtype)   # g gate untouched
    return _pad_lanes(w * scale)


# ----------------------------------------------------------------------------
# One-time host-side parameter fusion & packing (OUTSIDE the per-call jit)
# ----------------------------------------------------------------------------
def pack_params(p):
    """Fuse emb/f_rep Linears into the LSTM input projections, fold biases,
    pre-scale i/f/o gate columns, and pack everything into two lane-dense
    slabs: wslab (bf16) and bslab (f32).  Returns (wslab, bslab, meta)."""
    ehid = p["e_whh1"].shape[0]
    dhid = p["d_whh"].shape[0]
    rep = p["w_mu"].shape[1]
    din = p["e_emb_w"].shape[0]
    assert 4 * ehid <= LANE and 4 * dhid <= LANE and 2 * rep <= LANE
    assert ehid % 16 == 0 and dhid % 16 == 0      # 16-row bf16 tile alignment
    din_pad = -(-din // 16) * 16
    rep_pad = -(-rep // 16) * 16

    # --- encoder layer 0: emb folded into the LSTM input projection ---------
    e_wx1 = _gate_scale_pad(_mm_hi(p["e_emb_w"], p["e_wih1"]), ehid)
    e_bx1 = _gate_scale_pad(
        _mm_hi(p["e_emb_b"], p["e_wih1"]) + p["e_bih1"] + p["e_bhh1"], ehid)
    e_whh1 = _gate_scale_pad(p["e_whh1"], ehid)
    # --- encoder layer 1: fused [W_ih2 ; W_hh2] (one recurrent matmul/step) --
    e_wl2 = _gate_scale_pad(
        jnp.concatenate([p["e_wih2"], p["e_whh2"]], axis=0), ehid)
    e_b2 = _gate_scale_pad(p["e_bih2"] + p["e_bhh2"], ehid)
    # --- mu/sigma heads (lane-dense padded) ----------------------------------
    e_whead = _pad_lanes(jnp.concatenate([p["w_mu"], p["w_sg"]], axis=1))
    e_bhead = _pad_lanes(jnp.concatenate([p["b_mu"], p["b_sg"]]))
    # --- decoder: emb folded in; f_rep additionally folded for the z step ----
    d_wx = _gate_scale_pad(_mm_hi(p["d_emb_w"], p["d_wih"]), dhid)
    d_bx = _gate_scale_pad(
        _mm_hi(p["d_emb_b"], p["d_wih"]) + p["d_bih"] + p["d_bhh"], dhid)
    d_wz = _mm_hi(p["d_rep_w"], d_wx)              # inherits scaling/padding
    d_bz = _mm_hi(p["d_rep_b"], d_wx) + d_bx
    d_whh = _gate_scale_pad(p["d_whh"], dhid)
    d_whead = _pad_lanes(jnp.concatenate(
        [p["w_tu"], p["w_tv"], p["w_lu"], p["w_lv"], p["w_le"]], axis=1))
    d_bhead = _pad_lanes(jnp.concatenate(
        [p["b_tu"], p["b_tv"], p["b_lu"], p["b_lv"], p["b_le"]]))

    # --- one bf16 weight slab (all offsets are multiples of 16 rows) ---------
    wslab = jnp.concatenate([
        _pad_rows(e_wx1, din_pad),     # rows [0, din_pad)
        e_whh1,                        # [din_pad, +ehid)
        e_wl2,                         # [+, +2*ehid)
        e_whead,                       # [+, +ehid)
        _pad_rows(d_wz, rep_pad),      # [+, +rep_pad)
        _pad_rows(d_wx, din_pad),      # [+, +din_pad)
        d_whh,                         # [+, +dhid)
        d_whead,                       # [+, +dhid)
    ], axis=0).astype(jnp.bfloat16)

    # --- one f32 bias slab ----------------------------------------------------
    bslab = jnp.stack([e_bx1, e_b2, e_bhead, d_bz, d_bx, d_bhead],
                      axis=0).astype(jnp.float32)
    bslab = jnp.pad(bslab, ((0, 8 - bslab.shape[0]), (0, 0)))

    meta = dict(din_pad=din_pad, rep_pad=rep_pad, ehid=ehid, dhid=dhid, rep=rep)
    return wslab, bslab, meta


# ----------------------------------------------------------------------------
# Kernel
# ----------------------------------------------------------------------------
def _vae_kernel(
    x_ref,        # (T*B, din_pad) f32   time-major flatten of x (zero col-pad)
    eps_ref,      # (B, rep)       f32   reparameterization noise
    w_ref,        # (rows, 128)    bf16  packed weight slab
    b_ref,        # (8, 128)       f32   packed bias slab
    enc_out_ref,  # (B, 128)       f32   [mu | sigma | 0]      (lane-dense)
    dec_out_ref,  # (T*B, 128)     f32   time-major decoder heads (lane-dense)
    hd_buf,       # (T*B, dhid)    f32   decoder hidden sequence scratch
    *,
    batch, seq_len, din_pad, ehid, dhid, rep, rep_pad,
):
    B, T, He, Hd = batch, seq_len, ehid, dhid
    f32, bf16 = jnp.float32, jnp.bfloat16

    def mm(a, b):
        # activations stay f32; cast only the MXU operand, accumulate in f32
        return jnp.dot(a.astype(bf16), b, preferred_element_type=f32)

    # static slab row offsets (must mirror pack_params)
    o_e_wx1 = 0
    o_e_whh1 = o_e_wx1 + din_pad
    o_e_wl2 = o_e_whh1 + He
    o_e_whead = o_e_wl2 + 2 * He
    o_d_wz = o_e_whead + He
    o_d_wx = o_d_wz + rep_pad
    o_d_whh = o_d_wx + din_pad
    o_d_whead = o_d_whh + Hd

    e_wx1 = w_ref[o_e_wx1:o_e_wx1 + din_pad, :]
    e_whh1 = w_ref[o_e_whh1:o_e_whh1 + He, :]
    e_wl2 = w_ref[o_e_wl2:o_e_wl2 + 2 * He, :]
    e_whead = w_ref[o_e_whead:o_e_whead + He, :]
    d_wz = w_ref[o_d_wz:o_d_wz + rep_pad, :]
    d_wx = w_ref[o_d_wx:o_d_wx + din_pad, :]
    d_whh = w_ref[o_d_whh:o_d_whh + Hd, :]
    d_whead = w_ref[o_d_whead:o_d_whead + Hd, :]

    e_bx1 = b_ref[0:1, :]
    e_b2 = b_ref[1:2, :]
    e_bhead = b_ref[2:3, :]
    d_bz = b_ref[3:4, :]
    d_bx = b_ref[4:5, :]
    d_bhead = b_ref[5:6, :]

    def make_act_consts(H):
        # i/f/o lanes: act = 0.5*tanh(pre) + 0.5  (pre already scaled by 0.5)
        # g lanes    : act =     tanh(pre)
        lane = jax.lax.broadcasted_iota(jnp.int32, (1, LANE), 1)
        is_g = jnp.logical_and(lane >= 2 * H, lane < 3 * H)
        s_out = jnp.where(is_g, 1.0, 0.5).astype(f32)
        b_out = jnp.where(is_g, 0.0, 0.5).astype(f32)
        return s_out, b_out

    def lstm_step(pre, c, H, s_out, b_out):
        # ONE tanh over the full 128-lane gate vector + one tanh(c) per step.
        act = jnp.tanh(pre) * s_out + b_out
        i_t = act[:, 0:H]
        f_t = act[:, H:2 * H]
        g_t = act[:, 2 * H:3 * H]
        o_t = act[:, 3 * H:4 * H]
        c_new = f_t * c + i_t * g_t
        h_new = o_t * jnp.tanh(c_new)
        return h_new, c_new

    x_all = x_ref[...]                                        # (T*B, din_pad)

    # ---- Encoder: batched layer-0 input projection (off the h-chain) --------
    gx1 = mm(x_all, e_wx1) + e_bx1                            # (T*B, 128)
    s_e, b_e = make_act_consts(He)
    h0 = jnp.zeros((B, He), f32); c0 = jnp.zeros((B, He), f32)
    h1 = jnp.zeros((B, He), f32); c1 = jnp.zeros((B, He), f32)
    # Wavefronted two-layer recurrence: layer-1 step t follows layer-0 step t;
    # layer-0 step t+1 is independent of layer-1 step t (scheduler overlaps).
    for t in range(T):
        pre0 = gx1[t * B:(t + 1) * B, :] + mm(h0, e_whh1)     # contiguous rows
        h0, c0 = lstm_step(pre0, c0, He, s_e, b_e)
        pre1 = mm(jnp.concatenate([h0, h1], axis=1), e_wl2) + e_b2
        h1, c1 = lstm_step(pre1, c1, He, s_e, b_e)

    # ---- mu / sigma heads (single lane-dense matmul) + reparameterization ---
    enc_head = mm(h1, e_whead) + e_bhead                      # (B, 128)
    enc_out_ref[...] = enc_head
    mu = enc_head[:, 0:rep]
    sigma = enc_head[:, rep:2 * rep]
    z = mu + jnp.exp(0.5 * sigma) * eps_ref[...]              # (B, rep)
    if rep_pad > rep:
        z = jnp.concatenate([z, jnp.zeros((B, rep_pad - rep), f32)], axis=1)

    # ---- Decoder: step 0 uses f_rep(z); steps 1..T-1 use x[:, t-1, :] --------
    g0 = mm(z, d_wz) + d_bz                                   # (B, 128)
    gxd = mm(x_all, d_wx) + d_bx                              # (T*B, 128)
    s_d, b_d = make_act_consts(Hd)
    hd = jnp.zeros((B, Hd), f32); cd = jnp.zeros((B, Hd), f32)
    for t in range(T):
        gx_t = g0 if t == 0 else gxd[(t - 1) * B:t * B, :]
        pre = gx_t + mm(hd, d_whh)
        hd, cd = lstm_step(pre, cd, Hd, s_d, b_d)
        hd_buf[t * B:(t + 1) * B, :] = hd                     # time-major rows

    # ---- Five linear heads fused into one lane-dense matmul -----------------
    dec_out_ref[...] = mm(hd_buf[...], d_whead) + d_bhead


# ----------------------------------------------------------------------------
# Wrapper (jitted; all weight fusion already done in pack_params)
# ----------------------------------------------------------------------------
@functools.partial(jax.jit, static_argnames=(
    "time_size", "node_size", "edge_size", "ehid", "dhid", "rep", "rep_pad", "din_pad"))
def vae_forward(x, eps, wslab, bslab, *, time_size, node_size, edge_size,
                ehid, dhid, rep, rep_pad, din_pad):
    """Forward pass of VAENonConditional.

    Returns (mu, sigma, outputs, tu, tv, lu, lv, le) with PyTorch shapes:
    mu/sigma (B,1,rep); outputs (B,T,2*time+2*node+edge); heads (B,T,·)."""
    B, T, din = x.shape
    dfs_out = 2 * time_size + 2 * node_size + edge_size
    assert dfs_out <= LANE

    # time-major flatten (contiguous per-step slices in-kernel) + col zero-pad
    x_tm = x.transpose(1, 0, 2).reshape(T * B, din).astype(jnp.float32)
    x_tm = jnp.pad(x_tm, ((0, 0), (0, din_pad - din)))

    vmem = pl.BlockSpec(memory_space=pltpu.MemorySpace.VMEM)
    enc_out, dec_out = pl.pallas_call(
        functools.partial(_vae_kernel, batch=B, seq_len=T, din_pad=din_pad,
                          ehid=ehid, dhid=dhid, rep=rep, rep_pad=rep_pad),
        out_shape=(
            jax.ShapeDtypeStruct((B, LANE), jnp.float32),
            jax.ShapeDtypeStruct((T * B, LANE), jnp.float32),
        ),
        in_specs=[vmem, vmem, vmem, vmem],
        out_specs=(vmem, vmem),
        scratch_shapes=[pltpu.VMEM((T * B, dhid), jnp.float32)],
        compiler_params=pltpu.CompilerParams(vmem_limit_bytes=4 * 1024 * 1024),
        # TODO(synk): for large B/T add a batch grid with
        # dimension_semantics=("parallel",) (v7x dual TensorCore) and size
        # BlockSpec tiles against v7x's 64 MiB VMEM; unnecessary at B=2.
    )(x_tm, eps.astype(jnp.float32), wslab, bslab)

    mu = enc_out[:, None, 0:rep]                           # (B, 1, rep)
    sigma = enc_out[:, None, rep:2 * rep]                  # (B, 1, rep)
    dec = dec_out.reshape(T, B, LANE).transpose(1, 0, 2)   # (B, T, 128)
    outputs = dec[:, :, :dfs_out]
    ts, ns = time_size, node_size
    tu = outputs[..., 0:ts]
    tv = outputs[..., ts:2 * ts]
    lu = outputs[..., 2 * ts:2 * ts + ns]
    lv = outputs[..., 2 * ts + ns:2 * ts + 2 * ns]
    le = outputs[..., 2 * ts + 2 * ns:]
    return mu, sigma, outputs, tu, tv, lu, lv, le


# ----------------------------------------------------------------------------
# Pure-JAX reference (faithful, unfused, f32) — correctness check only
# ----------------------------------------------------------------------------
def _lstm_layer_ref(x_seq, w_ih, w_hh, b_ih, b_hh):
    B, T, _ = x_seq.shape
    H = w_hh.shape[0]
    h = jnp.zeros((B, H), jnp.float32)
    c = jnp.zeros((B, H), jnp.float32)
    outs = []
    for t in range(T):
        g = _mm_hi(x_seq[:, t, :], w_ih) + _mm_hi(h, w_hh) + b_ih + b_hh
        i = jax.nn.sigmoid(g[:, 0:H])
        f = jax.nn.sigmoid(g[:, H:2 * H])
        gg = jnp.tanh(g[:, 2 * H:3 * H])
        o = jax.nn.sigmoid(g[:, 3 * H:4 * H])
        c = f * c + i * gg
        h = o * jnp.tanh(c)
        outs.append(h)
    return jnp.stack(outs, axis=1)                        # (B, T, H)


def vae_reference(x, eps, p):
    e = _mm_hi(x, p["e_emb_w"]) + p["e_emb_b"]
    h1 = _lstm_layer_ref(e, p["e_wih1"], p["e_whh1"], p["e_bih1"], p["e_bhh1"])
    h2 = _lstm_layer_ref(h1, p["e_wih2"], p["e_whh2"], p["e_bih2"], p["e_bhh2"])
    h_last = h2[:, -1:, :]
    mu = _mm_hi(h_last, p["w_mu"]) + p["b_mu"]
    sigma = _mm_hi(h_last, p["w_sg"]) + p["b_sg"]
    z = mu + jnp.exp(0.5 * sigma) * eps[:, None, :]
    zr = _mm_hi(z, p["d_rep_w"]) + p["d_rep_b"]
    xd = jnp.concatenate([zr, x], axis=1)[:, :-1, :]
    ed = _mm_hi(xd, p["d_emb_w"]) + p["d_emb_b"]
    hd = _lstm_layer_ref(ed, p["d_wih"], p["d_whh"], p["d_bih"], p["d_bhh"])
    tu = _mm_hi(hd, p["w_tu"]) + p["b_tu"]
    tv = _mm_hi(hd, p["w_tv"]) + p["b_tv"]
    lu = _mm_hi(hd, p["w_lu"]) + p["b_lu"]
    lv = _mm_hi(hd, p["w_lv"]) + p["b_lv"]
    le = _mm_hi(hd, p["w_le"]) + p["b_le"]
    outputs = jnp.concatenate([tu, tv, lu, lv, le], axis=2)
    return mu, sigma, outputs, tu, tv, lu, lv, le


# ----------------------------------------------------------------------------
# Parameter construction (all weights stored as [in_features, out_features])
# ----------------------------------------------------------------------------
def init_params(key, dfs, emb, ehid, dhid, rep, tsz, nsz, esz):
    keys = iter(jax.random.split(key, 40))

    def rnd(shape):
        return 0.1 * jax.random.normal(next(keys), shape, jnp.float32)

    return dict(
        # encoder
        e_emb_w=rnd((dfs, emb)), e_emb_b=rnd((emb,)),
        e_wih1=rnd((emb, 4 * ehid)), e_whh1=rnd((ehid, 4 * ehid)),
        e_bih1=rnd((4 * ehid,)), e_bhh1=rnd((4 * ehid,)),
        e_wih2=rnd((ehid, 4 * ehid)), e_whh2=rnd((ehid, 4 * ehid)),
        e_bih2=rnd((4 * ehid,)), e_bhh2=rnd((4 * ehid,)),
        w_mu=rnd((ehid, rep)), b_mu=rnd((rep,)),
        w_sg=rnd((ehid, rep)), b_sg=rnd((rep,)),
        # decoder
        d_rep_w=rnd((rep, dfs)), d_rep_b=rnd((dfs,)),
        d_emb_w=rnd((dfs, emb)), d_emb_b=rnd((emb,)),
        d_wih=rnd((emb, 4 * dhid)), d_whh=rnd((dhid, 4 * dhid)),
        d_bih=rnd((4 * dhid,)), d_bhh=rnd((4 * dhid,)),
        w_tu=rnd((dhid, tsz)), b_tu=rnd((tsz,)),
        w_tv=rnd((dhid, tsz)), b_tv=rnd((tsz,)),
        w_lu=rnd((dhid, nsz)), b_lu=rnd((nsz,)),
        w_lv=rnd((dhid, nsz)), b_lv=rnd((nsz,)),
        w_le=rnd((dhid, esz)), b_le=rnd((esz,)),
    )


if __name__ == "__main__":
    B, T = 2, 8
    TIME_SIZE, NODE_SIZE, EDGE_SIZE = 4, 3, 2
    DFS = 2 * TIME_SIZE + 2 * NODE_SIZE + EDGE_SIZE      # 16
    EMB, EHID, DHID, REP = 32, 32, 32, 8

    key = jax.random.PRNGKey(0)
    kx, ke, kp = jax.random.split(key, 3)
    x = jax.random.normal(kx, (B, T, DFS), jnp.float32)
    eps = jax.random.normal(ke, (B, REP), jnp.float32)   # reparameterization noise
    params = init_params(kp, DFS, EMB, EHID, DHID, REP, TIME_SIZE, NODE_SIZE, EDGE_SIZE)

    # One-time fusion/packing outside the per-call jit (perf item 6).
    wslab, bslab, meta = pack_params(params)
    wslab, bslab = jax.block_until_ready((wslab, bslab))

    outs = vae_forward(x, eps, wslab, bslab,
                       time_size=TIME_SIZE, node_size=NODE_SIZE, edge_size=EDGE_SIZE,
                       **meta)
    outs = jax.block_until_ready(outs)
    mu, sigma, outputs, tu, tv, lu, lv, le = outs

    assert mu.shape == (B, 1, REP) and sigma.shape == (B, 1, REP)
    assert outputs.shape == (B, T, DFS)
    assert tu.shape == (B, T, TIME_SIZE) and tv.shape == (B, T, TIME_SIZE)
    assert lu.shape == (B, T, NODE_SIZE) and lv.shape == (B, T, NODE_SIZE)
    assert le.shape == (B, T, EDGE_SIZE)

    # bf16 weight slab -> slightly looser tolerance than the pure-f32 reference
    ref = vae_reference(x, eps, params)
    for got, want in zip(outs, ref):
        assert got.shape == want.shape, (got.shape, want.shape)
        assert bool(jnp.all(jnp.isfinite(got)))
        assert bool(jnp.allclose(got, want, atol=2e-2, rtol=2e-2)), \
            float(jnp.max(jnp.abs(got - want)))

    print("KERNEL_OK")
</pallas_src>

<mosaic_0001>
module attributes {stable_mosaic.version = 11 : i64} {
  func.func @_vae_kernel(%arg0: memref<16x16xf32, #tpu.memory_space<vmem>>, %arg1: memref<2x8xf32, #tpu.memory_space<vmem>>, %arg2: memref<240x128xbf16, #tpu.memory_space<vmem>>, %arg3: memref<8x128xf32, #tpu.memory_space<vmem>>, %arg4: memref<2x128xf32, #tpu.memory_space<vmem>>, %arg5: memref<16x128xf32, #tpu.memory_space<vmem>>, %arg6: memref<16x32xf32, #tpu.memory_space<vmem>>) attributes {dimension_semantics = [], scalar_prefetch = 0 : i64, scratch_operands = 1 : i64, tpu.core_type = #tpu.core_type<tc>} {
    %c0 = arith.constant 0 : index
    %c0_0 = arith.constant 0 : index
    %0 = vector.load %arg2[%c0, %c0_0] : memref<240x128xbf16, #tpu.memory_space<vmem>>, vector<16x128xbf16>
    %c16 = arith.constant 16 : index
    %c0_1 = arith.constant 0 : index
    %1 = vector.load %arg2[%c16, %c0_1] : memref<240x128xbf16, #tpu.memory_space<vmem>>, vector<32x128xbf16>
    %c48 = arith.constant 48 : index
    %c0_2 = arith.constant 0 : index
    %2 = vector.load %arg2[%c48, %c0_2] : memref<240x128xbf16, #tpu.memory_space<vmem>>, vector<64x128xbf16>
    %c112 = arith.constant 112 : index
    %c0_3 = arith.constant 0 : index
    %3 = vector.load %arg2[%c112, %c0_3] : memref<240x128xbf16, #tpu.memory_space<vmem>>, vector<32x128xbf16>
    %c144 = arith.constant 144 : index
    %c0_4 = arith.constant 0 : index
    %4 = vector.load %arg2[%c144, %c0_4] : memref<240x128xbf16, #tpu.memory_space<vmem>>, vector<16x128xbf16>
    %c160 = arith.constant 160 : index
    %c0_5 = arith.constant 0 : index
    %5 = vector.load %arg2[%c160, %c0_5] : memref<240x128xbf16, #tpu.memory_space<vmem>>, vector<16x128xbf16>
    %c176 = arith.constant 176 : index
    %c0_6 = arith.constant 0 : index
    %6 = vector.load %arg2[%c176, %c0_6] : memref<240x128xbf16, #tpu.memory_space<vmem>>, vector<32x128xbf16>
    %c208 = arith.constant 208 : index
    %c0_7 = arith.constant 0 : index
    %7 = vector.load %arg2[%c208, %c0_7] : memref<240x128xbf16, #tpu.memory_space<vmem>>, vector<32x128xbf16>
    %c0_8 = arith.constant 0 : index
    %c0_9 = arith.constant 0 : index
    %8 = vector.load %arg3[%c0_8, %c0_9] : memref<8x128xf32, #tpu.memory_space<vmem>>, vector<1x128xf32>
    %c1 = arith.constant 1 : index
    %c0_10 = arith.constant 0 : index
    %9 = vector.load %arg3[%c1, %c0_10] : memref<8x128xf32, #tpu.memory_space<vmem>>, vector<1x128xf32>
    %c2 = arith.constant 2 : index
    %c0_11 = arith.constant 0 : index
    %10 = vector.load %arg3[%c2, %c0_11] : memref<8x128xf32, #tpu.memory_space<vmem>>, vector<1x128xf32>
    %c3 = arith.constant 3 : index
    %c0_12 = arith.constant 0 : index
    %11 = vector.load %arg3[%c3, %c0_12] : memref<8x128xf32, #tpu.memory_space<vmem>>, vector<1x128xf32>
    %c4 = arith.constant 4 : index
    %c0_13 = arith.constant 0 : index
    %12 = vector.load %arg3[%c4, %c0_13] : memref<8x128xf32, #tpu.memory_space<vmem>>, vector<1x128xf32>
    %c5 = arith.constant 5 : index
    %c0_14 = arith.constant 0 : index
    %13 = vector.load %arg3[%c5, %c0_14] : memref<8x128xf32, #tpu.memory_space<vmem>>, vector<1x128xf32>
    %c0_15 = arith.constant 0 : index
    %c0_16 = arith.constant 0 : index
    %14 = vector.load %arg0[%c0_15, %c0_16] : memref<16x16xf32, #tpu.memory_space<vmem>>, vector<16x16xf32>
    %15 = arith.truncf %14 : vector<16x16xf32> to vector<16x16xbf16>
    %cst = arith.constant dense<0.000000e+00> : vector<16x128xf32>
    %16 = tpu.matmul %15, %0, %cst {dimension_numbers = #tpu.dot_dimension_numbers<[1], [0], [0], [1], [0, 0, 1, 1], [], []>} : vector<16x16xbf16>, vector<16x128xbf16>, vector<16x128xf32> -> vector<16x128xf32>
    %17 = vector.broadcast %8 : vector<1x128xf32> to vector<16x128xf32>
    %18 = arith.addf %16, %17 : vector<16x128xf32>
    %19 = tpu.iota {dimensions = array<i32: 1>} : vector<1x128xi32>
    %c64_i32 = arith.constant 64 : i32
    %20 = vector.broadcast %c64_i32 : i32 to vector<1x128xi32>
    %21 = arith.cmpi sge, %19, %20 : vector<1x128xi32>
    %c96_i32 = arith.constant 96 : i32
    %22 = vector.broadcast %c96_i32 : i32 to vector<1x128xi32>
    %23 = arith.cmpi slt, %19, %22 : vector<1x128xi32>
    %24 = arith.andi %21, %23 : vector<1x128xi1>
    %cst_17 = arith.constant 1.000000e+00 : f32
    %cst_18 = arith.constant 5.000000e-01 : f32
    %25 = vector.broadcast %cst_17 : f32 to vector<1x128xf32>
    %26 = vector.broadcast %cst_18 : f32 to vector<1x128xf32>
    %27 = arith.select %24, %25, %26 : vector<1x128xi1>, vector<1x128xf32>
    %cst_19 = arith.constant 0.000000e+00 : f32
    %cst_20 = arith.constant 5.000000e-01 : f32
    %28 = vector.broadcast %cst_19 : f32 to vector<1x128xf32>
    %29 = vector.broadcast %cst_20 : f32 to vector<1x128xf32>
    %30 = arith.select %24, %28, %29 : vector<1x128xi1>, vector<1x128xf32>
    %cst_21 = arith.constant 0.000000e+00 : f32
    %31 = vector.broadcast %cst_21 : f32 to vector<2x32xf32>
    %cst_22 = arith.constant 0.000000e+00 : f32
    %32 = vector.broadcast %cst_22 : f32 to vector<2x32xf32>
    %cst_23 = arith.constant 0.000000e+00 : f32
    %33 = vector.broadcast %cst_23 : f32 to vector<2x32xf32>
    %cst_24 = arith.constant 0.000000e+00 : f32
    %34 = vector.broadcast %cst_24 : f32 to vector<2x32xf32>
    %35 = vector.extract_strided_slice %18 {offsets = [0, 0], sizes = [2, 128], strides = [1, 1]} : vector<16x128xf32> to vector<2x128xf32>
    %36 = arith.truncf %31 : vector<2x32xf32> to vector<2x32xbf16>
    %cst_25 = arith.constant dense<0.000000e+00> : vector<2x128xf32>
    %37 = tpu.matmul %36, %1, %cst_25 {dimension_numbers = #tpu.dot_dimension_numbers<[1], [0], [0], [1], [0, 0, 1, 1], [], []>} : vector<2x32xbf16>, vector<32x128xbf16>, vector<2x128xf32> -> vector<2x128xf32>
    %38 = arith.addf %35, %37 : vector<2x128xf32>
    %39 = math.tanh %38 : vector<2x128xf32>
    %40 = vector.broadcast %27 : vector<1x128xf32> to vector<2x128xf32>
    %41 = arith.mulf %39, %40 : vector<2x128xf32>
    %42 = vector.broadcast %30 : vector<1x128xf32> to vector<2x128xf32>
    %43 = arith.addf %41, %42 : vector<2x128xf32>
    %44 = vector.extract_strided_slice %43 {offsets = [0, 0], sizes = [2, 32], strides = [1, 1]} : vector<2x128xf32> to vector<2x32xf32>
    %45 = vector.extract_strided_slice %43 {offsets = [0, 32], sizes = [2, 32], strides = [1, 1]} : vector<2x128xf32> to vector<2x32xf32>
    %46 = vector.extract_strided_slice %43 {offsets = [0, 64], sizes = [2, 32], strides = [1, 1]} : vector<2x128xf32> to vector<2x32xf32>
    %47 = vector.extract_strided_slice %43 {offsets = [0, 96], sizes = [2, 32], strides = [1, 1]} : vector<2x128xf32> to vector<2x32xf32>
    %48 = arith.mulf %45, %32 : vector<2x32xf32>
    %49 = arith.mulf %44, %46 : vector<2x32xf32>
    %50 = arith.addf %48, %49 : vector<2x32xf32>
    %51 = math.tanh %50 : vector<2x32xf32>
    %52 = arith.mulf %47, %51 : vector<2x32xf32>
    %53 = tpu.concatenate %52, %33 in 1 : vector<2x32xf32>, vector<2x32xf32> -> vector<2x64xf32>
    %54 = arith.truncf %53 : vector<2x64xf32> to vector<2x64xbf16>
    %cst_26 = arith.constant dense<0.000000e+00> : vector<2x128xf32>
    %55 = tpu.matmul %54, %2, %cst_26 {dimension_numbers = #tpu.dot_dimension_numbers<[1], [0], [0], [1], [0, 0, 1, 1], [], []>} : vector<2x64xbf16>, vector<64x128xbf16>, vector<2x128xf32> -> vector<2x128xf32>
    %56 = vector.broadcast %9 : vector<1x128xf32> to vector<2x128xf32>
    %57 = arith.addf %55, %56 : vector<2x128xf32>
    %58 = math.tanh %57 : vector<2x128xf32>
    %59 = vector.broadcast %27 : vector<1x128xf32> to vector<2x128xf32>
    %60 = arith.mulf %58, %59 : vector<2x128xf32>
    %61 = vector.broadcast %30 : vector<1x128xf32> to vector<2x128xf32>
    %62 = arith.addf %60, %61 : vector<2x128xf32>
    %63 = vector.extract_strided_slice %62 {offsets = [0, 0], sizes = [2, 32], strides = [1, 1]} : vector<2x128xf32> to vector<2x32xf32>
    %64 = vector.extract_strided_slice %62 {offsets = [0, 32], sizes = [2, 32], strides = [1, 1]} : vector<2x128xf32> to vector<2x32xf32>
    %65 = vector.extract_strided_slice %62 {offsets = [0, 64], sizes = [2, 32], strides = [1, 1]} : vector<2x128xf32> to vector<2x32xf32>
    %66 = vector.extract_strided_slice %62 {offsets = [0, 96], sizes = [2, 32], strides = [1, 1]} : vector<2x128xf32> to vector<2x32xf32>
    %67 = arith.mulf %64, %34 : vector<2x32xf32>
    %68 = arith.mulf %63, %65 : vector<2x32xf32>
    %69 = arith.addf %67, %68 : vector<2x32xf32>
    %70 = math.tanh %69 : vector<2x32xf32>
    %71 = arith.mulf %66, %70 : vector<2x32xf32>
    %72 = vector.extract_strided_slice %18 {offsets = [2, 0], sizes = [2, 128], strides = [1, 1]} : vector<16x128xf32> to vector<2x128xf32>
    %73 = arith.truncf %52 : vector<2x32xf32> to vector<2x32xbf16>
    %cst_27 = arith.constant dense<0.000000e+00> : vector<2x128xf32>
    %74 = tpu.matmul %73, %1, %cst_27 {dimension_numbers = #tpu.dot_dimension_numbers<[1], [0], [0], [1], [0, 0, 1, 1], [], []>} : vector<2x32xbf16>, vector<32x128xbf16>, vector<2x128xf32> -> vector<2x128xf32>
    %75 = arith.addf %72, %74 : vector<2x128xf32>
    %76 = math.tanh %75 : vector<2x128xf32>
    %77 = vector.broadcast %27 : vector<1x128xf32> to vector<2x128xf32>
    %78 = arith.mulf %76, %77 : vector<2x128xf32>
    %79 = vector.broadcast %30 : vector<1x128xf32> to vector<2x128xf32>
    %80 = arith.addf %78, %79 : vector<2x128xf32>
    %81 = vector.extract_strided_slice %80 {offsets = [0, 0], sizes = [2, 32], strides = [1, 1]} : vector<2x128xf32> to vector<2x32xf32>
    %82 = vector.extract_strided_slice %80 {offsets = [0, 32], sizes = [2, 32], strides = [1, 1]} : vector<2x128xf32> to vector<2x32xf32>
    %83 = vector.extract_strided_slice %80 {offsets = [0, 64], sizes = [2, 32], strides = [1, 1]} : vector<2x128xf32> to vector<2x32xf32>
    %84 = vector.extract_strided_slice %80 {offsets = [0, 96], sizes = [2, 32], strides = [1, 1]} : vector<2x128xf32> to vector<2x32xf32>
    %85 = arith.mulf %82, %50 : vector<2x32xf32>
    %86 = arith.mulf %81, %83 : vector<2x32xf32>
    %87 = arith.addf %85, %86 : vector<2x32xf32>
    %88 = math.tanh %87 : vector<2x32xf32>
    %89 = arith.mulf %84, %88 : vector<2x32xf32>
    %90 = tpu.concatenate %89, %71 in 1 : vector<2x32xf32>, vector<2x32xf32> -> vector<2x64xf32>
    %91 = arith.truncf %90 : vector<2x64xf32> to vector<2x64xbf16>
    %cst_28 = arith.constant dense<0.000000e+00> : vector<2x128xf32>
    %92 = tpu.matmul %91, %2, %cst_28 {dimension_numbers = #tpu.dot_dimension_numbers<[1], [0], [0], [1], [0, 0, 1, 1], [], []>} : vector<2x64xbf16>, vector<64x128xbf16>, vector<2x128xf32> -> vector<2x128xf32>
    %93 = vector.broadcast %9 : vector<1x128xf32> to vector<2x128xf32>
    %94 = arith.addf %92, %93 : vector<2x128xf32>
    %95 = math.tanh %94 : vector<2x128xf32>
    %96 = vector.broadcast %27 : vector<1x128xf32> to vector<2x128xf32>
    %97 = arith.mulf %95, %96 : vector<2x128xf32>
    %98 = vector.broadcast %30 : vector<1x128xf32> to vector<2x128xf32>
    %99 = arith.addf %97, %98 : vector<2x128xf32>
    %100 = vector.extract_strided_slice %99 {offsets = [0, 0], sizes = [2, 32], strides = [1, 1]} : vector<2x128xf32> to vector<2x32xf32>
    %101 = vector.extract_strided_slice %99 {offsets = [0, 32], sizes = [2, 32], strides = [1, 1]} : vector<2x128xf32> to vector<2x32xf32>
    %102 = vector.extract_strided_slice %99 {offsets = [0, 64], sizes = [2, 32], strides = [1, 1]} : vector<2x128xf32> to vector<2x32xf32>
    %103 = vector.extract_strided_slice %99 {offsets = [0, 96], sizes = [2, 32], strides = [1, 1]} : vector<2x128xf32> to vector<2x32xf32>
    %104 = arith.mulf %101, %69 : vector<2x32xf32>
    %105 = arith.mulf %100, %102 : vector<2x32xf32>
    %106 = arith.addf %104, %105 : vector<2x32xf32>
    %107 = math.tanh %106 : vector<2x32xf32>
    %108 = arith.mulf %103, %107 : vector<2x32xf32>
    %109 = vector.extract_strided_slice %18 {offsets = [4, 0], sizes = [2, 128], strides = [1, 1]} : vector<16x128xf32> to vector<2x128xf32>
    %110 = arith.truncf %89 : vector<2x32xf32> to vector<2x32xbf16>
    %cst_29 = arith.constant dense<0.000000e+00> : vector<2x128xf32>
    %111 = tpu.matmul %110, %1, %cst_29 {dimension_numbers = #tpu.dot_dimension_numbers<[1], [0], [0], [1], [0, 0, 1, 1], [], []>} : vector<2x32xbf16>, vector<32x128xbf16>, vector<2x128xf32> -> vector<2x128xf32>
    %112 = arith.addf %109, %111 : vector<2x128xf32>
    %113 = math.tanh %112 : vector<2x128xf32>
    %114 = vector.broadcast %27 : vector<1x128xf32> to vector<2x128xf32>
    %115 = arith.mulf %113, %114 : vector<2x128xf32>
    %116 = vector.broadcast %30 : vector<1x128xf32> to vector<2x128xf32>
    %117 = arith.addf %115, %116 : vector<2x128xf32>
    %118 = vector.extract_strided_slice %117 {offsets = [0, 0], sizes = [2, 32], strides = [1, 1]} : vector<2x128xf32> to vector<2x32xf32>
    %119 = vector.extract_strided_slice %117 {offsets = [0, 32], sizes = [2, 32], strides = [1, 1]} : vector<2x128xf32> to vector<2x32xf32>
    %120 = vector.extract_strided_slice %117 {offsets = [0, 64], sizes = [2, 32], strides = [1, 1]} : vector<2x128xf32> to vector<2x32xf32>
    %121 = vector.extract_strided_slice %117 {offsets = [0, 96], sizes = [2, 32], strides = [1, 1]} : vector<2x128xf32> to vector<2x32xf32>
    %122 = arith.mulf %119, %87 : vector<2x32xf32>
    %123 = arith.mulf %118, %120 : vector<2x32xf32>
    %124 = arith.addf %122, %123 : vector<2x32xf32>
    %125 = math.tanh %124 : vector<2x32xf32>
    %126 = arith.mulf %121, %125 : vector<2x32xf32>
    %127 = tpu.concatenate %126, %108 in 1 : vector<2x32xf32>, vector<2x32xf32> -> vector<2x64xf32>
    %128 = arith.truncf %127 : vector<2x64xf32> to vector<2x64xbf16>
    %cst_30 = arith.constant dense<0.000000e+00> : vector<2x128xf32>
    %129 = tpu.matmul %128, %2, %cst_30 {dimension_numbers = #tpu.dot_dimension_numbers<[1], [0], [0], [1], [0, 0, 1, 1], [], []>} : vector<2x64xbf16>, vector<64x128xbf16>, vector<2x128xf32> -> vector<2x128xf32>
    %130 = vector.broadcast %9 : vector<1x128xf32> to vector<2x128xf32>
    %131 = arith.addf %129, %130 : vector<2x128xf32>
    %132 = math.tanh %131 : vector<2x128xf32>
    %133 = vector.broadcast %27 : vector<1x128xf32> to vector<2x128xf32>
    %134 = arith.mulf %132, %133 : vector<2x128xf32>
    %135 = vector.broadcast %30 : vector<1x128xf32> to vector<2x128xf32>
    %136 = arith.addf %134, %135 : vector<2x128xf32>
    %137 = vector.extract_strided_slice %136 {offsets = [0, 0], sizes = [2, 32], strides = [1, 1]} : vector<2x128xf32> to vector<2x32xf32>
    %138 = vector.extract_strided_slice %136 {offsets = [0, 32], sizes = [2, 32], strides = [1, 1]} : vector<2x128xf32> to vector<2x32xf32>
    %139 = vector.extract_strided_slice %136 {offsets = [0, 64], sizes = [2, 32], strides = [1, 1]} : vector<2x128xf32> to vector<2x32xf32>
    %140 = vector.extract_strided_slice %136 {offsets = [0, 96], sizes = [2, 32], strides = [1, 1]} : vector<2x128xf32> to vector<2x32xf32>
    %141 = arith.mulf %138, %106 : vector<2x32xf32>
    %142 = arith.mulf %137, %139 : vector<2x32xf32>
    %143 = arith.addf %141, %142 : vector<2x32xf32>
    %144 = math.tanh %143 : vector<2x32xf32>
    %145 = arith.mulf %140, %144 : vector<2x32xf32>
    %146 = vector.extract_strided_slice %18 {offsets = [6, 0], sizes = [2, 128], strides = [1, 1]} : vector<16x128xf32> to vector<2x128xf32>
    %147 = arith.truncf %126 : vector<2x32xf32> to vector<2x32xbf16>
    %cst_31 = arith.constant dense<0.000000e+00> : vector<2x128xf32>
    %148 = tpu.matmul %147, %1, %cst_31 {dimension_numbers = #tpu.dot_dimension_numbers<[1], [0], [0], [1], [0, 0, 1, 1], [], []>} : vector<2x32xbf16>, vector<32x128xbf16>, vector<2x128xf32> -> vector<2x128xf32>
    %149 = arith.addf %146, %148 : vector<2x128xf32>
    %150 = math.tanh %149 : vector<2x128xf32>
    %151 = vector.broadcast %27 : vector<1x128xf32> to vector<2x128xf32>
    %152 = arith.mulf %150, %151 : vector<2x128xf32>
    %153 = vector.broadcast %30 : vector<1x128xf32> to vector<2x128xf32>
    %154 = arith.addf %152, %153 : vector<2x128xf32>
    %155 = vector.extract_strided_slice %154 {offsets = [0, 0], sizes = [2, 32], strides = [1, 1]} : vector<2x128xf32> to vector<2x32xf32>
    %156 = vector.extract_strided_slice %154 {offsets = [0, 32], sizes = [2, 32], strides = [1, 1]} : vector<2x128xf32> to vector<2x32xf32>
    %157 = vector.extract_strided_slice %154 {offsets = [0, 64], sizes = [2, 32], strides = [1, 1]} : vector<2x128xf32> to vector<2x32xf32>
    %158 = vector.extract_strided_slice %154 {offsets = [0, 96], sizes = [2, 32], strides = [1, 1]} : vector<2x128xf32> to vector<2x32xf32>
    %159 = arith.mulf %156, %124 : vector<2x32xf32>
    %160 = arith.mulf %155, %157 : vector<2x32xf32>
    %161 = arith.addf %159, %160 : vector<2x32xf32>
    %162 = math.tanh %161 : vector<2x32xf32>
    %163 = arith.mulf %158, %162 : vector<2x32xf32>
    %164 = tpu.concatenate %163, %145 in 1 : vector<2x32xf32>, vector<2x32xf32> -> vector<2x64xf32>
    %165 = arith.truncf %164 : vector<2x64xf32> to vector<2x64xbf16>
    %cst_32 = arith.constant dense<0.000000e+00> : vector<2x128xf32>
    %166 = tpu.matmul %165, %2, %cst_32 {dimension_numbers = #tpu.dot_dimension_numbers<[1], [0], [0], [1], [0, 0, 1, 1], [], []>} : vector<2x64xbf16>, vector<64x128xbf16>, vector<2x128xf32> -> vector<2x128xf32>
    %167 = vector.broadcast %9 : vector<1x128xf32> to vector<2x128xf32>
    %168 = arith.addf %166, %167 : vector<2x128xf32>
    %169 = math.tanh %168 : vector<2x128xf32>
    %170 = vector.broadcast %27 : vector<1x128xf32> to vector<2x128xf32>
    %171 = arith.mulf %169, %170 : vector<2x128xf32>
    %172 = vector.broadcast %30 : vector<1x128xf32> to vector<2x128xf32>
    %173 = arith.addf %171, %172 : vector<2x128xf32>
    %174 = vector.extract_strided_slice %173 {offsets = [0, 0], sizes = [2, 32], strides = [1, 1]} : vector<2x128xf32> to vector<2x32xf32>
    %175 = vector.extract_strided_slice %173 {offsets = [0, 32], sizes = [2, 32], strides = [1, 1]} : vector<2x128xf32> to vector<2x32xf32>
    %176 = vector.extract_strided_slice %173 {offsets = [0, 64], sizes = [2, 32], strides = [1, 1]} : vector<2x128xf32> to vector<2x32xf32>
    %177 = vector.extract_strided_slice %173 {offsets = [0, 96], sizes = [2, 32], strides = [1, 1]} : vector<2x128xf32> to vector<2x32xf32>
    %178 = arith.mulf %175, %143 : vector<2x32xf32>
    %179 = arith.mulf %174, %176 : vector<2x32xf32>
    %180 = arith.addf %178, %179 : vector<2x32xf32>
    %181 = math.tanh %180 : vector<2x32xf32>
    %182 = arith.mulf %177, %181 : vector<2x32xf32>
    %183 = vector.extract_strided_slice %18 {offsets = [8, 0], sizes = [2, 128], strides = [1, 1]} : vector<16x128xf32> to vector<2x128xf32>
    %184 = arith.truncf %163 : vector<2x32xf32> to vector<2x32xbf16>
    %cst_33 = arith.constant dense<0.000000e+00> : vector<2x128xf32>
    %185 = tpu.matmul %184, %1, %cst_33 {dimension_numbers = #tpu.dot_dimension_numbers<[1], [0], [0], [1], [0, 0, 1, 1], [], []>} : vector<2x32xbf16>, vector<32x128xbf16>, vector<2x128xf32> -> vector<2x128xf32>
    %186 = arith.addf %183, %185 : vector<2x128xf32>
    %187 = math.tanh %186 : vector<2x128xf32>
    %188 = vector.broadcast %27 : vector<1x128xf32> to vector<2x128xf32>
    %189 = arith.mulf %187, %188 : vector<2x128xf32>
    %190 = vector.broadcast %30 : vector<1x128xf32> to vector<2x128xf32>
    %191 = arith.addf %189, %190 : vector<2x128xf32>
    %192 = vector.extract_strided_slice %191 {offsets = [0, 0], sizes = [2, 32], strides = [1, 1]} : vector<2x128xf32> to vector<2x32xf32>
    %193 = vector.extract_strided_slice %191 {offsets = [0, 32], sizes = [2, 32], strides = [1, 1]} : vector<2x128xf32> to vector<2x32xf32>
    %194 = vector.extract_strided_slice %191 {offsets = [0, 64], sizes = [2, 32], strides = [1, 1]} : vector<2x128xf32> to vector<2x32xf32>
    %195 = vector.extract_strided_slice %191 {offsets = [0, 96], sizes = [2, 32], strides = [1, 1]} : vector<2x128xf32> to vector<2x32xf32>
    %196 = arith.mulf %193, %161 : vector<2x32xf32>
    %197 = arith.mulf %192, %194 : vector<2x32xf32>
    %198 = arith.addf %196, %197 : vector<2x32xf32>
    %199 = math.tanh %198 : vector<2x32xf32>
    %200 = arith.mulf %195, %199 : vector<2x32xf32>
    %201 = tpu.concatenate %200, %182 in 1 : vector<2x32xf32>, vector<2x32xf32> -> vector<2x64xf32>
    %202 = arith.truncf %201 : vector<2x64xf32> to vector<2x64xbf16>
    %cst_34 = arith.constant dense<0.000000e+00> : vector<2x128xf32>
    %203 = tpu.matmul %202, %2, %cst_34 {dimension_numbers = #tpu.dot_dimension_numbers<[1], [0], [0], [1], [0, 0, 1, 1], [], []>} : vector<2x64xbf16>, vector<64x128xbf16>, vector<2x128xf32> -> vector<2x128xf32>
    %204 = vector.broadcast %9 : vector<1x128xf32> to vector<2x128xf32>
    %205 = arith.addf %203, %204 : vector<2x128xf32>
    %206 = math.tanh %205 : vector<2x128xf32>
    %207 = vector.broadcast %27 : vector<1x128xf32> to vector<2x128xf32>
    %208 = arith.mulf %206, %207 : vector<2x128xf32>
    %209 = vector.broadcast %30 : vector<1x128xf32> to vector<2x128xf32>
    %210 = arith.addf %208, %209 : vector<2x128xf32>
    %211 = vector.extract_strided_slice %210 {offsets = [0, 0], sizes = [2, 32], strides = [1, 1]} : vector<2x128xf32> to vector<2x32xf32>
    %212 = vector.extract_strided_slice %210 {offsets = [0, 32], sizes = [2, 32], strides = [1, 1]} : vector<2x128xf32> to vector<2x32xf32>
    %213 = vector.extract_strided_slice %210 {offsets = [0, 64], sizes = [2, 32], strides = [1, 1]} : vector<2x128xf32> to vector<2x32xf32>
    %214 = vector.extract_strided_slice %210 {offsets = [0, 96], sizes = [2, 32], strides = [1, 1]} : vector<2x128xf32> to vector<2x32xf32>
    %215 = arith.mulf %212, %180 : vector<2x32xf32>
    %216 = arith.mulf %211, %213 : vector<2x32xf32>
    %217 = arith.addf %215, %216 : vector<2x32xf32>
    %218 = math.tanh %217 : vector<2x32xf32>
    %219 = arith.mulf %214, %218 : vector<2x32xf32>
    %220 = vector.extract_strided_slice %18 {offsets = [10, 0], sizes = [2, 128], strides = [1, 1]} : vector<16x128xf32> to vector<2x128xf32>
    %221 = arith.truncf %200 : vector<2x32xf32> to vector<2x32xbf16>
    %cst_35 = arith.constant dense<0.000000e+00> : vector<2x128xf32>
    %222 = tpu.matmul %221, %1, %cst_35 {dimension_numbers = #tpu.dot_dimension_numbers<[1], [0], [0], [1], [0, 0, 1, 1], [], []>} : vector<2x32xbf16>, vector<32x128xbf16>, vector<2x128xf32> -> vector<2x128xf32>
    %223 = arith.addf %220, %222 : vector<2x128xf32>
    %224 = math.tanh %223 : vector<2x128xf32>
    %225 = vector.broadcast %27 : vector<1x128xf32> to vector<2x128xf32>
    %226 = arith.mulf %224, %225 : vector<2x128xf32>
    %227 = vector.broadcast %30 : vector<1x128xf32> to vector<2x128xf32>
    %228 = arith.addf %226, %227 : vector<2x128xf32>
    %229 = vector.extract_strided_slice %228 {offsets = [0, 0], sizes = [2, 32], strides = [1, 1]} : vector<2x128xf32> to vector<2x32xf32>
    %230 = vector.extract_strided_slice %228 {offsets = [0, 32], sizes = [2, 32], strides = [1, 1]} : vector<2x128xf32> to vector<2x32xf32>
    %231 = vector.extract_strided_slice %228 {offsets = [0, 64], sizes = [2, 32], strides = [1, 1]} : vector<2x128xf32> to vector<2x32xf32>
    %232 = vector.extract_strided_slice %228 {offsets = [0, 96], sizes = [2, 32], strides = [1, 1]} : vector<2x128xf32> to vector<2x32xf32>
    %233 = arith.mulf %230, %198 : vector<2x32xf32>
    %234 = arith.mulf %229, %231 : vector<2x32xf32>
    %235 = arith.addf %233, %234 : vector<2x32xf32>
    %236 = math.tanh %235 : vector<2x32xf32>
    %237 = arith.mulf %232, %236 : vector<2x32xf32>
    %238 = tpu.concatenate %237, %219 in 1 : vector<2x32xf32>, vector<2x32xf32> -> vector<2x64xf32>
    %239 = arith.truncf %238 : vector<2x64xf32> to vector<2x64xbf16>
    %cst_36 = arith.constant dense<0.000000e+00> : vector<2x128xf32>
    %240 = tpu.matmul %239, %2, %cst_36 {dimension_numbers = #tpu.dot_dimension_numbers<[1], [0], [0], [1], [0, 0, 1, 1], [], []>} : vector<2x64xbf16>, vector<64x128xbf16>, vector<2x128xf32> -> vector<2x128xf32>
    %241 = vector.broadcast %9 : vector<1x128xf32> to vector<2x128xf32>
    %242 = arith.addf %240, %241 : vector<2x128xf32>
    %243 = math.tanh %242 : vector<2x128xf32>
    %244 = vector.broadcast %27 : vector<1x128xf32> to vector<2x128xf32>
    %245 = arith.mulf %243, %244 : vector<2x128xf32>
    %246 = vector.broadcast %30 : vector<1x128xf32> to vector<2x128xf32>
    %247 = arith.addf %245, %246 : vector<2x128xf32>
    %248 = vector.extract_strided_slice %247 {offsets = [0, 0], sizes = [2, 32], strides = [1, 1]} : vector<2x128xf32> to vector<2x32xf32>
    %249 = vector.extract_strided_slice %247 {offsets = [0, 32], sizes = [2, 32], strides = [1, 1]} : vector<2x128xf32> to vector<2x32xf32>
    %250 = vector.extract_strided_slice %247 {offsets = [0, 64], sizes = [2, 32], strides = [1, 1]} : vector<2x128xf32> to vector<2x32xf32>
    %251 = vector.extract_strided_slice %247 {offsets = [0, 96], sizes = [2, 32], strides = [1, 1]} : vector<2x128xf32> to vector<2x32xf32>
    %252 = arith.mulf %249, %217 : vector<2x32xf32>
    %253 = arith.mulf %248, %250 : vector<2x32xf32>
    %254 = arith.addf %252, %253 : vector<2x32xf32>
    %255 = math.tanh %254 : vector<2x32xf32>
    %256 = arith.mulf %251, %255 : vector<2x32xf32>
    %257 = vector.extract_strided_slice %18 {offsets = [12, 0], sizes = [2, 128], strides = [1, 1]} : vector<16x128xf32> to vector<2x128xf32>
    %258 = arith.truncf %237 : vector<2x32xf32> to vector<2x32xbf16>
    %cst_37 = arith.constant dense<0.000000e+00> : vector<2x128xf32>
    %259 = tpu.matmul %258, %1, %cst_37 {dimension_numbers = #tpu.dot_dimension_numbers<[1], [0], [0], [1], [0, 0, 1, 1], [], []>} : vector<2x32xbf16>, vector<32x128xbf16>, vector<2x128xf32> -> vector<2x128xf32>
    %260 = arith.addf %257, %259 : vector<2x128xf32>
    %261 = math.tanh %260 : vector<2x128xf32>
    %262 = vector.broadcast %27 : vector<1x128xf32> to vector<2x128xf32>
    %263 = arith.mulf %261, %262 : vector<2x128xf32>
    %264 = vector.broadcast %30 : vector<1x128xf32> to vector<2x128xf32>
    %265 = arith.addf %263, %264 : vector<2x128xf32>
    %266 = vector.extract_strided_slice %265 {offsets = [0, 0], sizes = [2, 32], strides = [1, 1]} : vector<2x128xf32> to vector<2x32xf32>
    %267 = vector.extract_strided_slice %265 {offsets = [0, 32], sizes = [2, 32], strides = [1, 1]} : vector<2x128xf32> to vector<2x32xf32>
    %268 = vector.extract_strided_slice %265 {offsets = [0, 64], sizes = [2, 32], strides = [1, 1]} : vector<2x128xf32> to vector<2x32xf32>
    %269 = vector.extract_strided_slice %265 {offsets = [0, 96], sizes = [2, 32], strides = [1, 1]} : vector<2x128xf32> to vector<2x32xf32>
    %270 = arith.mulf %267, %235 : vector<2x32xf32>
    %271 = arith.mulf %266, %268 : vector<2x32xf32>
    %272 = arith.addf %270, %271 : vector<2x32xf32>
    %273 = math.tanh %272 : vector<2x32xf32>
    %274 = arith.mulf %269, %273 : vector<2x32xf32>
    %275 = tpu.concatenate %274, %256 in 1 : vector<2x32xf32>, vector<2x32xf32> -> vector<2x64xf32>
    %276 = arith.truncf %275 : vector<2x64xf32> to vector<2x64xbf16>
    %cst_38 = arith.constant dense<0.000000e+00> : vector<2x128xf32>
    %277 = tpu.matmul %276, %2, %cst_38 {dimension_numbers = #tpu.dot_dimension_numbers<[1], [0], [0], [1], [0, 0, 1, 1], [], []>} : vector<2x64xbf16>, vector<64x128xbf16>, vector<2x128xf32> -> vector<2x128xf32>
    %278 = vector.broadcast %9 : vector<1x128xf32> to vector<2x128xf32>
    %279 = arith.addf %277, %278 : vector<2x128xf32>
    %280 = math.tanh %279 : vector<2x128xf32>
    %281 = vector.broadcast %27 : vector<1x128xf32> to vector<2x128xf32>
    %282 = arith.mulf %280, %281 : vector<2x128xf32>
    %283 = vector.broadcast %30 : vector<1x128xf32> to vector<2x128xf32>
    %284 = arith.addf %282, %283 : vector<2x128xf32>
    %285 = vector.extract_strided_slice %284 {offsets = [0, 0], sizes = [2, 32], strides = [1, 1]} : vector<2x128xf32> to vector<2x32xf32>
    %286 = vector.extract_strided_slice %284 {offsets = [0, 32], sizes = [2, 32], strides = [1, 1]} : vector<2x128xf32> to vector<2x32xf32>
    %287 = vector.extract_strided_slice %284 {offsets = [0, 64], sizes = [2, 32], strides = [1, 1]} : vector<2x128xf32> to vector<2x32xf32>
    %288 = vector.extract_strided_slice %284 {offsets = [0, 96], sizes = [2, 32], strides = [1, 1]} : vector<2x128xf32> to vector<2x32xf32>
    %289 = arith.mulf %286, %254 : vector<2x32xf32>
    %290 = arith.mulf %285, %287 : vector<2x32xf32>
    %291 = arith.addf %289, %290 : vector<2x32xf32>
    %292 = math.tanh %291 : vector<2x32xf32>
    %293 = arith.mulf %288, %292 : vector<2x32xf32>
    %294 = vector.extract_strided_slice %18 {offsets = [14, 0], sizes = [2, 128], strides = [1, 1]} : vector<16x128xf32> to vector<2x128xf32>
    %295 = arith.truncf %274 : vector<2x32xf32> to vector<2x32xbf16>
    %cst_39 = arith.constant dense<0.000000e+00> : vector<2x128xf32>
    %296 = tpu.matmul %295, %1, %cst_39 {dimension_numbers = #tpu.dot_dimension_numbers<[1], [0], [0], [1], [0, 0, 1, 1], [], []>} : vector<2x32xbf16>, vector<32x128xbf16>, vector<2x128xf32> -> vector<2x128xf32>
    %297 = arith.addf %294, %296 : vector<2x128xf32>
    %298 = math.tanh %297 : vector<2x128xf32>
    %299 = vector.broadcast %27 : vector<1x128xf32> to vector<2x128xf32>
    %300 = arith.mulf %298, %299 : vector<2x128xf32>
    %301 = vector.broadcast %30 : vector<1x128xf32> to vector<2x128xf32>
    %302 = arith.addf %300, %301 : vector<2x128xf32>
    %303 = vector.extract_strided_slice %302 {offsets = [0, 0], sizes = [2, 32], strides = [1, 1]} : vector<2x128xf32> to vector<2x32xf32>
    %304 = vector.extract_strided_slice %302 {offsets = [0, 32], sizes = [2, 32], strides = [1, 1]} : vector<2x128xf32> to vector<2x32xf32>
    %305 = vector.extract_strided_slice %302 {offsets = [0, 64], sizes = [2, 32], strides = [1, 1]} : vector<2x128xf32> to vector<2x32xf32>
    %306 = vector.extract_strided_slice %302 {offsets = [0, 96], sizes = [2, 32], strides = [1, 1]} : vector<2x128xf32> to vector<2x32xf32>
    %307 = arith.mulf %304, %272 : vector<2x32xf32>
    %308 = arith.mulf %303, %305 : vector<2x32xf32>
    %309 = arith.addf %307, %308 : vector<2x32xf32>
    %310 = math.tanh %309 : vector<2x32xf32>
    %311 = arith.mulf %306, %310 : vector<2x32xf32>
    %312 = tpu.concatenate %311, %293 in 1 : vector<2x32xf32>, vector<2x32xf32> -> vector<2x64xf32>
    %313 = arith.truncf %312 : vector<2x64xf32> to vector<2x64xbf16>
    %cst_40 = arith.constant dense<0.000000e+00> : vector<2x128xf32>
    %314 = tpu.matmul %313, %2, %cst_40 {dimension_numbers = #tpu.dot_dimension_numbers<[1], [0], [0], [1], [0, 0, 1, 1], [], []>} : vector<2x64xbf16>, vector<64x128xbf16>, vector<2x128xf32> -> vector<2x128xf32>
    %315 = vector.broadcast %9 : vector<1x128xf32> to vector<2x128xf32>
    %316 = arith.addf %314, %315 : vector<2x128xf32>
    %317 = math.tanh %316 : vector<2x128xf32>
    %318 = vector.broadcast %27 : vector<1x128xf32> to vector<2x128xf32>
    %319 = arith.mulf %317, %318 : vector<2x128xf32>
    %320 = vector.broadcast %30 : vector<1x128xf32> to vector<2x128xf32>
    %321 = arith.addf %319, %320 : vector<2x128xf32>
    %322 = vector.extract_strided_slice %321 {offsets = [0, 0], sizes = [2, 32], strides = [1, 1]} : vector<2x128xf32> to vector<2x32xf32>
    %323 = vector.extract_strided_slice %321 {offsets = [0, 32], sizes = [2, 32], strides = [1, 1]} : vector<2x128xf32> to vector<2x32xf32>
    %324 = vector.extract_strided_slice %321 {offsets = [0, 64], sizes = [2, 32], strides = [1, 1]} : vector<2x128xf32> to vector<2x32xf32>
    %325 = vector.extract_strided_slice %321 {offsets = [0, 96], sizes = [2, 32], strides = [1, 1]} : vector<2x128xf32> to vector<2x32xf32>
    %326 = arith.mulf %323, %291 : vector<2x32xf32>
    %327 = arith.mulf %322, %324 : vector<2x32xf32>
    %328 = arith.addf %326, %327 : vector<2x32xf32>
    %329 = math.tanh %328 : vector<2x32xf32>
    %330 = arith.mulf %325, %329 : vector<2x32xf32>
    %331 = arith.truncf %330 : vector<2x32xf32> to vector<2x32xbf16>
    %cst_41 = arith.constant dense<0.000000e+00> : vector<2x128xf32>
    %332 = tpu.matmul %331, %3, %cst_41 {dimension_numbers = #tpu.dot_dimension_numbers<[1], [0], [0], [1], [0, 0, 1, 1], [], []>} : vector<2x32xbf16>, vector<32x128xbf16>, vector<2x128xf32> -> vector<2x128xf32>
    %333 = vector.broadcast %10 : vector<1x128xf32> to vector<2x128xf32>
    %334 = arith.addf %332, %333 : vector<2x128xf32>
    %c0_42 = arith.constant 0 : index
    %c0_43 = arith.constant 0 : index
    %335 = vector.load %arg4[%c0_42, %c0_43] : memref<2x128xf32, #tpu.memory_space<vmem>>, vector<2x128xf32>
    tpu.vector_store %arg4[%c0_42, %c0_43], %334 {strides = array<i32>} : memref<2x128xf32, #tpu.memory_space<vmem>>, vector<2x128xf32>,
    %336 = vector.extract_strided_slice %334 {offsets = [0, 0], sizes = [2, 8], strides = [1, 1]} : vector<2x128xf32> to vector<2x8xf32>
    %337 = vector.extract_strided_slice %334 {offsets = [0, 8], sizes = [2, 8], strides = [1, 1]} : vector<2x128xf32> to vector<2x8xf32>
    %cst_44 = arith.constant 5.000000e-01 : f32
    %338 = vector.broadcast %cst_44 : f32 to vector<2x8xf32>
    %339 = arith.mulf %338, %337 : vector<2x8xf32>
    %340 = math.exp %339 : vector<2x8xf32>
    %c0_45 = arith.constant 0 : index
    %c0_46 = arith.constant 0 : index
    %341 = vector.load %arg1[%c0_45, %c0_46] : memref<2x8xf32, #tpu.memory_space<vmem>>, vector<2x8xf32>
    %342 = arith.mulf %340, %341 : vector<2x8xf32>
    %343 = arith.addf %336, %342 : vector<2x8xf32>
    %cst_47 = arith.constant 0.000000e+00 : f32
    %344 = vector.broadcast %cst_47 : f32 to vector<2x8xf32>
    %345 = tpu.concatenate %343, %344 in 1 : vector<2x8xf32>, vector<2x8xf32> -> vector<2x16xf32>
    %346 = arith.truncf %345 : vector<2x16xf32> to vector<2x16xbf16>
    %cst_48 = arith.constant dense<0.000000e+00> : vector<2x128xf32>
    %347 = tpu.matmul %346, %4, %cst_48 {dimension_numbers = #tpu.dot_dimension_numbers<[1], [0], [0], [1], [0, 0, 1, 1], [], []>} : vector<2x16xbf16>, vector<16x128xbf16>, vector<2x128xf32> -> vector<2x128xf32>
    %348 = vector.broadcast %11 : vector<1x128xf32> to vector<2x128xf32>
    %349 = arith.addf %347, %348 : vector<2x128xf32>
    %350 = arith.truncf %14 : vector<16x16xf32> to vector<16x16xbf16>
    %cst_49 = arith.constant dense<0.000000e+00> : vector<16x128xf32>
    %351 = tpu.matmul %350, %5, %cst_49 {dimension_numbers = #tpu.dot_dimension_numbers<[1], [0], [0], [1], [0, 0, 1, 1], [], []>} : vector<16x16xbf16>, vector<16x128xbf16>, vector<16x128xf32> -> vector<16x128xf32>
    %352 = vector.broadcast %12 : vector<1x128xf32> to vector<16x128xf32>
    %353 = arith.addf %351, %352 : vector<16x128xf32>
    %354 = tpu.iota {dimensions = array<i32: 1>} : vector<1x128xi32>
    %c64_i32_50 = arith.constant 64 : i32
    %355 = vector.broadcast %c64_i32_50 : i32 to vector<1x128xi32>
    %356 = arith.cmpi sge, %354, %355 : vector<1x128xi32>
    %c96_i32_51 = arith.constant 96 : i32
    %357 = vector.broadcast %c96_i32_51 : i32 to vector<1x128xi32>
    %358 = arith.cmpi slt, %354, %357 : vector<1x128xi32>
    %359 = arith.andi %356, %358 : vector<1x128xi1>
    %cst_52 = arith.constant 1.000000e+00 : f32
    %cst_53 = arith.constant 5.000000e-01 : f32
    %360 = vector.broadcast %cst_52 : f32 to vector<1x128xf32>
    %361 = vector.broadcast %cst_53 : f32 to vector<1x128xf32>
    %362 = arith.select %359, %360, %361 : vector<1x128xi1>, vector<1x128xf32>
    %cst_54 = arith.constant 0.000000e+00 : f32
    %cst_55 = arith.constant 5.000000e-01 : f32
    %363 = vector.broadcast %cst_54 : f32 to vector<1x128xf32>
    %364 = vector.broadcast %cst_55 : f32 to vector<1x128xf32>
    %365 = arith.select %359, %363, %364 : vector<1x128xi1>, vector<1x128xf32>
    %cst_56 = arith.constant 0.000000e+00 : f32
    %366 = vector.broadcast %cst_56 : f32 to vector<2x32xf32>
    %cst_57 = arith.constant 0.000000e+00 : f32
    %367 = vector.broadcast %cst_57 : f32 to vector<2x32xf32>
    %368 = arith.truncf %366 : vector<2x32xf32> to vector<2x32xbf16>
    %cst_58 = arith.constant dense<0.000000e+00> : vector<2x128xf32>
    %369 = tpu.matmul %368, %6, %cst_58 {dimension_numbers = #tpu.dot_dimension_numbers<[1], [0], [0], [1], [0, 0, 1, 1], [], []>} : vector<2x32xbf16>, vector<32x128xbf16>, vector<2x128xf32> -> vector<2x128xf32>
    %370 = arith.addf %349, %369 : vector<2x128xf32>
    %371 = math.tanh %370 : vector<2x128xf32>
    %372 = vector.broadcast %362 : vector<1x128xf32> to vector<2x128xf32>
    %373 = arith.mulf %371, %372 : vector<2x128xf32>
    %374 = vector.broadcast %365 : vector<1x128xf32> to vector<2x128xf32>
    %375 = arith.addf %373, %374 : vector<2x128xf32>
    %376 = vector.extract_strided_slice %375 {offsets = [0, 0], sizes = [2, 32], strides = [1, 1]} : vector<2x128xf32> to vector<2x32xf32>
    %377 = vector.extract_strided_slice %375 {offsets = [0, 32], sizes = [2, 32], strides = [1, 1]} : vector<2x128xf32> to vector<2x32xf32>
    %378 = vector.extract_strided_slice %375 {offsets = [0, 64], sizes = [2, 32], strides = [1, 1]} : vector<2x128xf32> to vector<2x32xf32>
    %379 = vector.extract_strided_slice %375 {offsets = [0, 96], sizes = [2, 32], strides = [1, 1]} : vector<2x128xf32> to vector<2x32xf32>
    %380 = arith.mulf %377, %367 : vector<2x32xf32>
    %381 = arith.mulf %376, %378 : vector<2x32xf32>
    %382 = arith.addf %380, %381 : vector<2x32xf32>
    %383 = math.tanh %382 : vector<2x32xf32>
    %384 = arith.mulf %379, %383 : vector<2x32xf32>
    %c0_59 = arith.constant 0 : index
    %c0_60 = arith.constant 0 : index
    %385 = vector.load %arg6[%c0_59, %c0_60] : memref<16x32xf32, #tpu.memory_space<vmem>>, vector<2x32xf32>
    tpu.vector_store %arg6[%c0_59, %c0_60], %384 {strides = array<i32>} : memref<16x32xf32, #tpu.memory_space<vmem>>, vector<2x32xf32>,
    %386 = vector.extract_strided_slice %353 {offsets = [0, 0], sizes = [2, 128], strides = [1, 1]} : vector<16x128xf32> to vector<2x128xf32>
    %387 = arith.truncf %384 : vector<2x32xf32> to vector<2x32xbf16>
    %cst_61 = arith.constant dense<0.000000e+00> : vector<2x128xf32>
    %388 = tpu.matmul %387, %6, %cst_61 {dimension_numbers = #tpu.dot_dimension_numbers<[1], [0], [0], [1], [0, 0, 1, 1], [], []>} : vector<2x32xbf16>, vector<32x128xbf16>, vector<2x128xf32> -> vector<2x128xf32>
    %389 = arith.addf %386, %388 : vector<2x128xf32>
    %390 = math.tanh %389 : vector<2x128xf32>
    %391 = vector.broadcast %362 : vector<1x128xf32> to vector<2x128xf32>
    %392 = arith.mulf %390, %391 : vector<2x128xf32>
    %393 = vector.broadcast %365 : vector<1x128xf32> to vector<2x128xf32>
    %394 = arith.addf %392, %393 : vector<2x128xf32>
    %395 = vector.extract_strided_slice %394 {offsets = [0, 0], sizes = [2, 32], strides = [1, 1]} : vector<2x128xf32> to vector<2x32xf32>
    %396 = vector.extract_strided_slice %394 {offsets = [0, 32], sizes = [2, 32], strides = [1, 1]} : vector<2x128xf32> to vector<2x32xf32>
    %397 = vector.extract_strided_slice %394 {offsets = [0, 64], sizes = [2, 32], strides = [1, 1]} : vector<2x128xf32> to vector<2x32xf32>
    %398 = vector.extract_strided_slice %394 {offsets = [0, 96], sizes = [2, 32], strides = [1, 1]} : vector<2x128xf32> to vector<2x32xf32>
    %399 = arith.mulf %396, %382 : vector<2x32xf32>
    %400 = arith.mulf %395, %397 : vector<2x32xf32>
    %401 = arith.addf %399, %400 : vector<2x32xf32>
    %402 = math.tanh %401 : vector<2x32xf32>
    %403 = arith.mulf %398, %402 : vector<2x32xf32>
    %c2_62 = arith.constant 2 : index
    %c0_63 = arith.constant 0 : index
    %404 = vector.load %arg6[%c2_62, %c0_63] : memref<16x32xf32, #tpu.memory_space<vmem>>, vector<2x32xf32>
    tpu.vector_store %arg6[%c2_62, %c0_63], %403 {strides = array<i32>} : memref<16x32xf32, #tpu.memory_space<vmem>>, vector<2x32xf32>,
    %405 = vector.extract_strided_slice %353 {offsets = [2, 0], sizes = [2, 128], strides = [1, 1]} : vector<16x128xf32> to vector<2x128xf32>
    %406 = arith.truncf %403 : vector<2x32xf32> to vector<2x32xbf16>
    %cst_64 = arith.constant dense<0.000000e+00> : vector<2x128xf32>
    %407 = tpu.matmul %406, %6, %cst_64 {dimension_numbers = #tpu.dot_dimension_numbers<[1], [0], [0], [1], [0, 0, 1, 1], [], []>} : vector<2x32xbf16>, vector<32x128xbf16>, vector<2x128xf32> -> vector<2x128xf32>
    %408 = arith.addf %405, %407 : vector<2x128xf32>
    %409 = math.tanh %408 : vector<2x128xf32>
    %410 = vector.broadcast %362 : vector<1x128xf32> to vector<2x128xf32>
    %411 = arith.mulf %409, %410 : vector<2x128xf32>
    %412 = vector.broadcast %365 : vector<1x128xf32> to vector<2x128xf32>
    %413 = arith.addf %411, %412 : vector<2x128xf32>
    %414 = vector.extract_strided_slice %413 {offsets = [0, 0], sizes = [2, 32], strides = [1, 1]} : vector<2x128xf32> to vector<2x32xf32>
    %415 = vector.extract_strided_slice %413 {offsets = [0, 32], sizes = [2, 32], strides = [1, 1]} : vector<2x128xf32> to vector<2x32xf32>
    %416 = vector.extract_strided_slice %413 {offsets = [0, 64], sizes = [2, 32], strides = [1, 1]} : vector<2x128xf32> to vector<2x32xf32>
    %417 = vector.extract_strided_slice %413 {offsets = [0, 96], sizes = [2, 32], strides = [1, 1]} : vector<2x128xf32> to vector<2x32xf32>
    %418 = arith.mulf %415, %401 : vector<2x32xf32>
    %419 = arith.mulf %414, %416 : vector<2x32xf32>
    %420 = arith.addf %418, %419 : vector<2x32xf32>
    %421 = math.tanh %420 : vector<2x32xf32>
    %422 = arith.mulf %417, %421 : vector<2x32xf32>
    %c4_65 = arith.constant 4 : index
    %c0_66 = arith.constant 0 : index
    %423 = vector.load %arg6[%c4_65, %c0_66] : memref<16x32xf32, #tpu.memory_space<vmem>>, vector<2x32xf32>
    tpu.vector_store %arg6[%c4_65, %c0_66], %422 {strides = array<i32>} : memref<16x32xf32, #tpu.memory_space<vmem>>, vector<2x32xf32>,
    %424 = vector.extract_strided_slice %353 {offsets = [4, 0], sizes = [2, 128], strides = [1, 1]} : vector<16x128xf32> to vector<2x128xf32>
    %425 = arith.truncf %422 : vector<2x32xf32> to vector<2x32xbf16>
    %cst_67 = arith.constant dense<0.000000e+00> : vector<2x128xf32>
    %426 = tpu.matmul %425, %6, %cst_67 {dimension_numbers = #tpu.dot_dimension_numbers<[1], [0], [0], [1], [0, 0, 1, 1], [], []>} : vector<2x32xbf16>, vector<32x128xbf16>, vector<2x128xf32> -> vector<2x128xf32>
    %427 = arith.addf %424, %426 : vector<2x128xf32>
    %428 = math.tanh %427 : vector<2x128xf32>
    %429 = vector.broadcast %362 : vector<1x128xf32> to vector<2x128xf32>
    %430 = arith.mulf %428, %429 : vector<2x128xf32>
    %431 = vector.broadcast %365 : vector<1x128xf32> to vector<2x128xf32>
    %432 = arith.addf %430, %431 : vector<2x128xf32>
    %433 = vector.extract_strided_slice %432 {offsets = [0, 0], sizes = [2, 32], strides = [1, 1]} : vector<2x128xf32> to vector<2x32xf32>
    %434 = vector.extract_strided_slice %432 {offsets = [0, 32], sizes = [2, 32], strides = [1, 1]} : vector<2x128xf32> to vector<2x32xf32>
    %435 = vector.extract_strided_slice %432 {offsets = [0, 64], sizes = [2, 32], strides = [1, 1]} : vector<2x128xf32> to vector<2x32xf32>
    %436 = vector.extract_strided_slice %432 {offsets = [0, 96], sizes = [2, 32], strides = [1, 1]} : vector<2x128xf32> to vector<2x32xf32>
    %437 = arith.mulf %434, %420 : vector<2x32xf32>
    %438 = arith.mulf %433, %435 : vector<2x32xf32>
    %439 = arith.addf %437, %438 : vector<2x32xf32>
    %440 = math.tanh %439 : vector<2x32xf32>
    %441 = arith.mulf %436, %440 : vector<2x32xf32>
    %c6 = arith.constant 6 : index
    %c0_68 = arith.constant 0 : index
    %442 = vector.load %arg6[%c6, %c0_68] : memref<16x32xf32, #tpu.memory_space<vmem>>, vector<2x32xf32>
    tpu.vector_store %arg6[%c6, %c0_68], %441 {strides = array<i32>} : memref<16x32xf32, #tpu.memory_space<vmem>>, vector<2x32xf32>,
    %443 = vector.extract_strided_slice %353 {offsets = [6, 0], sizes = [2, 128], strides = [1, 1]} : vector<16x128xf32> to vector<2x128xf32>
    %444 = arith.truncf %441 : vector<2x32xf32> to vector<2x32xbf16>
    %cst_69 = arith.constant dense<0.000000e+00> : vector<2x128xf32>
    %445 = tpu.matmul %444, %6, %cst_69 {dimension_numbers = #tpu.dot_dimension_numbers<[1], [0], [0], [1], [0, 0, 1, 1], [], []>} : vector<2x32xbf16>, vector<32x128xbf16>, vector<2x128xf32> -> vector<2x128xf32>
    %446 = arith.addf %443, %445 : vector<2x128xf32>
    %447 = math.tanh %446 : vector<2x128xf32>
    %448 = vector.broadcast %362 : vector<1x128xf32> to vector<2x128xf32>
    %449 = arith.mulf %447, %448 : vector<2x128xf32>
    %450 = vector.broadcast %365 : vector<1x128xf32> to vector<2x128xf32>
    %451 = arith.addf %449, %450 : vector<2x128xf32>
    %452 = vector.extract_strided_slice %451 {offsets = [0, 0], sizes = [2, 32], strides = [1, 1]} : vector<2x128xf32> to vector<2x32xf32>
    %453 = vector.extract_strided_slice %451 {offsets = [0, 32], sizes = [2, 32], strides = [1, 1]} : vector<2x128xf32> to vector<2x32xf32>
    %454 = vector.extract_strided_slice %451 {offsets = [0, 64], sizes = [2, 32], strides = [1, 1]} : vector<2x128xf32> to vector<2x32xf32>
    %455 = vector.extract_strided_slice %451 {offsets = [0, 96], sizes = [2, 32], strides = [1, 1]} : vector<2x128xf32> to vector<2x32xf32>
    %456 = arith.mulf %453, %439 : vector<2x32xf32>
    %457 = arith.mulf %452, %454 : vector<2x32xf32>
    %458 = arith.addf %456, %457 : vector<2x32xf32>
    %459 = math.tanh %458 : vector<2x32xf32>
    %460 = arith.mulf %455, %459 : vector<2x32xf32>
    %c8 = arith.constant 8 : index
    %c0_70 = arith.constant 0 : index
    %461 = vector.load %arg6[%c8, %c0_70] : memref<16x32xf32, #tpu.memory_space<vmem>>, vector<2x32xf32>
    tpu.vector_store %arg6[%c8, %c0_70], %460 {strides = array<i32>} : memref<16x32xf32, #tpu.memory_space<vmem>>, vector<2x32xf32>,
    %462 = vector.extract_strided_slice %353 {offsets = [8, 0], sizes = [2, 128], strides = [1, 1]} : vector<16x128xf32> to vector<2x128xf32>
    %463 = arith.truncf %460 : vector<2x32xf32> to vector<2x32xbf16>
    %cst_71 = arith.constant dense<0.000000e+00> : vector<2x128xf32>
    %464 = tpu.matmul %463, %6, %cst_71 {dimension_numbers = #tpu.dot_dimension_numbers<[1], [0], [0], [1], [0, 0, 1, 1], [], []>} : vector<2x32xbf16>, vector<32x128xbf16>, vector<2x128xf32> -> vector<2x128xf32>
    %465 = arith.addf %462, %464 : vector<2x128xf32>
    %466 = math.tanh %465 : vector<2x128xf32>
    %467 = vector.broadcast %362 : vector<1x128xf32> to vector<2x128xf32>
    %468 = arith.mulf %466, %467 : vector<2x128xf32>
    %469 = vector.broadcast %365 : vector<1x128xf32> to vector<2x128xf32>
    %470 = arith.addf %468, %469 : vector<2x128xf32>
    %471 = vector.extract_strided_slice %470 {offsets = [0, 0], sizes = [2, 32], strides = [1, 1]} : vector<2x128xf32> to vector<2x32xf32>
    %472 = vector.extract_strided_slice %470 {offsets = [0, 32], sizes = [2, 32], strides = [1, 1]} : vector<2x128xf32> to vector<2x32xf32>
    %473 = vector.extract_strided_slice %470 {offsets = [0, 64], sizes = [2, 32], strides = [1, 1]} : vector<2x128xf32> to vector<2x32xf32>
    %474 = vector.extract_strided_slice %470 {offsets = [0, 96], sizes = [2, 32], strides = [1, 1]} : vector<2x128xf32> to vector<2x32xf32>
    %475 = arith.mulf %472, %458 : vector<2x32xf32>
    %476 = arith.mulf %471, %473 : vector<2x32xf32>
    %477 = arith.addf %475, %476 : vector<2x32xf32>
    %478 = math.tanh %477 : vector<2x32xf32>
    %479 = arith.mulf %474, %478 : vector<2x32xf32>
    %c10 = arith.constant 10 : index
    %c0_72 = arith.constant 0 : index
    %480 = vector.load %arg6[%c10, %c0_72] : memref<16x32xf32, #tpu.memory_space<vmem>>, vector<2x32xf32>
    tpu.vector_store %arg6[%c10, %c0_72], %479 {strides = array<i32>} : memref<16x32xf32, #tpu.memory_space<vmem>>, vector<2x32xf32>,
    %481 = vector.extract_strided_slice %353 {offsets = [10, 0], sizes = [2, 128], strides = [1, 1]} : vector<16x128xf32> to vector<2x128xf32>
    %482 = arith.truncf %479 : vector<2x32xf32> to vector<2x32xbf16>
    %cst_73 = arith.constant dense<0.000000e+00> : vector<2x128xf32>
    %483 = tpu.matmul %482, %6, %cst_73 {dimension_numbers = #tpu.dot_dimension_numbers<[1], [0], [0], [1], [0, 0, 1, 1], [], []>} : vector<2x32xbf16>, vector<32x128xbf16>, vector<2x128xf32> -> vector<2x128xf32>
    %484 = arith.addf %481, %483 : vector<2x128xf32>
    %485 = math.tanh %484 : vector<2x128xf32>
    %486 = vector.broadcast %362 : vector<1x128xf32> to vector<2x128xf32>
    %487 = arith.mulf %485, %486 : vector<2x128xf32>
    %488 = vector.broadcast %365 : vector<1x128xf32> to vector<2x128xf32>
    %489 = arith.addf %487, %488 : vector<2x128xf32>
    %490 = vector.extract_strided_slice %489 {offsets = [0, 0], sizes = [2, 32], strides = [1, 1]} : vector<2x128xf32> to vector<2x32xf32>
    %491 = vector.extract_strided_slice %489 {offsets = [0, 32], sizes = [2, 32], strides = [1, 1]} : vector<2x128xf32> to vector<2x32xf32>
    %492 = vector.extract_strided_slice %489 {offsets = [0, 64], sizes = [2, 32], strides = [1, 1]} : vector<2x128xf32> to vector<2x32xf32>
    %493 = vector.extract_strided_slice %489 {offsets = [0, 96], sizes = [2, 32], strides = [1, 1]} : vector<2x128xf32> to vector<2x32xf32>
    %494 = arith.mulf %491, %477 : vector<2x32xf32>
    %495 = arith.mulf %490, %492 : vector<2x32xf32>
    %496 = arith.addf %494, %495 : vector<2x32xf32>
    %497 = math.tanh %496 : vector<2x32xf32>
    %498 = arith.mulf %493, %497 : vector<2x32xf32>
    %c12 = arith.constant 12 : index
    %c0_74 = arith.constant 0 : index
    %499 = vector.load %arg6[%c12, %c0_74] : memref<16x32xf32, #tpu.memory_space<vmem>>, vector<2x32xf32>
    tpu.vector_store %arg6[%c12, %c0_74], %498 {strides = array<i32>} : memref<16x32xf32, #tpu.memory_space<vmem>>, vector<2x32xf32>,
    %500 = vector.extract_strided_slice %353 {offsets = [12, 0], sizes = [2, 128], strides = [1, 1]} : vector<16x128xf32> to vector<2x128xf32>
    %501 = arith.truncf %498 : vector<2x32xf32> to vector<2x32xbf16>
    %cst_75 = arith.constant dense<0.000000e+00> : vector<2x128xf32>
    %502 = tpu.matmul %501, %6, %cst_75 {dimension_numbers = #tpu.dot_dimension_numbers<[1], [0], [0], [1], [0, 0, 1, 1], [], []>} : vector<2x32xbf16>, vector<32x128xbf16>, vector<2x128xf32> -> vector<2x128xf32>
    %503 = arith.addf %500, %502 : vector<2x128xf32>
    %504 = math.tanh %503 : vector<2x128xf32>
    %505 = vector.broadcast %362 : vector<1x128xf32> to vector<2x128xf32>
    %506 = arith.mulf %504, %505 : vector<2x128xf32>
    %507 = vector.broadcast %365 : vector<1x128xf32> to vector<2x128xf32>
    %508 = arith.addf %506, %507 : vector<2x128xf32>
    %509 = vector.extract_strided_slice %508 {offsets = [0, 0], sizes = [2, 32], strides = [1, 1]} : vector<2x128xf32> to vector<2x32xf32>
    %510 = vector.extract_strided_slice %508 {offsets = [0, 32], sizes = [2, 32], strides = [1, 1]} : vector<2x128xf32> to vector<2x32xf32>
    %511 = vector.extract_strided_slice %508 {offsets = [0, 64], sizes = [2, 32], strides = [1, 1]} : vector<2x128xf32> to vector<2x32xf32>
    %512 = vector.extract_strided_slice %508 {offsets = [0, 96], sizes = [2, 32], strides = [1, 1]} : vector<2x128xf32> to vector<2x32xf32>
    %513 = arith.mulf %510, %496 : vector<2x32xf32>
    %514 = arith.mulf %509, %511 : vector<2x32xf32>
    %515 = arith.addf %513, %514 : vector<2x32xf32>
    %516 = math.tanh %515 : vector<2x32xf32>
    %517 = arith.mulf %512, %516 : vector<2x32xf32>
    %c14 = arith.constant 14 : index
    %c0_76 = arith.constant 0 : index
    %518 = vector.load %arg6[%c14, %c0_76] : memref<16x32xf32, #tpu.memory_space<vmem>>, vector<2x32xf32>
    tpu.vector_store %arg6[%c14, %c0_76], %517 {strides = array<i32>} : memref<16x32xf32, #tpu.memory_space<vmem>>, vector<2x32xf32>,
    %c0_77 = arith.constant 0 : index
    %c0_78 = arith.constant 0 : index
    %519 = vector.load %arg6[%c0_77, %c0_78] : memref<16x32xf32, #tpu.memory_space<vmem>>, vector<16x32xf32>
    %520 = arith.truncf %519 : vector<16x32xf32> to vector<16x32xbf16>
    %cst_79 = arith.constant dense<0.000000e+00> : vector<16x128xf32>
    %521 = tpu.matmul %520, %7, %cst_79 {dimension_numbers = #tpu.dot_dimension_numbers<[1], [0], [0], [1], [0, 0, 1, 1], [], []>} : vector<16x32xbf16>, vector<32x128xbf16>, vector<16x128xf32> -> vector<16x128xf32>
    %522 = vector.broadcast %13 : vector<1x128xf32> to vector<16x128xf32>
    %523 = arith.addf %521, %522 : vector<16x128xf32>
    %c0_80 = arith.constant 0 : index
    %c0_81 = arith.constant 0 : index
    %524 = vector.load %arg5[%c0_80, %c0_81] : memref<16x128xf32, #tpu.memory_space<vmem>>, vector<16x128xf32>
    tpu.vector_store %arg5[%c0_80, %c0_81], %523 {strides = array<i32>} : memref<16x128xf32, #tpu.memory_space<vmem>>, vector<16x128xf32>,
    return
  }
}

</mosaic_0001>

<llo_original>
// kernel: vae_forward.1
$region0: #{vae_forward.1}
  #allocation0 [shape = 'u32[]', space=smem, size = 0x4, offset = 0x4, fixed_abs, tag = 'smem constant byte address 0x4 - core index']
  #allocation1 [shape = 'u32[144,128]{1,0:T(1,128)}', space=vmem, size = 0x12000, scoped, tag = 'internal scratch']
  #allocation2 [shape = 'f32[16,32]{1,0:T(8,128)}', space=vmem, size = 0x2000, scoped, tag = 'scratch operand']
  %s0 = inlined_call_operand.vmem [shape: f32[16,16], index: 0, kind: input, shape index: {}]
  %s1 = inlined_call_operand.vmem [shape: f32[2,8], index: 1, kind: input, shape index: {}]
  %s2 = inlined_call_operand.hbm [shape: bf16[240,128], index: 2, kind: input, shape index: {}]
  %s3 = inlined_call_operand.vmem [shape: f32[8,128], index: 3, kind: input, shape index: {}]
  %s4 = inlined_call_operand.vmem [shape: f32[2,128], index: 4, kind: output, shape index: {0}]
  %s5 = inlined_call_operand.vmem [shape: f32[16,128], index: 5, kind: output, shape index: {1}]
  %6 = xla_tuple %s4, %s5
  %s7 = sld [smem:[#allocation0]]
  $region38: #{vae_forward.1} parent=0
    _
  %s9 = ssub.s32 1, %s7
  %s10 = scalar_select 0, %s9, %s7
  $region1: #{vae_forward.1} parent=0
    #allocation3 [shape = 'u8[61440]{0}', space=vmem, size = 0xf000, scoped, tag = 'input window, operand 2, single buffered']
    #allocation4 [shape = 's32[1]{0}', space=sflag, size = 0x4, scoped, tag = 'scoped memory for vae_forward.1']
    %11 = vsyncpa [#allocation4], 0
    // Predicated region
    $region2: #{vae_forward.1} parent=1 // pred_check
      _
    $region3: #{vae_forward.1} parent=1 // pred_check_branch
      %13 = sbr.rel (0) target = $region5
    $region4: #{vae_forward.1} parent=1 // pred_region
      _
    $region5: #{vae_forward.1} parent=1 // pred_fallthru
      _
    // Predicated region
    $region6: #{vae_forward.1} parent=1 // pred_check
      _
    $region7: #{vae_forward.1} parent=1 // pred_check_branch
      %15 = sbr.rel (0) target = $region9
    $region8: #{vae_forward.1} parent=1 // pred_region
      _
    $region9: #{vae_forward.1} parent=1 // pred_fallthru
      _
    // Predicated region
    $region10: #{vae_forward.1} parent=1 // pred_check
      _
    $region11: #{vae_forward.1} parent=1 // pred_check_branch
      %17 = sbr.rel (0) target = $region13
    $region12: #{vae_forward.1} parent=1 // pred_region
      %s19 = ssub.s32 1920, 1920
      %20 = vsyncadd [#allocation4], %s19
      %s21 = sshll.u32 [#allocation3], 4
      %s22 = int_to_ptr.vmem [resolvable:$true] %s21
      %27 = dma.hbm_to_vmem [thread:$0]  %s2, 1920, %s22, [#allocation4], 64, 64, 4
    $region13: #{vae_forward.1} parent=1 // pred_fallthru
      _
    // Predicated region
    $region14: #{vae_forward.1} parent=1 // pred_check
      _
    $region15: #{vae_forward.1} parent=1 // pred_check_branch
      %29 = sbr.rel (0) target = $region17
    $region16: #{vae_forward.1} parent=1 // pred_region
      _
    $region17: #{vae_forward.1} parent=1 // pred_fallthru
      _
    // Predicated region
    $region18: #{vae_forward.1} parent=1 // pred_check
      _
    $region19: #{vae_forward.1} parent=1 // pred_check_branch
      %31 = sbr.rel (0) target = $region21
    $region20: #{vae_forward.1} parent=1 // pred_region
      %32 = dma.done [#allocation4], 1920
    $region21: #{vae_forward.1} parent=1 // pred_fallthru
      _
    %v34 = vld [vmem:[#allocation3] sm:$0xf]
    %v35 = vld [vmem:[#allocation3 + $0x4] sm:$0xf]
    %v36 = vld [vmem:[#allocation3 + $0x8] sm:$0xf]
    %v37 = vld [vmem:[#allocation3 + $0xc] sm:$0xf]
    %v38 = vld [vmem:[#allocation3 + $0x10] sm:$0xf]
    %v39 = vld [vmem:[#allocation3 + $0x14] sm:$0xf]
    %v40 = vld [vmem:[#allocation3 + $0x18] sm:$0xf]
    %v41 = vld [vmem:[#allocation3 + $0x1c] sm:$0xf]
    %v42 = vld [vmem:[#allocation3 + $0x20] sm:$0xf]
    %v43 = vld [vmem:[#allocation3 + $0x24] sm:$0xf]
    %v44 = vld [vmem:[#allocation3 + $0x28] sm:$0xf]
    %v45 = vld [vmem:[#allocation3 + $0x2c] sm:$0xf]
    %v46 = vld [vmem:[#allocation3 + $0x30] sm:$0xf]
    %v47 = vld [vmem:[#allocation3 + $0x34] sm:$0xf]
    %v48 = vld [vmem:[#allocation3 + $0x38] sm:$0xf]
    %v49 = vld [vmem:[#allocation3 + $0x3c] sm:$0xf]
    %v50 = vld [vmem:[#allocation3 + $0x40] sm:$0xf]
    %v51 = vld [vmem:[#allocation3 + $0x44] sm:$0xf]
    %v52 = vld [vmem:[#allocation3 + $0x48] sm:$0xf]
    %v53 = vld [vmem:[#allocation3 + $0x4c] sm:$0xf]
    %v54 = vld [vmem:[#allocation3 + $0x50] sm:$0xf]
    %v55 = vld [vmem:[#allocation3 + $0x54] sm:$0xf]
    %v56 = vld [vmem:[#allocation3 + $0x58] sm:$0xf]
    %v57 = vld [vmem:[#allocation3 + $0x5c] sm:$0xf]
    %v58 = vld [vmem:[#allocation3 + $0x60] sm:$0xf]
    %v59 = vld [vmem:[#allocation3 + $0x64] sm:$0xf]
    %v60 = vld [vmem:[#allocation3 + $0x68] sm:$0xf]
    %v61 = vld [vmem:[#allocation3 + $0x6c] sm:$0xf]
    %v62 = vld [vmem:[#allocation3 + $0x70] sm:$0xf]
    %v63 = vld [vmem:[#allocation3 + $0x74] sm:$0xf]
    %v64 = vld [vmem:[%s3] sm:$0x1]
    %v65 = vld [vmem:[%s3 + $0x1] sm:$0x1]
    %v66 = vld [vmem:[%s3 + $0x2] sm:$0x1]
    %v67 = vld [vmem:[%s3 + $0x3] sm:$0x1]
    %v68 = vld [vmem:[%s3 + $0x4] sm:$0x1]
    %v69 = vld [vmem:[%s3 + $0x5] sm:$0x1]
    %v70 = vld [vmem:[%s0] sm:$0xff]
    %v71 = vld [vmem:[%s0 + $0x8] sm:$0xff]
    %v72 = vpack.c.bf16 %v71, %v70
    %v73 = vlaneseq
    %v74 = vshrl.u32 %v73, 7
    %v75 = vsub.s32 0, %v74
    %v76 = vrot.slane %v64, %v75
    %v79 = vunpack.c.l.b16 %v34
    %v80 = vunpack.c.l.b16 %v35
    %v81 = vpack.c.b16 %v80, %v79
    %vm83 = vcmask 130048
    %v85 = vsel %vm83, %v72, 0
    %87 = vmatprep.subr.bf16.mxu0 0
    %88 = vmatpush1.bf16.msra.mxu0 %v81
    %89 = vmatprep.subr.bf16.mxu0 0
    %90 = vmatpush1.bf16.msra.mxu0 0
    %91 = vmatprep.subr.bf16.mxu0 0
    %92 = vmatpush1.bf16.msra.mxu0 0
    %93 = vmatprep.subr.bf16.mxu0 0
    %94 = vmatpush1.bf16.msra.mxu0 0
    %95 = vmatprep.subr.bf16.mxu0 0
    %96 = vmatpush1.bf16.msra.mxu0 0
    %97 = vmatprep.subr.bf16.mxu0 0
    %98 = vmatpush1.bf16.msra.mxu0 0
    %99 = vmatprep.subr.bf16.mxu0 0
    %100 = vmatpush1.bf16.msra.mxu0 0
    %101 = vmatprep.subr.bf16.mxu0 0
    %102 = vmatpush1.bf16.msra.mxu0 0
    %103 = vmatprep.subr.bf16.mxu0 0
    %104 = vmatpush1.bf16.msra.mxu0 0
    %105 = vmatprep.subr.bf16.mxu0 0
    %106 = vmatpush1.bf16.msra.mxu0 0
    %107 = vmatprep.subr.bf16.mxu0 0
    %108 = vmatpush1.bf16.msra.mxu0 0
    %109 = vmatprep.subr.bf16.mxu0 0
    %110 = vmatpush1.bf16.msra.mxu0 0
    %111 = vmatprep.subr.bf16.mxu0 0
    %112 = vmatpush1.bf16.msra.mxu0 0
    %113 = vmatprep.subr.bf16.mxu0 0
    %114 = vmatpush1.bf16.msra.mxu0 0
    %115 = vmatprep.subr.bf16.mxu0 0
    %116 = vmatpush1.bf16.msra.mxu0 0
    %117 = vmatprep.subr.bf16.mxu0 0
    %118 = vmatpush1.bf16.msra.mxu0 0
    %119 = vmatprep.mubr.bf16.mxu0 0
    %120 = vmatmul.mubr.bf16.gmra.mrb[0].mxu0 %v85
    %v121 = vpop.f32.mrb[0].mxu0
    %v122 = vadd.f32 %v76, %v121
    %v123 = vpop.f32.mrb[0].mxu0
    %v124 = vpop.f32.mrb[0].mxu0
    %v125 = vadd.f32 %v76, %v124
    %v126 = vpop.f32.mrb[0].mxu0
    %127 = vdwg.mxu0
    %v128 = vlaneseq
    %v129 = vand.u32 %v128, 127
    %vm130 = vcmp.ge.s32.totalorder %v129, 64
    %vm131 = vcmp.lt.s32.totalorder %v129, 96
    %vm132 = vmand %vm130, %vm131
    %v133 = vsel %vm132, 1.0, 0.5
    %v134 = vsel %vm132, 0.0, 0.5
    %v139 = vunpack.c.l.b16 %v36
    %v140 = vunpack.c.l.b16 %v37
    %v141 = vunpack.c.l.b16 %v38
    %v142 = vunpack.c.l.b16 %v39
    %v143 = vpack.c.b16 %v140, %v139
    %v144 = vpack.c.b16 %v142, %v141
    %vm147 = vcmask 261120
    %v149 = vsel %vm147, 0, 0
    %151 = vmatprep.subr.bf16.mxu0 0
    %152 = vmatpush1.bf16.msra.mxu0 %v143
    %153 = vmatprep.subr.bf16.mxu0 0
    %154 = vmatpush1.bf16.msra.mxu0 %v144
    %155 = vmatprep.subr.bf16.mxu0 0
    %156 = vmatpush1.bf16.msra.mxu0 0
    %157 = vmatprep.subr.bf16.mxu0 0
    %158 = vmatpush1.bf16.msra.mxu0 0
    %159 = vmatprep.subr.bf16.mxu0 0
    %160 = vmatpush1.bf16.msra.mxu0 0
    %161 = vmatprep.subr.bf16.mxu0 0
    %162 = vmatpush1.bf16.msra.mxu0 0
    %163 = vmatprep.subr.bf16.mxu0 0
    %164 = vmatpush1.bf16.msra.mxu0 0
    %165 = vmatprep.subr.bf16.mxu0 0
    %166 = vmatpush1.bf16.msra.mxu0 0
    %167 = vmatprep.subr.bf16.mxu0 0
    %168 = vmatpush1.bf16.msra.mxu0 0
    %169 = vmatprep.subr.bf16.mxu0 0
    %170 = vmatpush1.bf16.msra.mxu0 0
    %171 = vmatprep.subr.bf16.mxu0 0
    %172 = vmatpush1.bf16.msra.mxu0 0
    %173 = vmatprep.subr.bf16.mxu0 0
    %174 = vmatpush1.bf16.msra.mxu0 0
    %175 = vmatprep.subr.bf16.mxu0 0
    %176 = vmatpush1.bf16.msra.mxu0 0
    %177 = vmatprep.subr.bf16.mxu0 0
    %178 = vmatpush1.bf16.msra.mxu0 0
    %179 = vmatprep.subr.bf16.mxu0 0
    %180 = vmatpush1.bf16.msra.mxu0 0
    %181 = vmatprep.subr.bf16.mxu0 0
    %182 = vmatpush1.bf16.msra.mxu0 0
    %183 = vmatprep.mubr.bf16.mxu0 0
    %184 = vmatmul.mubr.bf16.gmra.mrb[0].mxu0 %v149
    %v185 = vpop.f32.mrb[0].mxu0
    %v186 = vadd.f32 0.0, %v185
    %v187 = vpop.f32.mrb[0].mxu0
    %v188 = vpop.f32.mrb[0].mxu0
    %v189 = vpop.f32.mrb[0].mxu0
    %190 = vdwg.mxu0
    %v191 = vadd.f32 %v122, %v186
    %v192 = vtanh.pop %v191
    %v193 = vmul.f32 %v192, %v133
    %v194 = vadd.f32 %v193, %v134
    %v195 = vmul.f32 %v194, 0.0
    %197 = vrot.lane.b32.xlu0 %v194, 64
    %v198 = vpop.permute.xlu0 %197
    %v200 = vmul.f32 %v194, %v198
    %202 = vrot.lane.b32.xlu0 %v200, 32
    %v203 = vpop.permute.xlu0 %202
    %v205 = vadd.f32 %v195, %v203
    %v206 = vtanh.pop %v205
    %208 = vrot.lane.b32.xlu0 %v206, 64
    %v209 = vpop.permute.xlu0 %208
    %v211 = vmul.f32 %v194, %v209
    %213 = vrot.lane.b32.xlu0 %v211, 32
    %v214 = vpop.permute.xlu0 %213
    %v216 = vsel %vm147, %v214, 0.0
    %v217 = vpack.c.bf16 %v216, %v216
    %v218 = vlaneseq
    %v219 = vshrl.u32 %v218, 7
    %v220 = vsub.s32 0, %v219
    %v221 = vrot.slane %v65, %v220
    %v230 = vunpack.c.l.b16 %v40
    %v231 = vunpack.c.l.b16 %v41
    %v232 = vunpack.c.l.b16 %v42
    %v233 = vunpack.c.l.b16 %v43
    %v234 = vunpack.c.l.b16 %v44
    %v235 = vunpack.c.l.b16 %v45
    %v236 = vunpack.c.l.b16 %v46
    %v237 = vunpack.c.l.b16 %v47
    %v238 = vpack.c.b16 %v231, %v230
    %v239 = vpack.c.b16 %v233, %v232
    %v240 = vpack.c.b16 %v235, %v234
    %v241 = vpack.c.b16 %v237, %v236
    %vm246 = vcmask 523264
    %v248 = vsel %vm246, %v217, 0
    %250 = vmatprep.subr.bf16.mxu0 0
    %251 = vmatpush1.bf16.msra.mxu0 %v238
    %252 = vmatprep.subr.bf16.mxu0 0
    %253 = vmatpush1.bf16.msra.mxu0 %v239
    %254 = vmatprep.subr.bf16.mxu0 0
    %255 = vmatpush1.bf16.msra.mxu0 %v240
    %256 = vmatprep.subr.bf16.mxu0 0
    %257 = vmatpush1.bf16.msra.mxu0 %v241
    %258 = vmatprep.subr.bf16.mxu0 0
    %259 = vmatpush1.bf16.msra.mxu0 0
    %260 = vmatprep.subr.bf16.mxu0 0
    %261 = vmatpush1.bf16.msra.mxu0 0
    %262 = vmatprep.subr.bf16.mxu0 0
    %263 = vmatpush1.bf16.msra.mxu0 0
    %264 = vmatprep.subr.bf16.mxu0 0
    %265 = vmatpush1.bf16.msra.mxu0 0
    %266 = vmatprep.subr.bf16.mxu0 0
    %267 = vmatpush1.bf16.msra.mxu0 0
    %268 = vmatprep.subr.bf16.mxu0 0
    %269 = vmatpush1.bf16.msra.mxu0 0
    %270 = vmatprep.subr.bf16.mxu0 0
    %271 = vmatpush1.bf16.msra.mxu0 0
    %272 = vmatprep.subr.bf16.mxu0 0
    %273 = vmatpush1.bf16.msra.mxu0 0
    %274 = vmatprep.subr.bf16.mxu0 0
    %275 = vmatpush1.bf16.msra.mxu0 0
    %276 = vmatprep.subr.bf16.mxu0 0
    %277 = vmatpush1.bf16.msra.mxu0 0
    %278 = vmatprep.subr.bf16.mxu0 0
    %279 = vmatpush1.bf16.msra.mxu0 0
    %280 = vmatprep.subr.bf16.mxu0 0
    %281 = vmatpush1.bf16.msra.mxu0 0
    %282 = vmatprep.mubr.bf16.mxu0 0
    %283 = vmatmul.mubr.bf16.gmra.mrb[0].mxu0 %v248
    %v284 = vpop.f32.mrb[0].mxu0
    %v285 = vadd.f32 %v221, %v284
    %v286 = vpop.f32.mrb[0].mxu0
    %v287 = vpop.f32.mrb[0].mxu0
    %v288 = vpop.f32.mrb[0].mxu0
    %289 = vdwg.mxu0
    %v290 = vtanh.pop %v285
    %v291 = vmul.f32 %v290, %v133
    %v292 = vadd.f32 %v291, %v134
    %v293 = vmul.f32 %v292, 0.0
    %295 = vrot.lane.b32.xlu0 %v292, 64
    %v296 = vpop.permute.xlu0 %295
    %v298 = vmul.f32 %v292, %v296
    %300 = vrot.lane.b32.xlu0 %v298, 32
    %v301 = vpop.permute.xlu0 %300
    %v303 = vadd.f32 %v293, %v301
    %v304 = vtanh.pop %v303
    %306 = vrot.lane.b32.xlu0 %v304, 64
    %v307 = vpop.permute.xlu0 %306
    %v309 = vmul.f32 %v292, %v307
    %v310 = vpack.c.bf16 %v211, %v211
    %312 = vrot.lane.b32.xlu0 %v310, 32
    %v313 = vpop.permute.xlu0 %312
    %v315 = vsel %vm147, %v313, 0
    %317 = vmatprep.subr.bf16.mxu0 0
    %318 = vmatpush1.bf16.msra.mxu0 %v143
    %319 = vmatprep.subr.bf16.mxu0 0
    %320 = vmatpush1.bf16.msra.mxu0 %v144
    %321 = vmatprep.subr.bf16.mxu0 0
    %322 = vmatpush1.bf16.msra.mxu0 0
    %323 = vmatprep.subr.bf16.mxu0 0
    %324 = vmatpush1.bf16.msra.mxu0 0
    %325 = vmatprep.subr.bf16.mxu0 0
    %326 = vmatpush1.bf16.msra.mxu0 0
    %327 = vmatprep.subr.bf16.mxu0 0
    %328 = vmatpush1.bf16.msra.mxu0 0
    %329 = vmatprep.subr.bf16.mxu0 0
    %330 = vmatpush1.bf16.msra.mxu0 0
    %331 = vmatprep.subr.bf16.mxu0 0
    %332 = vmatpush1.bf16.msra.mxu0 0
    %333 = vmatprep.subr.bf16.mxu0 0
    %334 = vmatpush1.bf16.msra.mxu0 0
    %335 = vmatprep.subr.bf16.mxu0 0
    %336 = vmatpush1.bf16.msra.mxu0 0
    %337 = vmatprep.subr.bf16.mxu0 0
    %338 = vmatpush1.bf16.msra.mxu0 0
    %339 = vmatprep.subr.bf16.mxu0 0
    %340 = vmatpush1.bf16.msra.mxu0 0
    %341 = vmatprep.subr.bf16.mxu0 0
    %342 = vmatpush1.bf16.msra.mxu0 0
    %343 = vmatprep.subr.bf16.mxu0 0
    %344 = vmatpush1.bf16.msra.mxu0 0
    %345 = vmatprep.subr.bf16.mxu0 0
    %346 = vmatpush1.bf16.msra.mxu0 0
    %347 = vmatprep.subr.bf16.mxu0 0
    %348 = vmatpush1.bf16.msra.mxu0 0
    %349 = vmatprep.mubr.bf16.mxu0 0
    %350 = vmatmul.mubr.bf16.gmra.mrb[0].mxu0 %v315
    %v351 = vpop.f32.mrb[0].mxu0
    %v352 = vadd.f32 0.0, %v351
    %v353 = vpop.f32.mrb[0].mxu0
    %v354 = vpop.f32.mrb[0].mxu0
    %v355 = vpop.f32.mrb[0].mxu0
    %356 = vdwg.mxu0
    %v358 = vrot.slane %v352, 6
    %v360 = vadd.f32 %v122, %v358
    %v361 = vtanh.pop %v360
    %v362 = vmul.f32 %v361, %v133
    %v363 = vadd.f32 %v362, %v134
    %v365 = vrot.slane %v205, 6
    %v367 = vmul.f32 %v363, %v365
    %369 = vrot.lane.b32.xlu0 %v363, 64
    %v370 = vpop.permute.xlu0 %369
    %v372 = vmul.f32 %v363, %v370
    %374 = vrot.lane.b32.xlu0 %v372, 32
    %v375 = vpop.permute.xlu0 %374
    %v377 = vadd.f32 %v367, %v375
    %v378 = vtanh.pop %v377
    %380 = vrot.lane.b32.xlu0 %v378, 64
    %v381 = vpop.permute.xlu0 %380
    %v383 = vmul.f32 %v363, %v381
    %385 = vrot.lane.b32.xlu0 %v383, 32
    %v386 = vpop.permute.xlu0 %385
    %v389 = vrot.slane %v309, 6
    %390 = vrot.lane.b32.xlu0 %v389, 64
    %v391 = vpop.permute.xlu0 %390
    %v393 = vsel %vm147, %v386, %v391
    %v394 = vpack.c.bf16 %v393, %v393
    %v396 = vrot.slane %v394, 1
    %v398 = vsel %vm246, %v396, 0
    %400 = vmatprep.subr.bf16.mxu0 0
    %401 = vmatpush1.bf16.msra.mxu0 %v238
    %402 = vmatprep.subr.bf16.mxu0 0
    %403 = vmatpush1.bf16.msra.mxu0 %v239
    %404 = vmatprep.subr.bf16.mxu0 0
    %405 = vmatpush1.bf16.msra.mxu0 %v240
    %406 = vmatprep.subr.bf16.mxu0 0
    %407 = vmatpush1.bf16.msra.mxu0 %v241
    %408 = vmatprep.subr.bf16.mxu0 0
    %409 = vmatpush1.bf16.msra.mxu0 0
    %410 = vmatprep.subr.bf16.mxu0 0
    %411 = vmatpush1.bf16.msra.mxu0 0
    %412 = vmatprep.subr.bf16.mxu0 0
    %413 = vmatpush1.bf16.msra.mxu0 0
    %414 = vmatprep.subr.bf16.mxu0 0
    %415 = vmatpush1.bf16.msra.mxu0 0
    %416 = vmatprep.subr.bf16.mxu0 0
    %417 = vmatpush1.bf16.msra.mxu0 0
    %418 = vmatprep.subr.bf16.mxu0 0
    %419 = vmatpush1.bf16.msra.mxu0 0
    %420 = vmatprep.subr.bf16.mxu0 0
    %421 = vmatpush1.bf16.msra.mxu0 0
    %422 = vmatprep.subr.bf16.mxu0 0
    %423 = vmatpush1.bf16.msra.mxu0 0
    %424 = vmatprep.subr.bf16.mxu0 0
    %425 = vmatpush1.bf16.msra.mxu0 0
    %426 = vmatprep.subr.bf16.mxu0 0
    %427 = vmatpush1.bf16.msra.mxu0 0
    %428 = vmatprep.subr.bf16.mxu0 0
    %429 = vmatpush1.bf16.msra.mxu0 0
    %430 = vmatprep.subr.bf16.mxu0 0
    %431 = vmatpush1.bf16.msra.mxu0 0
    %432 = vmatprep.mubr.bf16.mxu0 0
    %433 = vmatmul.mubr.bf16.gmra.mrb[0].mxu0 %v398
    %v434 = vpop.f32.mrb[0].mxu0
    %v435 = vadd.f32 %v221, %v434
    %v436 = vpop.f32.mrb[0].mxu0
    %v437 = vpop.f32.mrb[0].mxu0
    %v438 = vpop.f32.mrb[0].mxu0
    %439 = vdwg.mxu0
    %v440 = vtanh.pop %v435
    %v441 = vmul.f32 %v440, %v133
    %v442 = vadd.f32 %v441, %v134
    %v443 = vmul.f32 %v442, %v303
    %445 = vrot.lane.b32.xlu0 %v442, 64
    %v446 = vpop.permute.xlu0 %445
    %v448 = vmul.f32 %v442, %v446
    %450 = vrot.lane.b32.xlu0 %v448, 32
    %v451 = vpop.permute.xlu0 %450
    %v453 = vadd.f32 %v443, %v451
    %v454 = vtanh.pop %v453
    %456 = vrot.lane.b32.xlu0 %v454, 64
    %v457 = vpop.permute.xlu0 %456
    %v459 = vmul.f32 %v442, %v457
    %v460 = vpack.c.bf16 %v383, %v383
    %v462 = vrot.slane %v460, 1
    %463 = vrot.lane.b32.xlu0 %v462, 32
    %v464 = vpop.permute.xlu0 %463
    %v466 = vsel %vm147, %v464, 0
    %468 = vmatprep.subr.bf16.mxu0 0
    %469 = vmatpush1.bf16.msra.mxu0 %v143
    %470 = vmatprep.subr.bf16.mxu0 0
    %471 = vmatpush1.bf16.msra.mxu0 %v144
    %472 = vmatprep.subr.bf16.mxu0 0
    %473 = vmatpush1.bf16.msra.mxu0 0
    %474 = vmatprep.subr.bf16.mxu0 0
    %475 = vmatpush1.bf16.msra.mxu0 0
    %476 = vmatprep.subr.bf16.mxu0 0
    %477 = vmatpush1.bf16.msra.mxu0 0
    %478 = vmatprep.subr.bf16.mxu0 0
    %479 = vmatpush1.bf16.msra.mxu0 0
    %480 = vmatprep.subr.bf16.mxu0 0
    %481 = vmatpush1.bf16.msra.mxu0 0
    %482 = vmatprep.subr.bf16.mxu0 0
    %483 = vmatpush1.bf16.msra.mxu0 0
    %484 = vmatprep.subr.bf16.mxu0 0
    %485 = vmatpush1.bf16.msra.mxu0 0
    %486 = vmatprep.subr.bf16.mxu0 0
    %487 = vmatpush1.bf16.msra.mxu0 0
    %488 = vmatprep.subr.bf16.mxu0 0
    %489 = vmatpush1.bf16.msra.mxu0 0
    %490 = vmatprep.subr.bf16.mxu0 0
    %491 = vmatpush1.bf16.msra.mxu0 0
    %492 = vmatprep.subr.bf16.mxu0 0
    %493 = vmatpush1.bf16.msra.mxu0 0
    %494 = vmatprep.subr.bf16.mxu0 0
    %495 = vmatpush1.bf16.msra.mxu0 0
    %496 = vmatprep.subr.bf16.mxu0 0
    %497 = vmatpush1.bf16.msra.mxu0 0
    %498 = vmatprep.subr.bf16.mxu0 0
    %499 = vmatpush1.bf16.msra.mxu0 0
    %500 = vmatprep.mubr.bf16.mxu0 0
    %501 = vmatmul.mubr.bf16.gmra.mrb[0].mxu0 %v466
    %v502 = vpop.f32.mrb[0].mxu0
    %v503 = vadd.f32 0.0, %v502
    %v504 = vpop.f32.mrb[0].mxu0
    %v505 = vpop.f32.mrb[0].mxu0
    %v506 = vpop.f32.mrb[0].mxu0
    %507 = vdwg.mxu0
    %v509 = vrot.slane %v503, 4
    %v511 = vadd.f32 %v122, %v509
    %v512 = vtanh.pop %v511
    %v513 = vmul.f32 %v512, %v133
    %v514 = vadd.f32 %v513, %v134
    %v516 = vrot.slane %v377, 6
    %v518 = vmul.f32 %v514, %v516
    %520 = vrot.lane.b32.xlu0 %v514, 64
    %v521 = vpop.permute.xlu0 %520
    %v523 = vmul.f32 %v514, %v521
    %525 = vrot.lane.b32.xlu0 %v523, 32
    %v526 = vpop.permute.xlu0 %525
    %v528 = vadd.f32 %v518, %v526
    %v529 = vtanh.pop %v528
    %531 = vrot.lane.b32.xlu0 %v529, 64
    %v532 = vpop.permute.xlu0 %531
    %v534 = vmul.f32 %v514, %v532
    %536 = vrot.lane.b32.xlu0 %v534, 32
    %v537 = vpop.permute.xlu0 %536
    %v540 = vrot.slane %v459, 4
    %541 = vrot.lane.b32.xlu0 %v540, 64
    %v542 = vpop.permute.xlu0 %541
    %v544 = vsel %vm147, %v537, %v542
    %v545 = vpack.c.bf16 %v544, %v544
    %v547 = vrot.slane %v545, 2
    %v549 = vsel %vm246, %v547, 0
    %551 = vmatprep.subr.bf16.mxu0 0
    %552 = vmatpush1.bf16.msra.mxu0 %v238
    %553 = vmatprep.subr.bf16.mxu0 0
    %554 = vmatpush1.bf16.msra.mxu0 %v239
    %555 = vmatprep.subr.bf16.mxu0 0
    %556 = vmatpush1.bf16.msra.mxu0 %v240
    %557 = vmatprep.subr.bf16.mxu0 0
    %558 = vmatpush1.bf16.msra.mxu0 %v241
    %559 = vmatprep.subr.bf16.mxu0 0
    %560 = vmatpush1.bf16.msra.mxu0 0
    %561 = vmatprep.subr.bf16.mxu0 0
    %562 = vmatpush1.bf16.msra.mxu0 0
    %563 = vmatprep.subr.bf16.mxu0 0
    %564 = vmatpush1.bf16.msra.mxu0 0
    %565 = vmatprep.subr.bf16.mxu0 0
    %566 = vmatpush1.bf16.msra.mxu0 0
    %567 = vmatprep.subr.bf16.mxu0 0
    %568 = vmatpush1.bf16.msra.mxu0 0
    %569 = vmatprep.subr.bf16.mxu0 0
    %570 = vmatpush1.bf16.msra.mxu0 0
    %571 = vmatprep.subr.bf16.mxu0 0
    %572 = vmatpush1.bf16.msra.mxu0 0
    %573 = vmatprep.subr.bf16.mxu0 0
    %574 = vmatpush1.bf16.msra.mxu0 0
    %575 = vmatprep.subr.bf16.mxu0 0
    %576 = vmatpush1.bf16.msra.mxu0 0
    %577 = vmatprep.subr.bf16.mxu0 0
    %578 = vmatpush1.bf16.msra.mxu0 0
    %579 = vmatprep.subr.bf16.mxu0 0
    %580 = vmatpush1.bf16.msra.mxu0 0
    %581 = vmatprep.subr.bf16.mxu0 0
    %582 = vmatpush1.bf16.msra.mxu0 0
    %583 = vmatprep.mubr.bf16.mxu0 0
    %584 = vmatmul.mubr.bf16.gmra.mrb[0].mxu0 %v549
    %v585 = vpop.f32.mrb[0].mxu0
    %v586 = vadd.f32 %v221, %v585
    %v587 = vpop.f32.mrb[0].mxu0
    %v588 = vpop.f32.mrb[0].mxu0
    %v589 = vpop.f32.mrb[0].mxu0
    %590 = vdwg.mxu0
    %v591 = vtanh.pop %v586
    %v592 = vmul.f32 %v591, %v133
    %v593 = vadd.f32 %v592, %v134
    %v594 = vmul.f32 %v593, %v453
    %596 = vrot.lane.b32.xlu0 %v593, 64
    %v597 = vpop.permute.xlu0 %596
    %v599 = vmul.f32 %v593, %v597
    %601 = vrot.lane.b32.xlu0 %v599, 32
    %v602 = vpop.permute.xlu0 %601
    %v604 = vadd.f32 %v594, %v602
    %v605 = vtanh.pop %v604
    %607 = vrot.lane.b32.xlu0 %v605, 64
    %v608 = vpop.permute.xlu0 %607
    %v610 = vmul.f32 %v593, %v608
    %v611 = vpack.c.bf16 %v534, %v534
    %v613 = vrot.slane %v611, 2
    %614 = vrot.lane.b32.xlu0 %v613, 32
    %v615 = vpop.permute.xlu0 %614
    %v617 = vsel %vm147, %v615, 0
    %619 = vmatprep.subr.bf16.mxu0 0
    %620 = vmatpush1.bf16.msra.mxu0 %v143
    %621 = vmatprep.subr.bf16.mxu0 0
    %622 = vmatpush1.bf16.msra.mxu0 %v144
    %623 = vmatprep.subr.bf16.mxu0 0
    %624 = vmatpush1.bf16.msra.mxu0 0
    %625 = vmatprep.subr.bf16.mxu0 0
    %626 = vmatpush1.bf16.msra.mxu0 0
    %627 = vmatprep.subr.bf16.mxu0 0
    %628 = vmatpush1.bf16.msra.mxu0 0
    %629 = vmatprep.subr.bf16.mxu0 0
    %630 = vmatpush1.bf16.msra.mxu0 0
    %631 = vmatprep.subr.bf16.mxu0 0
    %632 = vmatpush1.bf16.msra.mxu0 0
    %633 = vmatprep.subr.bf16.mxu0 0
    %634 = vmatpush1.bf16.msra.mxu0 0
    %635 = vmatprep.subr.bf16.mxu0 0
    %636 = vmatpush1.bf16.msra.mxu0 0
    %637 = vmatprep.subr.bf16.mxu0 0
    %638 = vmatpush1.bf16.msra.mxu0 0
    %639 = vmatprep.subr.bf16.mxu0 0
    %640 = vmatpush1.bf16.msra.mxu0 0
    %641 = vmatprep.subr.bf16.mxu0 0
    %642 = vmatpush1.bf16.msra.mxu0 0
    %643 = vmatprep.subr.bf16.mxu0 0
    %644 = vmatpush1.bf16.msra.mxu0 0
    %645 = vmatprep.subr.bf16.mxu0 0
    %646 = vmatpush1.bf16.msra.mxu0 0
    %647 = vmatprep.subr.bf16.mxu0 0
    %648 = vmatpush1.bf16.msra.mxu0 0
    %649 = vmatprep.subr.bf16.mxu0 0
    %650 = vmatpush1.bf16.msra.mxu0 0
    %651 = vmatprep.mubr.bf16.mxu0 0
    %652 = vmatmul.mubr.bf16.gmra.mrb[0].mxu0 %v617
    %v653 = vpop.f32.mrb[0].mxu0
    %v654 = vadd.f32 0.0, %v653
    %v655 = vpop.f32.mrb[0].mxu0
    %v656 = vpop.f32.mrb[0].mxu0
    %v657 = vpop.f32.mrb[0].mxu0
    %658 = vdwg.mxu0
    %v660 = vrot.slane %v654, 2
    %v662 = vadd.f32 %v122, %v660
    %v663 = vtanh.pop %v662
    %v664 = vmul.f32 %v663, %v133
    %v665 = vadd.f32 %v664, %v134
    %v667 = vrot.slane %v528, 6
    %v669 = vmul.f32 %v665, %v667
    %671 = vrot.lane.b32.xlu0 %v665, 64
    %v672 = vpop.permute.xlu0 %671
    %v674 = vmul.f32 %v665, %v672
    %676 = vrot.lane.b32.xlu0 %v674, 32
    %v677 = vpop.permute.xlu0 %676
    %v679 = vadd.f32 %v669, %v677
    %v680 = vtanh.pop %v679
    %682 = vrot.lane.b32.xlu0 %v680, 64
    %v683 = vpop.permute.xlu0 %682
    %v685 = vmul.f32 %v665, %v683
    %687 = vrot.lane.b32.xlu0 %v685, 32
    %v688 = vpop.permute.xlu0 %687
    %v691 = vrot.slane %v610, 2
    %692 = vrot.lane.b32.xlu0 %v691, 64
    %v693 = vpop.permute.xlu0 %692
    %v695 = vsel %vm147, %v688, %v693
    %v696 = vpack.c.bf16 %v695, %v695
    %v698 = vrot.slane %v696, 3
    %v700 = vsel %vm246, %v698, 0
    %702 = vmatprep.subr.bf16.mxu0 0
    %703 = vmatpush1.bf16.msra.mxu0 %v238
    %704 = vmatprep.subr.bf16.mxu0 0
    %705 = vmatpush1.bf16.msra.mxu0 %v239
    %706 = vmatprep.subr.bf16.mxu0 0
    %707 = vmatpush1.bf16.msra.mxu0 %v240
    %708 = vmatprep.subr.bf16.mxu0 0
    %709 = vmatpush1.bf16.msra.mxu0 %v241
    %710 = vmatprep.subr.bf16.mxu0 0
    %711 = vmatpush1.bf16.msra.mxu0 0
    %712 = vmatprep.subr.bf16.mxu0 0
    %713 = vmatpush1.bf16.msra.mxu0 0
    %714 = vmatprep.subr.bf16.mxu0 0
    %715 = vmatpush1.bf16.msra.mxu0 0
    %716 = vmatprep.subr.bf16.mxu0 0
    %717 = vmatpush1.bf16.msra.mxu0 0
    %718 = vmatprep.subr.bf16.mxu0 0
    %719 = vmatpush1.bf16.msra.mxu0 0
    %720 = vmatprep.subr.bf16.mxu0 0
    %721 = vmatpush1.bf16.msra.mxu0 0
    %722 = vmatprep.subr.bf16.mxu0 0
    %723 = vmatpush1.bf16.msra.mxu0 0
    %724 = vmatprep.subr.bf16.mxu0 0
    %725 = vmatpush1.bf16.msra.mxu0 0
    %726 = vmatprep.subr.bf16.mxu0 0
    %727 = vmatpush1.bf16.msra.mxu0 0
    %728 = vmatprep.subr.bf16.mxu0 0
    %729 = vmatpush1.bf16.msra.mxu0 0
    %730 = vmatprep.subr.bf16.mxu0 0
    %731 = vmatpush1.bf16.msra.mxu0 0
    %732 = vmatprep.subr.bf16.mxu0 0
    %733 = vmatpush1.bf16.msra.mxu0 0
    %734 = vmatprep.mubr.bf16.mxu0 0
    %735 = vmatmul.mubr.bf16.gmra.mrb[0].mxu0 %v700
    %v736 = vpop.f32.mrb[0].mxu0
    %v737 = vadd.f32 %v221, %v736
    %v738 = vpop.f32.mrb[0].mxu0
    %v739 = vpop.f32.mrb[0].mxu0
    %v740 = vpop.f32.mrb[0].mxu0
    %741 = vdwg.mxu0
    %v742 = vtanh.pop %v737
    %v743 = vmul.f32 %v742, %v133
    %v744 = vadd.f32 %v743, %v134
    %v745 = vmul.f32 %v744, %v604
    %747 = vrot.lane.b32.xlu0 %v744, 64
    %v748 = vpop.permute.xlu0 %747
    %v750 = vmul.f32 %v744, %v748
    %752 = vrot.lane.b32.xlu0 %v750, 32
    %v753 = vpop.permute.xlu0 %752
    %v755 = vadd.f32 %v745, %v753
    %v756 = vtanh.pop %v755
    %758 = vrot.lane.b32.xlu0 %v756, 64
    %v759 = vpop.permute.xlu0 %758
    %v761 = vmul.f32 %v744, %v759
    %v762 = vpack.c.bf16 %v685, %v685
    %v764 = vrot.slane %v762, 3
    %765 = vrot.lane.b32.xlu0 %v764, 32
    %v766 = vpop.permute.xlu0 %765
    %v768 = vsel %vm147, %v766, 0
    %770 = vmatprep.subr.bf16.mxu0 0
    %771 = vmatpush1.bf16.msra.mxu0 %v143
    %772 = vmatprep.subr.bf16.mxu0 0
    %773 = vmatpush1.bf16.msra.mxu0 %v144
    %774 = vmatprep.subr.bf16.mxu0 0
    %775 = vmatpush1.bf16.msra.mxu0 0
    %776 = vmatprep.subr.bf16.mxu0 0
    %777 = vmatpush1.bf16.msra.mxu0 0
    %778 = vmatprep.subr.bf16.mxu0 0
    %779 = vmatpush1.bf16.msra.mxu0 0
    %780 = vmatprep.subr.bf16.mxu0 0
    %781 = vmatpush1.bf16.msra.mxu0 0
    %782 = vmatprep.subr.bf16.mxu0 0
    %783 = vmatpush1.bf16.msra.mxu0 0
    %784 = vmatprep.subr.bf16.mxu0 0
    %785 = vmatpush1.bf16.msra.mxu0 0
    %786 = vmatprep.subr.bf16.mxu0 0
    %787 = vmatpush1.bf16.msra.mxu0 0
    %788 = vmatprep.subr.bf16.mxu0 0
    %789 = vmatpush1.bf16.msra.mxu0 0
    %790 = vmatprep.subr.bf16.mxu0 0
    %791 = vmatpush1.bf16.msra.mxu0 0
    %792 = vmatprep.subr.bf16.mxu0 0
    %793 = vmatpush1.bf16.msra.mxu0 0
    %794 = vmatprep.subr.bf16.mxu0 0
    %795 = vmatpush1.bf16.msra.mxu0 0
    %796 = vmatprep.subr.bf16.mxu0 0
    %797 = vmatpush1.bf16.msra.mxu0 0
    %798 = vmatprep.subr.bf16.mxu0 0
    %799 = vmatpush1.bf16.msra.mxu0 0
    %800 = vmatprep.subr.bf16.mxu0 0
    %801 = vmatpush1.bf16.msra.mxu0 0
    %802 = vmatprep.mubr.bf16.mxu0 0
    %803 = vmatmul.mubr.bf16.gmra.mrb[0].mxu0 %v768
    %v804 = vpop.f32.mrb[0].mxu0
    %v805 = vadd.f32 0.0, %v804
    %v806 = vpop.f32.mrb[0].mxu0
    %v807 = vpop.f32.mrb[0].mxu0
    %v808 = vpop.f32.mrb[0].mxu0
    %809 = vdwg.mxu0
    %v810 = vadd.f32 %v125, %v805
    %v811 = vtanh.pop %v810
    %v812 = vmul.f32 %v811, %v133
    %v813 = vadd.f32 %v812, %v134
    %v815 = vrot.slane %v679, 6
    %v817 = vmul.f32 %v813, %v815
    %819 = vrot.lane.b32.xlu0 %v813, 64
    %v820 = vpop.permute.xlu0 %819
    %v822 = vmul.f32 %v813, %v820
    %824 = vrot.lane.b32.xlu0 %v822, 32
    %v825 = vpop.permute.xlu0 %824
    %v827 = vadd.f32 %v817, %v825
    %v828 = vtanh.pop %v827
    %830 = vrot.lane.b32.xlu0 %v828, 64
    %v831 = vpop.permute.xlu0 %830
    %v833 = vmul.f32 %v813, %v831
    %835 = vrot.lane.b32.xlu0 %v833, 32
    %v836 = vpop.permute.xlu0 %835
    %839 = vrot.lane.b32.xlu0 %v761, 64
    %v840 = vpop.permute.xlu0 %839
    %v842 = vsel %vm147, %v836, %v840
    %v843 = vpack.c.bf16 %v842, %v842
    %v845 = vsel %vm246, %v843, 0
    %847 = vmatprep.subr.bf16.mxu0 0
    %848 = vmatpush1.bf16.msra.mxu0 %v238
    %849 = vmatprep.subr.bf16.mxu0 0
    %850 = vmatpush1.bf16.msra.mxu0 %v239
    %851 = vmatprep.subr.bf16.mxu0 0
    %852 = vmatpush1.bf16.msra.mxu0 %v240
    %853 = vmatprep.subr.bf16.mxu0 0
    %854 = vmatpush1.bf16.msra.mxu0 %v241
    %855 = vmatprep.subr.bf16.mxu0 0
    %856 = vmatpush1.bf16.msra.mxu0 0
    %857 = vmatprep.subr.bf16.mxu0 0
    %858 = vmatpush1.bf16.msra.mxu0 0
    %859 = vmatprep.subr.bf16.mxu0 0
    %860 = vmatpush1.bf16.msra.mxu0 0
    %861 = vmatprep.subr.bf16.mxu0 0
    %862 = vmatpush1.bf16.msra.mxu0 0
    %863 = vmatprep.subr.bf16.mxu0 0
    %864 = vmatpush1.bf16.msra.mxu0 0
    %865 = vmatprep.subr.bf16.mxu0 0
    %866 = vmatpush1.bf16.msra.mxu0 0
    %867 = vmatprep.subr.bf16.mxu0 0
    %868 = vmatpush1.bf16.msra.mxu0 0
    %869 = vmatprep.subr.bf16.mxu0 0
    %870 = vmatpush1.bf16.msra.mxu0 0
    %871 = vmatprep.subr.bf16.mxu0 0
    %872 = vmatpush1.bf16.msra.mxu0 0
    %873 = vmatprep.subr.bf16.mxu0 0
    %874 = vmatpush1.bf16.msra.mxu0 0
    %875 = vmatprep.subr.bf16.mxu0 0
    %876 = vmatpush1.bf16.msra.mxu0 0
    %877 = vmatprep.subr.bf16.mxu0 0
    %878 = vmatpush1.bf16.msra.mxu0 0
    %879 = vmatprep.mubr.bf16.mxu0 0
    %880 = vmatmul.mubr.bf16.gmra.mrb[0].mxu0 %v845
    %v881 = vpop.f32.mrb[0].mxu0
    %v882 = vadd.f32 %v221, %v881
    %v883 = vpop.f32.mrb[0].mxu0
    %v884 = vpop.f32.mrb[0].mxu0
    %v885 = vpop.f32.mrb[0].mxu0
    %886 = vdwg.mxu0
    %v887 = vtanh.pop %v882
    %v888 = vmul.f32 %v887, %v133
    %v889 = vadd.f32 %v888, %v134
    %v890 = vmul.f32 %v889, %v755
    %892 = vrot.lane.b32.xlu0 %v889, 64
    %v893 = vpop.permute.xlu0 %892
    %v895 = vmul.f32 %v889, %v893
    %897 = vrot.lane.b32.xlu0 %v895, 32
    %v898 = vpop.permute.xlu0 %897
    %v900 = vadd.f32 %v890, %v898
    %v901 = vtanh.pop %v900
    %903 = vrot.lane.b32.xlu0 %v901, 64
    %v904 = vpop.permute.xlu0 %903
    %v906 = vmul.f32 %v889, %v904
    %v907 = vpack.c.bf16 %v833, %v833
    %909 = vrot.lane.b32.xlu0 %v907, 32
    %v910 = vpop.permute.xlu0 %909
    %v912 = vsel %vm147, %v910, 0
    %914 = vmatprep.subr.bf16.mxu0 0
    %915 = vmatpush1.bf16.msra.mxu0 %v143
    %916 = vmatprep.subr.bf16.mxu0 0
    %917 = vmatpush1.bf16.msra.mxu0 %v144
    %918 = vmatprep.subr.bf16.mxu0 0
    %919 = vmatpush1.bf16.msra.mxu0 0
    %920 = vmatprep.subr.bf16.mxu0 0
    %921 = vmatpush1.bf16.msra.mxu0 0
    %922 = vmatprep.subr.bf16.mxu0 0
    %923 = vmatpush1.bf16.msra.mxu0 0
    %924 = vmatprep.subr.bf16.mxu0 0
    %925 = vmatpush1.bf16.msra.mxu0 0
    %926 = vmatprep.subr.bf16.mxu0 0
    %927 = vmatpush1.bf16.msra.mxu0 0
    %928 = vmatprep.subr.bf16.mxu0 0
    %929 = vmatpush1.bf16.msra.mxu0 0
    %930 = vmatprep.subr.bf16.mxu0 0
    %931 = vmatpush1.bf16.msra.mxu0 0
    %932 = vmatprep.subr.bf16.mxu0 0
    %933 = vmatpush1.bf16.msra.mxu0 0
    %934 = vmatprep.subr.bf16.mxu0 0
    %935 = vmatpush1.bf16.msra.mxu0 0
    %936 = vmatprep.subr.bf16.mxu0 0
    %937 = vmatpush1.bf16.msra.mxu0 0
    %938 = vmatprep.subr.bf16.mxu0 0
    %939 = vmatpush1.bf16.msra.mxu0 0
    %940 = vmatprep.subr.bf16.mxu0 0
    %941 = vmatpush1.bf16.msra.mxu0 0
    %942 = vmatprep.subr.bf16.mxu0 0
    %943 = vmatpush1.bf16.msra.mxu0 0
    %944 = vmatprep.subr.bf16.mxu0 0
    %945 = vmatpush1.bf16.msra.mxu0 0
    %946 = vmatprep.mubr.bf16.mxu0 0
    %947 = vmatmul.mubr.bf16.gmra.mrb[0].mxu0 %v912
    %v948 = vpop.f32.mrb[0].mxu0
    %v949 = vadd.f32 0.0, %v948
    %v950 = vpop.f32.mrb[0].mxu0
    %v951 = vpop.f32.mrb[0].mxu0
    %v952 = vpop.f32.mrb[0].mxu0
    %953 = vdwg.mxu0
    %v955 = vrot.slane %v949, 6
    %v957 = vadd.f32 %v125, %v955
    %v958 = vtanh.pop %v957
    %v959 = vmul.f32 %v958, %v133
    %v960 = vadd.f32 %v959, %v134
    %v962 = vrot.slane %v827, 6
    %v964 = vmul.f32 %v960, %v962
    %966 = vrot.lane.b32.xlu0 %v960, 64
    %v967 = vpop.permute.xlu0 %966
    %v969 = vmul.f32 %v960, %v967
    %971 = vrot.lane.b32.xlu0 %v969, 32
    %v972 = vpop.permute.xlu0 %971
    %v974 = vadd.f32 %v964, %v972
    %v975 = vtanh.pop %v974
    %977 = vrot.lane.b32.xlu0 %v975, 64
    %v978 = vpop.permute.xlu0 %977
    %v980 = vmul.f32 %v960, %v978
    %982 = vrot.lane.b32.xlu0 %v980, 32
    %v983 = vpop.permute.xlu0 %982
    %v986 = vrot.slane %v906, 6
    %987 = vrot.lane.b32.xlu0 %v986, 64
    %v988 = vpop.permute.xlu0 %987
    %v990 = vsel %vm147, %v983, %v988
    %v991 = vpack.c.bf16 %v990, %v990
    %v993 = vrot.slane %v991, 1
    %v995 = vsel %vm246, %v993, 0
    %997 = vmatprep.subr.bf16.mxu0 0
    %998 = vmatpush1.bf16.msra.mxu0 %v238
    %999 = vmatprep.subr.bf16.mxu0 0
    %1000 = vmatpush1.bf16.msra.mxu0 %v239
    %1001 = vmatprep.subr.bf16.mxu0 0
    %1002 = vmatpush1.bf16.msra.mxu0 %v240
    %1003 = vmatprep.subr.bf16.mxu0 0
    %1004 = vmatpush1.bf16.msra.mxu0 %v241
    %1005 = vmatprep.subr.bf16.mxu0 0
    %1006 = vmatpush1.bf16.msra.mxu0 0
    %1007 = vmatprep.subr.bf16.mxu0 0
    %1008 = vmatpush1.bf16.msra.mxu0 0
    %1009 = vmatprep.subr.bf16.mxu0 0
    %1010 = vmatpush1.bf16.msra.mxu0 0
    %1011 = vmatprep.subr.bf16.mxu0 0
    %1012 = vmatpush1.bf16.msra.mxu0 0
    %1013 = vmatprep.subr.bf16.mxu0 0
    %1014 = vmatpush1.bf16.msra.mxu0 0
    %1015 = vmatprep.subr.bf16.mxu0 0
    %1016 = vmatpush1.bf16.msra.mxu0 0
    %1017 = vmatprep.subr.bf16.mxu0 0
    %1018 = vmatpush1.bf16.msra.mxu0 0
    %1019 = vmatprep.subr.bf16.mxu0 0
    %1020 = vmatpush1.bf16.msra.mxu0 0
    %1021 = vmatprep.subr.bf16.mxu0 0
    %1022 = vmatpush1.bf16.msra.mxu0 0
    %1023 = vmatprep.subr.bf16.mxu0 0
    %1024 = vmatpush1.bf16.msra.mxu0 0
    %1025 = vmatprep.subr.bf16.mxu0 0
    %1026 = vmatpush1.bf16.msra.mxu0 0
    %1027 = vmatprep.subr.bf16.mxu0 0
    %1028 = vmatpush1.bf16.msra.mxu0 0
    %1029 = vmatprep.mubr.bf16.mxu0 0
    %1030 = vmatmul.mubr.bf16.gmra.mrb[0].mxu0 %v995
    %v1031 = vpop.f32.mrb[0].mxu0
    %v1032 = vadd.f32 %v221, %v1031
    %v1033 = vpop.f32.mrb[0].mxu0
    %v1034 = vpop.f32.mrb[0].mxu0
    %v1035 = vpop.f32.mrb[0].mxu0
    %1036 = vdwg.mxu0
    %v1037 = vtanh.pop %v1032
    %v1038 = vmul.f32 %v1037, %v133
    %v1039 = vadd.f32 %v1038, %v134
    %v1040 = vmul.f32 %v1039, %v900
    %1042 = vrot.lane.b32.xlu0 %v1039, 64
    %v1043 = vpop.permute.xlu0 %1042
    %v1045 = vmul.f32 %v1039, %v1043
    %1047 = vrot.lane.b32.xlu0 %v1045, 32
    %v1048 = vpop.permute.xlu0 %1047
    %v1050 = vadd.f32 %v1040, %v1048
    %v1051 = vtanh.pop %v1050
    %1053 = vrot.lane.b32.xlu0 %v1051, 64
    %v1054 = vpop.permute.xlu0 %1053
    %v1056 = vmul.f32 %v1039, %v1054
    %v1057 = vpack.c.bf16 %v980, %v980
    %v1059 = vrot.slane %v1057, 1
    %1060 = vrot.lane.b32.xlu0 %v1059, 32
    %v1061 = vpop.permute.xlu0 %1060
    %v1063 = vsel %vm147, %v1061, 0
    %1065 = vmatprep.subr.bf16.mxu0 0
    %1066 = vmatpush1.bf16.msra.mxu0 %v143
    %1067 = vmatprep.subr.bf16.mxu0 0
    %1068 = vmatpush1.bf16.msra.mxu0 %v144
    %1069 = vmatprep.subr.bf16.mxu0 0
    %1070 = vmatpush1.bf16.msra.mxu0 0
    %1071 = vmatprep.subr.bf16.mxu0 0
    %1072 = vmatpush1.bf16.msra.mxu0 0
    %1073 = vmatprep.subr.bf16.mxu0 0
    %1074 = vmatpush1.bf16.msra.mxu0 0
    %1075 = vmatprep.subr.bf16.mxu0 0
    %1076 = vmatpush1.bf16.msra.mxu0 0
    %1077 = vmatprep.subr.bf16.mxu0 0
    %1078 = vmatpush1.bf16.msra.mxu0 0
    %1079 = vmatprep.subr.bf16.mxu0 0
    %1080 = vmatpush1.bf16.msra.mxu0 0
    %1081 = vmatprep.subr.bf16.mxu0 0
    %1082 = vmatpush1.bf16.msra.mxu0 0
    %1083 = vmatprep.subr.bf16.mxu0 0
    %1084 = vmatpush1.bf16.msra.mxu0 0
    %1085 = vmatprep.subr.bf16.mxu0 0
    %1086 = vmatpush1.bf16.msra.mxu0 0
    %1087 = vmatprep.subr.bf16.mxu0 0
    %1088 = vmatpush1.bf16.msra.mxu0 0
    %1089 = vmatprep.subr.bf16.mxu0 0
    %1090 = vmatpush1.bf16.msra.mxu0 0
    %1091 = vmatprep.subr.bf16.mxu0 0
    %1092 = vmatpush1.bf16.msra.mxu0 0
    %1093 = vmatprep.subr.bf16.mxu0 0
    %1094 = vmatpush1.bf16.msra.mxu0 0
    %1095 = vmatprep.subr.bf16.mxu0 0
    %1096 = vmatpush1.bf16.msra.mxu0 0
    %1097 = vmatprep.mubr.bf16.mxu0 0
    %1098 = vmatmul.mubr.bf16.gmra.mrb[0].mxu0 %v1063
    %v1099 = vpop.f32.mrb[0].mxu0
    %v1100 = vadd.f32 0.0, %v1099
    %v1101 = vpop.f32.mrb[0].mxu0
    %v1102 = vpop.f32.mrb[0].mxu0
    %v1103 = vpop.f32.mrb[0].mxu0
    %1104 = vdwg.mxu0
    %v1106 = vrot.slane %v1100, 4
    %v1108 = vadd.f32 %v125, %v1106
    %v1109 = vtanh.pop %v1108
    %v1110 = vmul.f32 %v1109, %v133
    %v1111 = vadd.f32 %v1110, %v134
    %v1113 = vrot.slane %v974, 6
    %v1115 = vmul.f32 %v1111, %v1113
    %1117 = vrot.lane.b32.xlu0 %v1111, 64
    %v1118 = vpop.permute.xlu0 %1117
    %v1120 = vmul.f32 %v1111, %v1118
    %1122 = vrot.lane.b32.xlu0 %v1120, 32
    %v1123 = vpop.permute.xlu0 %1122
    %v1125 = vadd.f32 %v1115, %v1123
    %v1126 = vtanh.pop %v1125
    %1128 = vrot.lane.b32.xlu0 %v1126, 64
    %v1129 = vpop.permute.xlu0 %1128
    %v1131 = vmul.f32 %v1111, %v1129
    %1133 = vrot.lane.b32.xlu0 %v1131, 32
    %v1134 = vpop.permute.xlu0 %1133
    %v1137 = vrot.slane %v1056, 4
    %1138 = vrot.lane.b32.xlu0 %v1137, 64
    %v1139 = vpop.permute.xlu0 %1138
    %v1141 = vsel %vm147, %v1134, %v1139
    %v1142 = vpack.c.bf16 %v1141, %v1141
    %v1144 = vrot.slane %v1142, 2
    %v1146 = vsel %vm246, %v1144, 0
    %1148 = vmatprep.subr.bf16.mxu0 0
    %1149 = vmatpush1.bf16.msra.mxu0 %v238
    %1150 = vmatprep.subr.bf16.mxu0 0
    %1151 = vmatpush1.bf16.msra.mxu0 %v239
    %1152 = vmatprep.subr.bf16.mxu0 0
    %1153 = vmatpush1.bf16.msra.mxu0 %v240
    %1154 = vmatprep.subr.bf16.mxu0 0
    %1155 = vmatpush1.bf16.msra.mxu0 %v241
    %1156 = vmatprep.subr.bf16.mxu0 0
    %1157 = vmatpush1.bf16.msra.mxu0 0
    %1158 = vmatprep.subr.bf16.mxu0 0
    %1159 = vmatpush1.bf16.msra.mxu0 0
    %1160 = vmatprep.subr.bf16.mxu0 0
    %1161 = vmatpush1.bf16.msra.mxu0 0
    %1162 = vmatprep.subr.bf16.mxu0 0
    %1163 = vmatpush1.bf16.msra.mxu0 0
    %1164 = vmatprep.subr.bf16.mxu0 0
    %1165 = vmatpush1.bf16.msra.mxu0 0
    %1166 = vmatprep.subr.bf16.mxu0 0
    %1167 = vmatpush1.bf16.msra.mxu0 0
    %1168 = vmatprep.subr.bf16.mxu0 0
    %1169 = vmatpush1.bf16.msra.mxu0 0
    %1170 = vmatprep.subr.bf16.mxu0 0
    %1171 = vmatpush1.bf16.msra.mxu0 0
    %1172 = vmatprep.subr.bf16.mxu0 0
    %1173 = vmatpush1.bf16.msra.mxu0 0
    %1174 = vmatprep.subr.bf16.mxu0 0
    %1175 = vmatpush1.bf16.msra.mxu0 0
    %1176 = vmatprep.subr.bf16.mxu0 0
    %1177 = vmatpush1.bf16.msra.mxu0 0
    %1178 = vmatprep.subr.bf16.mxu0 0
    %1179 = vmatpush1.bf16.msra.mxu0 0
    %1180 = vmatprep.mubr.bf16.mxu0 0
    %1181 = vmatmul.mubr.bf16.gmra.mrb[0].mxu0 %v1146
    %v1182 = vpop.f32.mrb[0].mxu0
    %v1183 = vadd.f32 %v221, %v1182
    %v1184 = vpop.f32.mrb[0].mxu0
    %v1185 = vpop.f32.mrb[0].mxu0
    %v1186 = vpop.f32.mrb[0].mxu0
    %1187 = vdwg.mxu0
    %v1188 = vtanh.pop %v1183
    %v1189 = vmul.f32 %v1188, %v133
    %v1190 = vadd.f32 %v1189, %v134
    %v1191 = vmul.f32 %v1190, %v1050
    %1193 = vrot.lane.b32.xlu0 %v1190, 64
    %v1194 = vpop.permute.xlu0 %1193
    %v1196 = vmul.f32 %v1190, %v1194
    %1198 = vrot.lane.b32.xlu0 %v1196, 32
    %v1199 = vpop.permute.xlu0 %1198
    %v1201 = vadd.f32 %v1191, %v1199
    %v1202 = vtanh.pop %v1201
    %1204 = vrot.lane.b32.xlu0 %v1202, 64
    %v1205 = vpop.permute.xlu0 %1204
    %v1207 = vmul.f32 %v1190, %v1205
    %v1208 = vpack.c.bf16 %v1131, %v1131
    %v1210 = vrot.slane %v1208, 2
    %1211 = vrot.lane.b32.xlu0 %v1210, 32
    %v1212 = vpop.permute.xlu0 %1211
    %v1214 = vsel %vm147, %v1212, 0
    %1216 = vmatprep.subr.bf16.mxu0 0
    %1217 = vmatpush1.bf16.msra.mxu0 %v143
    %1218 = vmatprep.subr.bf16.mxu0 0
    %1219 = vmatpush1.bf16.msra.mxu0 %v144
    %1220 = vmatprep.subr.bf16.mxu0 0
    %1221 = vmatpush1.bf16.msra.mxu0 0
    %1222 = vmatprep.subr.bf16.mxu0 0
    %1223 = vmatpush1.bf16.msra.mxu0 0
    %1224 = vmatprep.subr.bf16.mxu0 0
    %1225 = vmatpush1.bf16.msra.mxu0 0
    %1226 = vmatprep.subr.bf16.mxu0 0
    %1227 = vmatpush1.bf16.msra.mxu0 0
    %1228 = vmatprep.subr.bf16.mxu0 0
    %1229 = vmatpush1.bf16.msra.mxu0 0
    %1230 = vmatprep.subr.bf16.mxu0 0
    %1231 = vmatpush1.bf16.msra.mxu0 0
    %1232 = vmatprep.subr.bf16.mxu0 0
    %1233 = vmatpush1.bf16.msra.mxu0 0
    %1234 = vmatprep.subr.bf16.mxu0 0
    %1235 = vmatpush1.bf16.msra.mxu0 0
    %1236 = vmatprep.subr.bf16.mxu0 0
    %1237 = vmatpush1.bf16.msra.mxu0 0
    %1238 = vmatprep.subr.bf16.mxu0 0
    %1239 = vmatpush1.bf16.msra.mxu0 0
    %1240 = vmatprep.subr.bf16.mxu0 0
    %1241 = vmatpush1.bf16.msra.mxu0 0
    %1242 = vmatprep.subr.bf16.mxu0 0
    %1243 = vmatpush1.bf16.msra.mxu0 0
    %1244 = vmatprep.subr.bf16.mxu0 0
    %1245 = vmatpush1.bf16.msra.mxu0 0
    %1246 = vmatprep.subr.bf16.mxu0 0
    %1247 = vmatpush1.bf16.msra.mxu0 0
    %1248 = vmatprep.mubr.bf16.mxu0 0
    %1249 = vmatmul.mubr.bf16.gmra.mrb[0].mxu0 %v1214
    %v1250 = vpop.f32.mrb[0].mxu0
    %v1251 = vadd.f32 0.0, %v1250
    %v1252 = vpop.f32.mrb[0].mxu0
    %v1253 = vpop.f32.mrb[0].mxu0
    %v1254 = vpop.f32.mrb[0].mxu0
    %1255 = vdwg.mxu0
    %v1257 = vrot.slane %v1251, 2
    %v1259 = vadd.f32 %v125, %v1257
    %v1260 = vtanh.pop %v1259
    %v1261 = vmul.f32 %v1260, %v133
    %v1262 = vadd.f32 %v1261, %v134
    %v1264 = vrot.slane %v1125, 6
    %v1266 = vmul.f32 %v1262, %v1264
    %1268 = vrot.lane.b32.xlu0 %v1262, 64
    %v1269 = vpop.permute.xlu0 %1268
    %v1271 = vmul.f32 %v1262, %v1269
    %1273 = vrot.lane.b32.xlu0 %v1271, 32
    %v1274 = vpop.permute.xlu0 %1273
    %v1276 = vadd.f32 %v1266, %v1274
    %v1277 = vtanh.pop %v1276
    %1279 = vrot.lane.b32.xlu0 %v1277, 64
    %v1280 = vpop.permute.xlu0 %1279
    %v1282 = vmul.f32 %v1262, %v1280
    %1284 = vrot.lane.b32.xlu0 %v1282, 32
    %v1285 = vpop.permute.xlu0 %1284
    %v1288 = vrot.slane %v1207, 2
    %1289 = vrot.lane.b32.xlu0 %v1288, 64
    %v1290 = vpop.permute.xlu0 %1289
    %v1292 = vsel %vm147, %v1285, %v1290
    %v1293 = vpack.c.bf16 %v1292, %v1292
    %v1295 = vrot.slane %v1293, 3
    %v1297 = vsel %vm246, %v1295, 0
    %1299 = vmatprep.subr.bf16.mxu0 0
    %1300 = vmatpush1.bf16.msra.mxu0 %v238
    %1301 = vmatprep.subr.bf16.mxu0 0
    %1302 = vmatpush1.bf16.msra.mxu0 %v239
    %1303 = vmatprep.subr.bf16.mxu0 0
    %1304 = vmatpush1.bf16.msra.mxu0 %v240
    %1305 = vmatprep.subr.bf16.mxu0 0
    %1306 = vmatpush1.bf16.msra.mxu0 %v241
    %1307 = vmatprep.subr.bf16.mxu0 0
    %1308 = vmatpush1.bf16.msra.mxu0 0
    %1309 = vmatprep.subr.bf16.mxu0 0
    %1310 = vmatpush1.bf16.msra.mxu0 0
    %1311 = vmatprep.subr.bf16.mxu0 0
    %1312 = vmatpush1.bf16.msra.mxu0 0
    %1313 = vmatprep.subr.bf16.mxu0 0
    %1314 = vmatpush1.bf16.msra.mxu0 0
    %1315 = vmatprep.subr.bf16.mxu0 0
    %1316 = vmatpush1.bf16.msra.mxu0 0
    %1317 = vmatprep.subr.bf16.mxu0 0
    %1318 = vmatpush1.bf16.msra.mxu0 0
    %1319 = vmatprep.subr.bf16.mxu0 0
    %1320 = vmatpush1.bf16.msra.mxu0 0
    %1321 = vmatprep.subr.bf16.mxu0 0
    %1322 = vmatpush1.bf16.msra.mxu0 0
    %1323 = vmatprep.subr.bf16.mxu0 0
    %1324 = vmatpush1.bf16.msra.mxu0 0
    %1325 = vmatprep.subr.bf16.mxu0 0
    %1326 = vmatpush1.bf16.msra.mxu0 0
    %1327 = vmatprep.subr.bf16.mxu0 0
    %1328 = vmatpush1.bf16.msra.mxu0 0
    %1329 = vmatprep.subr.bf16.mxu0 0
    %1330 = vmatpush1.bf16.msra.mxu0 0
    %1331 = vmatprep.mubr.bf16.mxu0 0
    %1332 = vmatmul.mubr.bf16.gmra.mrb[0].mxu0 %v1297
    %v1333 = vpop.f32.mrb[0].mxu0
    %v1334 = vadd.f32 %v221, %v1333
    %v1335 = vpop.f32.mrb[0].mxu0
    %v1336 = vpop.f32.mrb[0].mxu0
    %v1337 = vpop.f32.mrb[0].mxu0
    %1338 = vdwg.mxu0
    %v1339 = vtanh.pop %v1334
    %v1340 = vmul.f32 %v1339, %v133
    %v1341 = vadd.f32 %v1340, %v134
    %v1342 = vmul.f32 %v1341, %v1201
    %1344 = vrot.lane.b32.xlu0 %v1341, 64
    %v1345 = vpop.permute.xlu0 %1344
    %v1347 = vmul.f32 %v1341, %v1345
    %1349 = vrot.lane.b32.xlu0 %v1347, 32
    %v1350 = vpop.permute.xlu0 %1349
    %v1352 = vadd.f32 %v1342, %v1350
    %v1353 = vtanh.pop %v1352
    %1355 = vrot.lane.b32.xlu0 %v1353, 64
    %v1356 = vpop.permute.xlu0 %1355
    %v1358 = vmul.f32 %v1341, %v1356
    %v1359 = vpack.c.bf16 %v1358, %v1358
    %v1360 = vlaneseq
    %v1361 = vshrl.u32 %v1360, 7
    %v1362 = vsub.s32 0, %v1361
    %v1363 = vrot.slane %v66, %v1362
    %1365 = vrot.lane.b32.xlu0 %v1359, 32
    %v1366 = vpop.permute.xlu0 %1365
    %v1371 = vunpack.c.l.b16 %v48
    %v1372 = vunpack.c.l.b16 %v49
    %v1373 = vunpack.c.l.b16 %v50
    %v1374 = vunpack.c.l.b16 %v51
    %v1375 = vpack.c.b16 %v1372, %v1371
    %v1376 = vpack.c.b16 %v1374, %v1373
    %v1380 = vsel %vm147, %v1366, 0
    %1382 = vmatprep.subr.bf16.mxu0 0
    %1383 = vmatpush1.bf16.msra.mxu0 %v1375
    %1384 = vmatprep.subr.bf16.mxu0 0
    %1385 = vmatpush1.bf16.msra.mxu0 %v1376
    %1386 = vmatprep.subr.bf16.mxu0 0
    %1387 = vmatpush1.bf16.msra.mxu0 0
    %1388 = vmatprep.subr.bf16.mxu0 0
    %1389 = vmatpush1.bf16.msra.mxu0 0
    %1390 = vmatprep.subr.bf16.mxu0 0
    %1391 = vmatpush1.bf16.msra.mxu0 0
    %1392 = vmatprep.subr.bf16.mxu0 0
    %1393 = vmatpush1.bf16.msra.mxu0 0
    %1394 = vmatprep.subr.bf16.mxu0 0
    %1395 = vmatpush1.bf16.msra.mxu0 0
    %1396 = vmatprep.subr.bf16.mxu0 0
    %1397 = vmatpush1.bf16.msra.mxu0 0
    %1398 = vmatprep.subr.bf16.mxu0 0
    %1399 = vmatpush1.bf16.msra.mxu0 0
    %1400 = vmatprep.subr.bf16.mxu0 0
    %1401 = vmatpush1.bf16.msra.mxu0 0
    %1402 = vmatprep.subr.bf16.mxu0 0
    %1403 = vmatpush1.bf16.msra.mxu0 0
    %1404 = vmatprep.subr.bf16.mxu0 0
    %1405 = vmatpush1.bf16.msra.mxu0 0
    %1406 = vmatprep.subr.bf16.mxu0 0
    %1407 = vmatpush1.bf16.msra.mxu0 0
    %1408 = vmatprep.subr.bf16.mxu0 0
    %1409 = vmatpush1.bf16.msra.mxu0 0
    %1410 = vmatprep.subr.bf16.mxu0 0
    %1411 = vmatpush1.bf16.msra.mxu0 0
    %1412 = vmatprep.subr.bf16.mxu0 0
    %1413 = vmatpush1.bf16.msra.mxu0 0
    %1414 = vmatprep.mubr.bf16.mxu0 0
    %1415 = vmatmul.mubr.bf16.gmra.mrb[0].mxu0 %v1380
    %v1416 = vpop.f32.mrb[0].mxu0
    %v1417 = vadd.f32 %v1363, %v1416
    %v1418 = vpop.f32.mrb[0].mxu0
    %v1419 = vpop.f32.mrb[0].mxu0
    %v1420 = vpop.f32.mrb[0].mxu0
    %1421 = vdwg.mxu0
    %1422 = vst [vmem:[%s4] sm:$0x3] %v1417
    %v1423 = vmul.f32 %v1417, 0.5
    %v1424 = vmul.f32 %v1423, 1.442695
    %v1425 = vpow.pop %v1424
    %v1426 = vld [vmem:[%s1] sm:$0x3]
    %1428 = vrot.lane.b32.xlu0 %v1426, 8
    %v1429 = vpop.permute.xlu0 %1428
    %v1431 = vmul.f32 %v1425, %v1429
    %1433 = vrot.lane.b32.xlu0 %v1431, 120
    %v1434 = vpop.permute.xlu0 %1433
    %v1436 = vadd.f32 %v1417, %v1434
    %vm1437 = vcmask 64512
    %v1438 = vsel %vm1437, %v1436, 0.0
    %v1439 = vpack.c.bf16 %v1438, %v1438
    %v1440 = vlaneseq
    %v1441 = vshrl.u32 %v1440, 7
    %v1442 = vsub.s32 0, %v1441
    %v1443 = vrot.slane %v67, %v1442
    %v1446 = vunpack.c.l.b16 %v52
    %v1447 = vunpack.c.l.b16 %v53
    %v1448 = vpack.c.b16 %v1447, %v1446
    %v1451 = vsel %vm83, %v1439, 0
    %1453 = vmatprep.subr.bf16.mxu0 0
    %1454 = vmatpush1.bf16.msra.mxu0 %v1448
    %1455 = vmatprep.subr.bf16.mxu0 0
    %1456 = vmatpush1.bf16.msra.mxu0 0
    %1457 = vmatprep.subr.bf16.mxu0 0
    %1458 = vmatpush1.bf16.msra.mxu0 0
    %1459 = vmatprep.subr.bf16.mxu0 0
    %1460 = vmatpush1.bf16.msra.mxu0 0
    %1461 = vmatprep.subr.bf16.mxu0 0
    %1462 = vmatpush1.bf16.msra.mxu0 0
    %1463 = vmatprep.subr.bf16.mxu0 0
    %1464 = vmatpush1.bf16.msra.mxu0 0
    %1465 = vmatprep.subr.bf16.mxu0 0
    %1466 = vmatpush1.bf16.msra.mxu0 0
    %1467 = vmatprep.subr.bf16.mxu0 0
    %1468 = vmatpush1.bf16.msra.mxu0 0
    %1469 = vmatprep.subr.bf16.mxu0 0
    %1470 = vmatpush1.bf16.msra.mxu0 0
    %1471 = vmatprep.subr.bf16.mxu0 0
    %1472 = vmatpush1.bf16.msra.mxu0 0
    %1473 = vmatprep.subr.bf16.mxu0 0
    %1474 = vmatpush1.bf16.msra.mxu0 0
    %1475 = vmatprep.subr.bf16.mxu0 0
    %1476 = vmatpush1.bf16.msra.mxu0 0
    %1477 = vmatprep.subr.bf16.mxu0 0
    %1478 = vmatpush1.bf16.msra.mxu0 0
    %1479 = vmatprep.subr.bf16.mxu0 0
    %1480 = vmatpush1.bf16.msra.mxu0 0
    %1481 = vmatprep.subr.bf16.mxu0 0
    %1482 = vmatpush1.bf16.msra.mxu0 0
    %1483 = vmatprep.subr.bf16.mxu0 0
    %1484 = vmatpush1.bf16.msra.mxu0 0
    %1485 = vmatprep.mubr.bf16.mxu0 0
    %1486 = vmatmul.mubr.bf16.gmra.mrb[0].mxu0 %v1451
    %v1487 = vpop.f32.mrb[0].mxu0
    %v1488 = vadd.f32 %v1443, %v1487
    %v1489 = vpop.f32.mrb[0].mxu0
    %v1490 = vpop.f32.mrb[0].mxu0
    %v1491 = vpop.f32.mrb[0].mxu0
    %1492 = vdwg.mxu0
    %v1493 = vlaneseq
    %v1494 = vshrl.u32 %v1493, 7
    %v1495 = vsub.s32 0, %v1494
    %v1496 = vrot.slane %v68, %v1495
    %v1499 = vunpack.c.l.b16 %v54
    %v1500 = vunpack.c.l.b16 %v55
    %v1501 = vpack.c.b16 %v1500, %v1499
    %1503 = vmatprep.subr.bf16.mxu0 0
    %1504 = vmatpush1.bf16.msra.mxu0 %v1501
    %1505 = vmatprep.subr.bf16.mxu0 0
    %1506 = vmatpush1.bf16.msra.mxu0 0
    %1507 = vmatprep.subr.bf16.mxu0 0
    %1508 = vmatpush1.bf16.msra.mxu0 0
    %1509 = vmatprep.subr.bf16.mxu0 0
    %1510 = vmatpush1.bf16.msra.mxu0 0
    %1511 = vmatprep.subr.bf16.mxu0 0
    %1512 = vmatpush1.bf16.msra.mxu0 0
    %1513 = vmatprep.subr.bf16.mxu0 0
    %1514 = vmatpush1.bf16.msra.mxu0 0
    %1515 = vmatprep.subr.bf16.mxu0 0
    %1516 = vmatpush1.bf16.msra.mxu0 0
    %1517 = vmatprep.subr.bf16.mxu0 0
    %1518 = vmatpush1.bf16.msra.mxu0 0
    %1519 = vmatprep.subr.bf16.mxu0 0
    %1520 = vmatpush1.bf16.msra.mxu0 0
    %1521 = vmatprep.subr.bf16.mxu0 0
    %1522 = vmatpush1.bf16.msra.mxu0 0
    %1523 = vmatprep.subr.bf16.mxu0 0
    %1524 = vmatpush1.bf16.msra.mxu0 0
    %1525 = vmatprep.subr.bf16.mxu0 0
    %1526 = vmatpush1.bf16.msra.mxu0 0
    %1527 = vmatprep.subr.bf16.mxu0 0
    %1528 = vmatpush1.bf16.msra.mxu0 0
    %1529 = vmatprep.subr.bf16.mxu0 0
    %1530 = vmatpush1.bf16.msra.mxu0 0
    %1531 = vmatprep.subr.bf16.mxu0 0
    %1532 = vmatpush1.bf16.msra.mxu0 0
    %1533 = vmatprep.subr.bf16.mxu0 0
    %1534 = vmatpush1.bf16.msra.mxu0 0
    %1535 = vmatprep.mubr.bf16.mxu0 0
    %1536 = vmatmul.mubr.bf16.gmra.mrb[0].mxu0 %v85
    %v1537 = vpop.f32.mrb[0].mxu0
    %v1538 = vadd.f32 %v1496, %v1537
    %v1539 = vpop.f32.mrb[0].mxu0
    %v1540 = vpop.f32.mrb[0].mxu0
    %v1541 = vadd.f32 %v1496, %v1540
    %v1542 = vpop.f32.mrb[0].mxu0
    %1543 = vdwg.mxu0
    %v1548 = vunpack.c.l.b16 %v56
    %v1549 = vunpack.c.l.b16 %v57
    %v1550 = vunpack.c.l.b16 %v58
    %v1551 = vunpack.c.l.b16 %v59
    %v1552 = vpack.c.b16 %v1549, %v1548
    %v1553 = vpack.c.b16 %v1551, %v1550
    %1556 = vmatprep.subr.bf16.mxu0 0
    %1557 = vmatpush1.bf16.msra.mxu0 %v1552
    %1558 = vmatprep.subr.bf16.mxu0 0
    %1559 = vmatpush1.bf16.msra.mxu0 %v1553
    %1560 = vmatprep.subr.bf16.mxu0 0
    %1561 = vmatpush1.bf16.msra.mxu0 0
    %1562 = vmatprep.subr.bf16.mxu0 0
    %1563 = vmatpush1.bf16.msra.mxu0 0
    %1564 = vmatprep.subr.bf16.mxu0 0
    %1565 = vmatpush1.bf16.msra.mxu0 0
    %1566 = vmatprep.subr.bf16.mxu0 0
    %1567 = vmatpush1.bf16.msra.mxu0 0
    %1568 = vmatprep.subr.bf16.mxu0 0
    %1569 = vmatpush1.bf16.msra.mxu0 0
    %1570 = vmatprep.subr.bf16.mxu0 0
    %1571 = vmatpush1.bf16.msra.mxu0 0
    %1572 = vmatprep.subr.bf16.mxu0 0
    %1573 = vmatpush1.bf16.msra.mxu0 0
    %1574 = vmatprep.subr.bf16.mxu0 0
    %1575 = vmatpush1.bf16.msra.mxu0 0
    %1576 = vmatprep.subr.bf16.mxu0 0
    %1577 = vmatpush1.bf16.msra.mxu0 0
    %1578 = vmatprep.subr.bf16.mxu0 0
    %1579 = vmatpush1.bf16.msra.mxu0 0
    %1580 = vmatprep.subr.bf16.mxu0 0
    %1581 = vmatpush1.bf16.msra.mxu0 0
    %1582 = vmatprep.subr.bf16.mxu0 0
    %1583 = vmatpush1.bf16.msra.mxu0 0
    %1584 = vmatprep.subr.bf16.mxu0 0
    %1585 = vmatpush1.bf16.msra.mxu0 0
    %1586 = vmatprep.subr.bf16.mxu0 0
    %1587 = vmatpush1.bf16.msra.mxu0 0
    %1588 = vmatprep.mubr.bf16.mxu0 0
    %1589 = vmatmul.mubr.bf16.gmra.mrb[0].mxu0 %v149
    %v1590 = vpop.f32.mrb[0].mxu0
    %v1591 = vadd.f32 0.0, %v1590
    %v1592 = vpop.f32.mrb[0].mxu0
    %v1593 = vpop.f32.mrb[0].mxu0
    %v1594 = vpop.f32.mrb[0].mxu0
    %1595 = vdwg.mxu0
    %v1596 = vadd.f32 %v1488, %v1591
    %v1597 = vtanh.pop %v1596
    %v1598 = vmul.f32 %v1597, %v133
    %v1599 = vadd.f32 %v1598, %v134
    %v1600 = vmul.f32 %v1599, 0.0
    %1602 = vrot.lane.b32.xlu0 %v1599, 64
    %v1603 = vpop.permute.xlu0 %1602
    %v1605 = vmul.f32 %v1599, %v1603
    %1607 = vrot.lane.b32.xlu0 %v1605, 32
    %v1608 = vpop.permute.xlu0 %1607
    %v1610 = vadd.f32 %v1600, %v1608
    %v1611 = vtanh.pop %v1610
    %1613 = vrot.lane.b32.xlu0 %v1611, 64
    %v1614 = vpop.permute.xlu0 %1613
    %v1616 = vmul.f32 %v1599, %v1614
    %1618 = vrot.lane.b32.xlu0 %v1616, 32
    %v1619 = vpop.permute.xlu0 %1618
    %vm1621 = vcmask 254976
    %1622 = vst.msk [vmem:[#allocation2] sm:$0x3] %vm1621, %v1619
    %v1623 = vpack.c.bf16 %v1616, %v1616
    %1625 = vrot.lane.b32.xlu0 %v1623, 32
    %v1626 = vpop.permute.xlu0 %1625
    %v1628 = vsel %vm147, %v1626, 0
    %1630 = vmatprep.subr.bf16.mxu0 0
    %1631 = vmatpush1.bf16.msra.mxu0 %v1552
    %1632 = vmatprep.subr.bf16.mxu0 0
    %1633 = vmatpush1.bf16.msra.mxu0 %v1553
    %1634 = vmatprep.subr.bf16.mxu0 0
    %1635 = vmatpush1.bf16.msra.mxu0 0
    %1636 = vmatprep.subr.bf16.mxu0 0
    %1637 = vmatpush1.bf16.msra.mxu0 0
    %1638 = vmatprep.subr.bf16.mxu0 0
    %1639 = vmatpush1.bf16.msra.mxu0 0
    %1640 = vmatprep.subr.bf16.mxu0 0
    %1641 = vmatpush1.bf16.msra.mxu0 0
    %1642 = vmatprep.subr.bf16.mxu0 0
    %1643 = vmatpush1.bf16.msra.mxu0 0
    %1644 = vmatprep.subr.bf16.mxu0 0
    %1645 = vmatpush1.bf16.msra.mxu0 0
    %1646 = vmatprep.subr.bf16.mxu0 0
    %1647 = vmatpush1.bf16.msra.mxu0 0
    %1648 = vmatprep.subr.bf16.mxu0 0
    %1649 = vmatpush1.bf16.msra.mxu0 0
    %1650 = vmatprep.subr.bf16.mxu0 0
    %1651 = vmatpush1.bf16.msra.mxu0 0
    %1652 = vmatprep.subr.bf16.mxu0 0
    %1653 = vmatpush1.bf16.msra.mxu0 0
    %1654 = vmatprep.subr.bf16.mxu0 0
    %1655 = vmatpush1.bf16.msra.mxu0 0
    %1656 = vmatprep.subr.bf16.mxu0 0
    %1657 = vmatpush1.bf16.msra.mxu0 0
    %1658 = vmatprep.subr.bf16.mxu0 0
    %1659 = vmatpush1.bf16.msra.mxu0 0
    %1660 = vmatprep.subr.bf16.mxu0 0
    %1661 = vmatpush1.bf16.msra.mxu0 0
    %1662 = vmatprep.mubr.bf16.mxu0 0
    %1663 = vmatmul.mubr.bf16.gmra.mrb[0].mxu0 %v1628
    %v1664 = vpop.f32.mrb[0].mxu0
    %v1665 = vadd.f32 0.0, %v1664
    %v1666 = vpop.f32.mrb[0].mxu0
    %v1667 = vpop.f32.mrb[0].mxu0
    %v1668 = vpop.f32.mrb[0].mxu0
    %1669 = vdwg.mxu0
    %v1670 = vadd.f32 %v1538, %v1665
    %v1671 = vtanh.pop %v1670
    %v1672 = vmul.f32 %v1671, %v133
    %v1673 = vadd.f32 %v1672, %v134
    %v1674 = vmul.f32 %v1673, %v1610
    %1676 = vrot.lane.b32.xlu0 %v1673, 64
    %v1677 = vpop.permute.xlu0 %1676
    %v1679 = vmul.f32 %v1673, %v1677
    %1681 = vrot.lane.b32.xlu0 %v1679, 32
    %v1682 = vpop.permute.xlu0 %1681
    %v1684 = vadd.f32 %v1674, %v1682
    %v1685 = vtanh.pop %v1684
    %1687 = vrot.lane.b32.xlu0 %v1685, 64
    %v1688 = vpop.permute.xlu0 %1687
    %v1690 = vmul.f32 %v1673, %v1688
    %1692 = vrot.lane.b32.xlu0 %v1690, 32
    %v1693 = vpop.permute.xlu0 %1692
    %1695 = vst.msk [vmem:[#allocation2 + $0x2] sm:$0x3] %vm1621, %v1693
    %v1696 = vpack.c.bf16 %v1690, %v1690
    %1698 = vrot.lane.b32.xlu0 %v1696, 32
    %v1699 = vpop.permute.xlu0 %1698
    %v1701 = vsel %vm147, %v1699, 0
    %1703 = vmatprep.subr.bf16.mxu0 0
    %1704 = vmatpush1.bf16.msra.mxu0 %v1552
    %1705 = vmatprep.subr.bf16.mxu0 0
    %1706 = vmatpush1.bf16.msra.mxu0 %v1553
    %1707 = vmatprep.subr.bf16.mxu0 0
    %1708 = vmatpush1.bf16.msra.mxu0 0
    %1709 = vmatprep.subr.bf16.mxu0 0
    %1710 = vmatpush1.bf16.msra.mxu0 0
    %1711 = vmatprep.subr.bf16.mxu0 0
    %1712 = vmatpush1.bf16.msra.mxu0 0
    %1713 = vmatprep.subr.bf16.mxu0 0
    %1714 = vmatpush1.bf16.msra.mxu0 0
    %1715 = vmatprep.subr.bf16.mxu0 0
    %1716 = vmatpush1.bf16.msra.mxu0 0
    %1717 = vmatprep.subr.bf16.mxu0 0
    %1718 = vmatpush1.bf16.msra.mxu0 0
    %1719 = vmatprep.subr.bf16.mxu0 0
    %1720 = vmatpush1.bf16.msra.mxu0 0
    %1721 = vmatprep.subr.bf16.mxu0 0
    %1722 = vmatpush1.bf16.msra.mxu0 0
    %1723 = vmatprep.subr.bf16.mxu0 0
    %1724 = vmatpush1.bf16.msra.mxu0 0
    %1725 = vmatprep.subr.bf16.mxu0 0
    %1726 = vmatpush1.bf16.msra.mxu0 0
    %1727 = vmatprep.subr.bf16.mxu0 0
    %1728 = vmatpush1.bf16.msra.mxu0 0
    %1729 = vmatprep.subr.bf16.mxu0 0
    %1730 = vmatpush1.bf16.msra.mxu0 0
    %1731 = vmatprep.subr.bf16.mxu0 0
    %1732 = vmatpush1.bf16.msra.mxu0 0
    %1733 = vmatprep.subr.bf16.mxu0 0
    %1734 = vmatpush1.bf16.msra.mxu0 0
    %1735 = vmatprep.mubr.bf16.mxu0 0
    %1736 = vmatmul.mubr.bf16.gmra.mrb[0].mxu0 %v1701
    %v1737 = vpop.f32.mrb[0].mxu0
    %v1738 = vadd.f32 0.0, %v1737
    %v1739 = vpop.f32.mrb[0].mxu0
    %v1740 = vpop.f32.mrb[0].mxu0
    %v1741 = vpop.f32.mrb[0].mxu0
    %1742 = vdwg.mxu0
    %v1744 = vrot.slane %v1738, 6
    %v1746 = vadd.f32 %v1538, %v1744
    %v1747 = vtanh.pop %v1746
    %v1748 = vmul.f32 %v1747, %v133
    %v1749 = vadd.f32 %v1748, %v134
    %v1751 = vrot.slane %v1684, 6
    %v1753 = vmul.f32 %v1749, %v1751
    %1755 = vrot.lane.b32.xlu0 %v1749, 64
    %v1756 = vpop.permute.xlu0 %1755
    %v1758 = vmul.f32 %v1749, %v1756
    %1760 = vrot.lane.b32.xlu0 %v1758, 32
    %v1761 = vpop.permute.xlu0 %1760
    %v1763 = vadd.f32 %v1753, %v1761
    %v1764 = vtanh.pop %v1763
    %1766 = vrot.lane.b32.xlu0 %v1764, 64
    %v1767 = vpop.permute.xlu0 %1766
    %v1769 = vmul.f32 %v1749, %v1767
    %1771 = vrot.lane.b32.xlu0 %v1769, 32
    %v1772 = vpop.permute.xlu0 %1771
    %vm1774 = vcmask 257026
    %1775 = vst.msk [vmem:[#allocation2 + $0x2] sm:$0xc] %vm1774, %v1772
    %v1776 = vpack.c.bf16 %v1769, %v1769
    %v1778 = vrot.slane %v1776, 1
    %1779 = vrot.lane.b32.xlu0 %v1778, 32
    %v1780 = vpop.permute.xlu0 %1779
    %v1782 = vsel %vm147, %v1780, 0
    %1784 = vmatprep.subr.bf16.mxu0 0
    %1785 = vmatpush1.bf16.msra.mxu0 %v1552
    %1786 = vmatprep.subr.bf16.mxu0 0
    %1787 = vmatpush1.bf16.msra.mxu0 %v1553
    %1788 = vmatprep.subr.bf16.mxu0 0
    %1789 = vmatpush1.bf16.msra.mxu0 0
    %1790 = vmatprep.subr.bf16.mxu0 0
    %1791 = vmatpush1.bf16.msra.mxu0 0
    %1792 = vmatprep.subr.bf16.mxu0 0
    %1793 = vmatpush1.bf16.msra.mxu0 0
    %1794 = vmatprep.subr.bf16.mxu0 0
    %1795 = vmatpush1.bf16.msra.mxu0 0
    %1796 = vmatprep.subr.bf16.mxu0 0
    %1797 = vmatpush1.bf16.msra.mxu0 0
    %1798 = vmatprep.subr.bf16.mxu0 0
    %1799 = vmatpush1.bf16.msra.mxu0 0
    %1800 = vmatprep.subr.bf16.mxu0 0
    %1801 = vmatpush1.bf16.msra.mxu0 0
    %1802 = vmatprep.subr.bf16.mxu0 0
    %1803 = vmatpush1.bf16.msra.mxu0 0
    %1804 = vmatprep.subr.bf16.mxu0 0
    %1805 = vmatpush1.bf16.msra.mxu0 0
    %1806 = vmatprep.subr.bf16.mxu0 0
    %1807 = vmatpush1.bf16.msra.mxu0 0
    %1808 = vmatprep.subr.bf16.mxu0 0
    %1809 = vmatpush1.bf16.msra.mxu0 0
    %1810 = vmatprep.subr.bf16.mxu0 0
    %1811 = vmatpush1.bf16.msra.mxu0 0
    %1812 = vmatprep.subr.bf16.mxu0 0
    %1813 = vmatpush1.bf16.msra.mxu0 0
    %1814 = vmatprep.subr.bf16.mxu0 0
    %1815 = vmatpush1.bf16.msra.mxu0 0
    %1816 = vmatprep.mubr.bf16.mxu0 0
    %1817 = vmatmul.mubr.bf16.gmra.mrb[0].mxu0 %v1782
    %v1818 = vpop.f32.mrb[0].mxu0
    %v1819 = vadd.f32 0.0, %v1818
    %v1820 = vpop.f32.mrb[0].mxu0
    %v1821 = vpop.f32.mrb[0].mxu0
    %v1822 = vpop.f32.mrb[0].mxu0
    %1823 = vdwg.mxu0
    %v1825 = vrot.slane %v1819, 4
    %v1827 = vadd.f32 %v1538, %v1825
    %v1828 = vtanh.pop %v1827
    %v1829 = vmul.f32 %v1828, %v133
    %v1830 = vadd.f32 %v1829, %v134
    %v1832 = vrot.slane %v1763, 6
    %v1834 = vmul.f32 %v1830, %v1832
    %1836 = vrot.lane.b32.xlu0 %v1830, 64
    %v1837 = vpop.permute.xlu0 %1836
    %v1839 = vmul.f32 %v1830, %v1837
    %1841 = vrot.lane.b32.xlu0 %v1839, 32
    %v1842 = vpop.permute.xlu0 %1841
    %v1844 = vadd.f32 %v1834, %v1842
    %v1845 = vtanh.pop %v1844
    %1847 = vrot.lane.b32.xlu0 %v1845, 64
    %v1848 = vpop.permute.xlu0 %1847
    %v1850 = vmul.f32 %v1830, %v1848
    %1852 = vrot.lane.b32.xlu0 %v1850, 32
    %v1853 = vpop.permute.xlu0 %1852
    %vm1855 = vcmask 259076
    %1856 = vst.msk [vmem:[#allocation2 + $0x2] sm:$0x30] %vm1855, %v1853
    %v1857 = vpack.c.bf16 %v1850, %v1850
    %v1859 = vrot.slane %v1857, 2
    %1860 = vrot.lane.b32.xlu0 %v1859, 32
    %v1861 = vpop.permute.xlu0 %1860
    %v1863 = vsel %vm147, %v1861, 0
    %1865 = vmatprep.subr.bf16.mxu0 0
    %1866 = vmatpush1.bf16.msra.mxu0 %v1552
    %1867 = vmatprep.subr.bf16.mxu0 0
    %1868 = vmatpush1.bf16.msra.mxu0 %v1553
    %1869 = vmatprep.subr.bf16.mxu0 0
    %1870 = vmatpush1.bf16.msra.mxu0 0
    %1871 = vmatprep.subr.bf16.mxu0 0
    %1872 = vmatpush1.bf16.msra.mxu0 0
    %1873 = vmatprep.subr.bf16.mxu0 0
    %1874 = vmatpush1.bf16.msra.mxu0 0
    %1875 = vmatprep.subr.bf16.mxu0 0
    %1876 = vmatpush1.bf16.msra.mxu0 0
    %1877 = vmatprep.subr.bf16.mxu0 0
    %1878 = vmatpush1.bf16.msra.mxu0 0
    %1879 = vmatprep.subr.bf16.mxu0 0
    %1880 = vmatpush1.bf16.msra.mxu0 0
    %1881 = vmatprep.subr.bf16.mxu0 0
    %1882 = vmatpush1.bf16.msra.mxu0 0
    %1883 = vmatprep.subr.bf16.mxu0 0
    %1884 = vmatpush1.bf16.msra.mxu0 0
    %1885 = vmatprep.subr.bf16.mxu0 0
    %1886 = vmatpush1.bf16.msra.mxu0 0
    %1887 = vmatprep.subr.bf16.mxu0 0
    %1888 = vmatpush1.bf16.msra.mxu0 0
    %1889 = vmatprep.subr.bf16.mxu0 0
    %1890 = vmatpush1.bf16.msra.mxu0 0
    %1891 = vmatprep.subr.bf16.mxu0 0
    %1892 = vmatpush1.bf16.msra.mxu0 0
    %1893 = vmatprep.subr.bf16.mxu0 0
    %1894 = vmatpush1.bf16.msra.mxu0 0
    %1895 = vmatprep.subr.bf16.mxu0 0
    %1896 = vmatpush1.bf16.msra.mxu0 0
    %1897 = vmatprep.mubr.bf16.mxu0 0
    %1898 = vmatmul.mubr.bf16.gmra.mrb[0].mxu0 %v1863
    %v1899 = vpop.f32.mrb[0].mxu0
    %v1900 = vadd.f32 0.0, %v1899
    %v1901 = vpop.f32.mrb[0].mxu0
    %v1902 = vpop.f32.mrb[0].mxu0
    %v1903 = vpop.f32.mrb[0].mxu0
    %1904 = vdwg.mxu0
    %v1906 = vrot.slane %v1900, 2
    %v1908 = vadd.f32 %v1538, %v1906
    %v1909 = vtanh.pop %v1908
    %v1910 = vmul.f32 %v1909, %v133
    %v1911 = vadd.f32 %v1910, %v134
    %v1913 = vrot.slane %v1844, 6
    %v1915 = vmul.f32 %v1911, %v1913
    %1917 = vrot.lane.b32.xlu0 %v1911, 64
    %v1918 = vpop.permute.xlu0 %1917
    %v1920 = vmul.f32 %v1911, %v1918
    %1922 = vrot.lane.b32.xlu0 %v1920, 32
    %v1923 = vpop.permute.xlu0 %1922
    %v1925 = vadd.f32 %v1915, %v1923
    %v1926 = vtanh.pop %v1925
    %1928 = vrot.lane.b32.xlu0 %v1926, 64
    %v1929 = vpop.permute.xlu0 %1928
    %v1931 = vmul.f32 %v1911, %v1929
    %1933 = vrot.lane.b32.xlu0 %v1931, 32
    %v1934 = vpop.permute.xlu0 %1933
    %vm1936 = vcmask 261126
    %1937 = vst.msk [vmem:[#allocation2 + $0x2] sm:$0xc0] %vm1936, %v1934
    %v1938 = vpack.c.bf16 %v1931, %v1931
    %v1940 = vrot.slane %v1938, 3
    %1941 = vrot.lane.b32.xlu0 %v1940, 32
    %v1942 = vpop.permute.xlu0 %1941
    %v1944 = vsel %vm147, %v1942, 0
    %1946 = vmatprep.subr.bf16.mxu0 0
    %1947 = vmatpush1.bf16.msra.mxu0 %v1552
    %1948 = vmatprep.subr.bf16.mxu0 0
    %1949 = vmatpush1.bf16.msra.mxu0 %v1553
    %1950 = vmatprep.subr.bf16.mxu0 0
    %1951 = vmatpush1.bf16.msra.mxu0 0
    %1952 = vmatprep.subr.bf16.mxu0 0
    %1953 = vmatpush1.bf16.msra.mxu0 0
    %1954 = vmatprep.subr.bf16.mxu0 0
    %1955 = vmatpush1.bf16.msra.mxu0 0
    %1956 = vmatprep.subr.bf16.mxu0 0
    %1957 = vmatpush1.bf16.msra.mxu0 0
    %1958 = vmatprep.subr.bf16.mxu0 0
    %1959 = vmatpush1.bf16.msra.mxu0 0
    %1960 = vmatprep.subr.bf16.mxu0 0
    %1961 = vmatpush1.bf16.msra.mxu0 0
    %1962 = vmatprep.subr.bf16.mxu0 0
    %1963 = vmatpush1.bf16.msra.mxu0 0
    %1964 = vmatprep.subr.bf16.mxu0 0
    %1965 = vmatpush1.bf16.msra.mxu0 0
    %1966 = vmatprep.subr.bf16.mxu0 0
    %1967 = vmatpush1.bf16.msra.mxu0 0
    %1968 = vmatprep.subr.bf16.mxu0 0
    %1969 = vmatpush1.bf16.msra.mxu0 0
    %1970 = vmatprep.subr.bf16.mxu0 0
    %1971 = vmatpush1.bf16.msra.mxu0 0
    %1972 = vmatprep.subr.bf16.mxu0 0
    %1973 = vmatpush1.bf16.msra.mxu0 0
    %1974 = vmatprep.subr.bf16.mxu0 0
    %1975 = vmatpush1.bf16.msra.mxu0 0
    %1976 = vmatprep.subr.bf16.mxu0 0
    %1977 = vmatpush1.bf16.msra.mxu0 0
    %1978 = vmatprep.mubr.bf16.mxu0 0
    %1979 = vmatmul.mubr.bf16.gmra.mrb[0].mxu0 %v1944
    %v1980 = vpop.f32.mrb[0].mxu0
    %v1981 = vadd.f32 0.0, %v1980
    %v1982 = vpop.f32.mrb[0].mxu0
    %v1983 = vpop.f32.mrb[0].mxu0
    %v1984 = vpop.f32.mrb[0].mxu0
    %1985 = vdwg.mxu0
    %v1986 = vadd.f32 %v1541, %v1981
    %v1987 = vtanh.pop %v1986
    %v1988 = vmul.f32 %v1987, %v133
    %v1989 = vadd.f32 %v1988, %v134
    %v1991 = vrot.slane %v1925, 6
    %v1993 = vmul.f32 %v1989, %v1991
    %1995 = vrot.lane.b32.xlu0 %v1989, 64
    %v1996 = vpop.permute.xlu0 %1995
    %v1998 = vmul.f32 %v1989, %v1996
    %2000 = vrot.lane.b32.xlu0 %v1998, 32
    %v2001 = vpop.permute.xlu0 %2000
    %v2003 = vadd.f32 %v1993, %v2001
    %v2004 = vtanh.pop %v2003
    %2006 = vrot.lane.b32.xlu0 %v2004, 64
    %v2007 = vpop.permute.xlu0 %2006
    %v2009 = vmul.f32 %v1989, %v2007
    %2011 = vrot.lane.b32.xlu0 %v2009, 32
    %v2012 = vpop.permute.xlu0 %2011
    %2014 = vst.msk [vmem:[#allocation2 + $0xa] sm:$0x3] %vm1621, %v2012
    %v2015 = vpack.c.bf16 %v2009, %v2009
    %2017 = vrot.lane.b32.xlu0 %v2015, 32
    %v2018 = vpop.permute.xlu0 %2017
    %v2020 = vsel %vm147, %v2018, 0
    %2022 = vmatprep.subr.bf16.mxu0 0
    %2023 = vmatpush1.bf16.msra.mxu0 %v1552
    %2024 = vmatprep.subr.bf16.mxu0 0
    %2025 = vmatpush1.bf16.msra.mxu0 %v1553
    %2026 = vmatprep.subr.bf16.mxu0 0
    %2027 = vmatpush1.bf16.msra.mxu0 0
    %2028 = vmatprep.subr.bf16.mxu0 0
    %2029 = vmatpush1.bf16.msra.mxu0 0
    %2030 = vmatprep.subr.bf16.mxu0 0
    %2031 = vmatpush1.bf16.msra.mxu0 0
    %2032 = vmatprep.subr.bf16.mxu0 0
    %2033 = vmatpush1.bf16.msra.mxu0 0
    %2034 = vmatprep.subr.bf16.mxu0 0
    %2035 = vmatpush1.bf16.msra.mxu0 0
    %2036 = vmatprep.subr.bf16.mxu0 0
    %2037 = vmatpush1.bf16.msra.mxu0 0
    %2038 = vmatprep.subr.bf16.mxu0 0
    %2039 = vmatpush1.bf16.msra.mxu0 0
    %2040 = vmatprep.subr.bf16.mxu0 0
    %2041 = vmatpush1.bf16.msra.mxu0 0
    %2042 = vmatprep.subr.bf16.mxu0 0
    %2043 = vmatpush1.bf16.msra.mxu0 0
    %2044 = vmatprep.subr.bf16.mxu0 0
    %2045 = vmatpush1.bf16.msra.mxu0 0
    %2046 = vmatprep.subr.bf16.mxu0 0
    %2047 = vmatpush1.bf16.msra.mxu0 0
    %2048 = vmatprep.subr.bf16.mxu0 0
    %2049 = vmatpush1.bf16.msra.mxu0 0
    %2050 = vmatprep.subr.bf16.mxu0 0
    %2051 = vmatpush1.bf16.msra.mxu0 0
    %2052 = vmatprep.subr.bf16.mxu0 0
    %2053 = vmatpush1.bf16.msra.mxu0 0
    %2054 = vmatprep.mubr.bf16.mxu0 0
    %2055 = vmatmul.mubr.bf16.gmra.mrb[0].mxu0 %v2020
    %v2056 = vpop.f32.mrb[0].mxu0
    %v2057 = vadd.f32 0.0, %v2056
    %v2058 = vpop.f32.mrb[0].mxu0
    %v2059 = vpop.f32.mrb[0].mxu0
    %v2060 = vpop.f32.mrb[0].mxu0
    %2061 = vdwg.mxu0
    %v2063 = vrot.slane %v2057, 6
    %v2065 = vadd.f32 %v1541, %v2063
    %v2066 = vtanh.pop %v2065
    %v2067 = vmul.f32 %v2066, %v133
    %v2068 = vadd.f32 %v2067, %v134
    %v2070 = vrot.slane %v2003, 6
    %v2072 = vmul.f32 %v2068, %v2070
    %2074 = vrot.lane.b32.xlu0 %v2068, 64
    %v2075 = vpop.permute.xlu0 %2074
    %v2077 = vmul.f32 %v2068, %v2075
    %2079 = vrot.lane.b32.xlu0 %v2077, 32
    %v2080 = vpop.permute.xlu0 %2079
    %v2082 = vadd.f32 %v2072, %v2080
    %v2083 = vtanh.pop %v2082
    %2085 = vrot.lane.b32.xlu0 %v2083, 64
    %v2086 = vpop.permute.xlu0 %2085
    %v2088 = vmul.f32 %v2068, %v2086
    %2090 = vrot.lane.b32.xlu0 %v2088, 32
    %v2091 = vpop.permute.xlu0 %2090
    %2093 = vst.msk [vmem:[#allocation2 + $0xa] sm:$0xc] %vm1774, %v2091
    %v2094 = vpack.c.bf16 %v2088, %v2088
    %v2096 = vrot.slane %v2094, 1
    %2097 = vrot.lane.b32.xlu0 %v2096, 32
    %v2098 = vpop.permute.xlu0 %2097
    %v2100 = vsel %vm147, %v2098, 0
    %2102 = vmatprep.subr.bf16.mxu0 0
    %2103 = vmatpush1.bf16.msra.mxu0 %v1552
    %2104 = vmatprep.subr.bf16.mxu0 0
    %2105 = vmatpush1.bf16.msra.mxu0 %v1553
    %2106 = vmatprep.subr.bf16.mxu0 0
    %2107 = vmatpush1.bf16.msra.mxu0 0
    %2108 = vmatprep.subr.bf16.mxu0 0
    %2109 = vmatpush1.bf16.msra.mxu0 0
    %2110 = vmatprep.subr.bf16.mxu0 0
    %2111 = vmatpush1.bf16.msra.mxu0 0
    %2112 = vmatprep.subr.bf16.mxu0 0
    %2113 = vmatpush1.bf16.msra.mxu0 0
    %2114 = vmatprep.subr.bf16.mxu0 0
    %2115 = vmatpush1.bf16.msra.mxu0 0
    %2116 = vmatprep.subr.bf16.mxu0 0
    %2117 = vmatpush1.bf16.msra.mxu0 0
    %2118 = vmatprep.subr.bf16.mxu0 0
    %2119 = vmatpush1.bf16.msra.mxu0 0
    %2120 = vmatprep.subr.bf16.mxu0 0
    %2121 = vmatpush1.bf16.msra.mxu0 0
    %2122 = vmatprep.subr.bf16.mxu0 0
    %2123 = vmatpush1.bf16.msra.mxu0 0
    %2124 = vmatprep.subr.bf16.mxu0 0
    %2125 = vmatpush1.bf16.msra.mxu0 0
    %2126 = vmatprep.subr.bf16.mxu0 0
    %2127 = vmatpush1.bf16.msra.mxu0 0
    %2128 = vmatprep.subr.bf16.mxu0 0
    %2129 = vmatpush1.bf16.msra.mxu0 0
    %2130 = vmatprep.subr.bf16.mxu0 0
    %2131 = vmatpush1.bf16.msra.mxu0 0
    %2132 = vmatprep.subr.bf16.mxu0 0
    %2133 = vmatpush1.bf16.msra.mxu0 0
    %2134 = vmatprep.mubr.bf16.mxu0 0
    %2135 = vmatmul.mubr.bf16.gmra.mrb[0].mxu0 %v2100
    %v2136 = vpop.f32.mrb[0].mxu0
    %v2137 = vadd.f32 0.0, %v2136
    %v2138 = vpop.f32.mrb[0].mxu0
    %v2139 = vpop.f32.mrb[0].mxu0
    %v2140 = vpop.f32.mrb[0].mxu0
    %2141 = vdwg.mxu0
    %v2143 = vrot.slane %v2137, 4
    %v2145 = vadd.f32 %v1541, %v2143
    %v2146 = vtanh.pop %v2145
    %v2147 = vmul.f32 %v2146, %v133
    %v2148 = vadd.f32 %v2147, %v134
    %v2150 = vrot.slane %v2082, 6
    %v2152 = vmul.f32 %v2148, %v2150
    %2154 = vrot.lane.b32.xlu0 %v2148, 64
    %v2155 = vpop.permute.xlu0 %2154
    %v2157 = vmul.f32 %v2148, %v2155
    %2159 = vrot.lane.b32.xlu0 %v2157, 32
    %v2160 = vpop.permute.xlu0 %2159
    %v2162 = vadd.f32 %v2152, %v2160
    %v2163 = vtanh.pop %v2162
    %2165 = vrot.lane.b32.xlu0 %v2163, 64
    %v2166 = vpop.permute.xlu0 %2165
    %v2168 = vmul.f32 %v2148, %v2166
    %2170 = vrot.lane.b32.xlu0 %v2168, 32
    %v2171 = vpop.permute.xlu0 %2170
    %2173 = vst.msk [vmem:[#allocation2 + $0xa] sm:$0x30] %vm1855, %v2171
    %v2174 = vld [vmem:[#allocation2] sm:$0xff]
    %v2175 = vld [vmem:[#allocation2 + $0x8] sm:$0xff]
    %v2176 = vpack.c.bf16 %v2175, %v2174
    %v2177 = vlaneseq
    %v2178 = vshrl.u32 %v2177, 7
    %v2179 = vsub.s32 0, %v2178
    %v2180 = vrot.slane %v69, %v2179
    %v2185 = vunpack.c.l.b16 %v60
    %v2186 = vunpack.c.l.b16 %v61
    %v2187 = vunpack.c.l.b16 %v62
    %v2188 = vunpack.c.l.b16 %v63
    %v2189 = vpack.c.b16 %v2186, %v2185
    %v2190 = vpack.c.b16 %v2188, %v2187
    %v2194 = vsel %vm147, %v2176, 0
    %2196 = vmatprep.subr.bf16.mxu0 0
    %2197 = vmatpush1.bf16.msra.mxu0 %v2189
    %2198 = vmatprep.subr.bf16.mxu0 0
    %2199 = vmatpush1.bf16.msra.mxu0 %v2190
    %2200 = vmatprep.subr.bf16.mxu0 0
    %2201 = vmatpush1.bf16.msra.mxu0 0
    %2202 = vmatprep.subr.bf16.mxu0 0
    %2203 = vmatpush1.bf16.msra.mxu0 0
    %2204 = vmatprep.subr.bf16.mxu0 0
    %2205 = vmatpush1.bf16.msra.mxu0 0
    %2206 = vmatprep.subr.bf16.mxu0 0
    %2207 = vmatpush1.bf16.msra.mxu0 0
    %2208 = vmatprep.subr.bf16.mxu0 0
    %2209 = vmatpush1.bf16.msra.mxu0 0
    %2210 = vmatprep.subr.bf16.mxu0 0
    %2211 = vmatpush1.bf16.msra.mxu0 0
    %2212 = vmatprep.subr.bf16.mxu0 0
    %2213 = vmatpush1.bf16.msra.mxu0 0
    %2214 = vmatprep.subr.bf16.mxu0 0
    %2215 = vmatpush1.bf16.msra.mxu0 0
    %2216 = vmatprep.subr.bf16.mxu0 0
    %2217 = vmatpush1.bf16.msra.mxu0 0
    %2218 = vmatprep.subr.bf16.mxu0 0
    %2219 = vmatpush1.bf16.msra.mxu0 0
    %2220 = vmatprep.subr.bf16.mxu0 0
    %2221 = vmatpush1.bf16.msra.mxu0 0
    %2222 = vmatprep.subr.bf16.mxu0 0
    %2223 = vmatpush1.bf16.msra.mxu0 0
    %2224 = vmatprep.subr.bf16.mxu0 0
    %2225 = vmatpush1.bf16.msra.mxu0 0
    %2226 = vmatprep.subr.bf16.mxu0 0
    %2227 = vmatpush1.bf16.msra.mxu0 0
    %2228 = vmatprep.mubr.bf16.mxu0 0
    %2229 = vmatmul.mubr.bf16.gmra.mrb[0].mxu0 %v2194
    %v2230 = vpop.f32.mrb[0].mxu0
    %v2231 = vadd.f32 %v2180, %v2230
    %v2232 = vpop.f32.mrb[0].mxu0
    %v2233 = vpop.f32.mrb[0].mxu0
    %v2234 = vadd.f32 %v2180, %v2233
    %v2235 = vpop.f32.mrb[0].mxu0
    %2236 = vdwg.mxu0
    %2237 = vst [vmem:[%s5] sm:$0xff] %v2231
    %2238 = vst [vmem:[%s5 + $0x8] sm:$0xff] %v2234
    // Predicated region
    $region22: #{vae_forward.1} parent=1 // pred_check
      _
    $region23: #{vae_forward.1} parent=1 // pred_check_branch
      %2240 = sbr.rel (0) target = $region25
    $region24: #{vae_forward.1} parent=1 // pred_region
      _
    $region25: #{vae_forward.1} parent=1 // pred_fallthru
      _
    // Predicated region
    $region26: #{vae_forward.1} parent=1 // pred_check
      _
    $region27: #{vae_forward.1} parent=1 // pred_check_branch
      %2242 = sbr.rel (0) target = $region29
    $region28: #{vae_forward.1} parent=1 // pred_region
      _
    $region29: #{vae_forward.1} parent=1 // pred_fallthru
      _
    // Predicated region
    $region30: #{vae_forward.1} parent=1 // pred_check
      _
    $region31: #{vae_forward.1} parent=1 // pred_check_branch
      %2244 = sbr.rel (0) target = $region33
    $region32: #{vae_forward.1} parent=1 // pred_region
      _
    $region33: #{vae_forward.1} parent=1 // pred_fallthru
      _
    // Predicated region
    $region34: #{vae_forward.1} parent=1 // pred_check
      _
    $region35: #{vae_forward.1} parent=1 // pred_check_branch
      %2246 = sbr.rel (0) target = $region37
    $region36: #{vae_forward.1} parent=1 // pred_region
      _
    $region37: #{vae_forward.1} parent=1 // pred_fallthru
      _
    %2247 = vsyncpa [#allocation4], 1

</llo_original>
